<compile_context>
chip_gen: v7x
topology: tpu7x:2x2x1
jax: 0.10.0
libtpu: 0.0.40
codegen_flags: <defaults>
</compile_context>

<pallas_src>
import math
import functools

import jax
import jax.numpy as jnp
from jax.experimental import pallas as pl
from jax.experimental.pallas import tpu as pltpu

# ----- module hyper-parameters (match ResEGNN defaults) ---------------------
D_IN = 41                      # dims_in
M_DIM = 32                     # m_dim
E_DIM = 2 * D_IN + 1           # edge_input_dim = 83
EH = 2 * E_DIM                 # edge hidden     = 166
CH = 4 * M_DIM                 # coors hidden    = 128
NH = 2 * D_IN                  # node hidden     = 82
COORS_EPS = 1e-8               # CoorsNorm eps (clamp on the norm)
LN_EPS = 1e-5                  # torch.nn.LayerNorm default eps
SCALE = 1.0 / 50.0


def _silu(x):
    # x * sigmoid(x); sigmoid via tanh identity -> one EUP op, no divide.
    return x * (jnp.tanh(x * 0.5) * 0.5 + 0.5)


# ----------------------------- Pallas kernel --------------------------------
def _egnn_kernel(fi_ref, fa_ref, fb_ref, ci_ref, cj_ref,
                 w1c_ref, w2_ref, b2_ref, w3_ref, b3_ref,
                 w4c_ref, b4c_ref,
                 w5a_ref, w5b_ref, b5_ref, w6_ref, b6_ref,
                 node_out_ref, coors_out_ref,
                 mi_scr, upd_scr):
    f32 = jnp.float32
    j_blk = pl.program_id(2)
    nj = pl.num_programs(2)

    ti = fa_ref.shape[1]
    tj = fb_ref.shape[1]
    cdt = fa_ref.dtype            # elementwise compute dtype (bf16 on v6e/v7x)

    @pl.when(j_blk == 0)
    def _init():
        mi_scr[...] = jnp.zeros(mi_scr.shape, mi_scr.dtype)
        upd_scr[...] = jnp.zeros(upd_scr.shape, upd_scr.dtype)

    # ---- lane-dense pairwise geometry: (TI, TJ) planes per component --------
    c_i = ci_ref[0]                                     # (TI, 3)  f32
    cjt = jnp.transpose(cj_ref[0], (1, 0))              # (8, TJ)  aligned relayout
    rel_x = c_i[:, 0:1] - cjt[0:1, :]                   # (TI, TJ) f32, lane dense
    rel_y = c_i[:, 1:2] - cjt[1:2, :]
    rel_z = c_i[:, 2:3] - cjt[2:3, :]
    rel_d2 = rel_x * rel_x + rel_y * rel_y + rel_z * rel_z   # (TI, TJ) f32

    # ---- edge MLP stage 1: concat([f_i, f_j, d^2]) @ W1 == fa_i + fb_j + d2*w1c
    rd = rel_d2.astype(cdt).reshape(ti, tj, 1)          # single small relayout/step
    h1 = _silu(fa_ref[0][:, None, :] + fb_ref[0][None, :, :] + rd * w1c_ref[...])
    h1 = h1.reshape(ti * tj, h1.shape[-1])              # (P, EH) cdt, free merge

    # ---- edge MLP stage 2 (MXU, f32 accumulation) ----------------------------
    m_ij = _silu(jnp.dot(h1, w2_ref[...], preferred_element_type=f32)
                 + b2_ref[...])                          # (P, M) f32
    mi_scr[...] += jnp.sum(m_ij.reshape(ti, tj, -1), axis=1)   # (TI, M) f32

    # ---- coors MLP ------------------------------------------------------------
    c_hid = _silu((jnp.dot(m_ij.astype(cdt), w3_ref[...],
                           preferred_element_type=f32)
                   + b3_ref[...]).astype(cdt))           # (P, CH) cdt
    cw = (jnp.sum(c_hid.reshape(ti, tj, -1) * w4c_ref[...].reshape(1, 1, -1),
                  axis=-1)
          + b4c_ref[...])                                # (TI, TJ) f32, lane dense

    # CoorsNorm: LayerNorm over a size-1 feature == beta exactly (folded into
    # w4c/b4c in the wrapper); 1/max(|rel|, eps) == rsqrt(max(d2, eps^2)).
    # The diagonal contributes exactly 0 because rel_{x,y,z} are exactly 0 there.
    w_ij = cw * jax.lax.rsqrt(jnp.maximum(rel_d2, COORS_EPS * COORS_EPS))
    upd_scr[...] += jnp.concatenate(
        [jnp.sum(w_ij * rel_x, axis=1, keepdims=True),
         jnp.sum(w_ij * rel_y, axis=1, keepdims=True),
         jnp.sum(w_ij * rel_z, axis=1, keepdims=True)], axis=-1)   # (TI, 3)

    # ---- finalize on the last j tile ------------------------------------------
    @pl.when(j_blk == nj - 1)
    def _finalize():
        f_i = fi_ref[0]                                  # (TI, D) f32
        nh = _silu(jnp.dot(f_i, w5a_ref[...], preferred_element_type=f32)
                   + jnp.dot(mi_scr[...], w5b_ref[...], preferred_element_type=f32)
                   + b5_ref[...])                        # (TI, NH)
        node_out_ref[0] = (jnp.dot(nh, w6_ref[...], preferred_element_type=f32)
                           + b6_ref[...] + f_i)          # (TI, D)
        coors_out_ref[0] = c_i + upd_scr[...]            # (TI, 3)


# ------------------------------- wrapper -------------------------------------
def _pick_tile(n, target):
    """Largest multiple of 8 that divides n and is <= target (else n)."""
    if n <= target:
        return n
    t = (min(target, n) // 8) * 8
    while t >= 8:
        if n % t == 0:
            return t
        t -= 8
    return n


def _tpu_generation():
    try:
        kind = jax.devices()[0].device_kind.lower()
    except Exception:
        return None
    for g in (7, 6, 5, 4, 3):
        if f"v{g}" in kind or f"tpu{g}" in kind:
            return g
    return None


def egnn_layer_pallas(feats, coors, p, *, tile_i=None, tile_j=None,
                      compute_dtype=None, vmem_limit_bytes=None):
    """One EGNN layer.  feats (B, N, D) f32, coors (B, N, 3) f32."""
    B, N, D = feats.shape
    f32 = jnp.float32

    gen = _tpu_generation()
    if compute_dtype is None:
        # v6e/v7x have bf16 VPU/EUP; keep f32 elementwise on v5e / unknown HW.
        compute_dtype = jnp.bfloat16 if (gen is not None and gen >= 6) else f32
    cdt = compute_dtype

    # Generation-specific tiling / VMEM budget (v7x: 64 MiB VMEM per TC).
    if gen is not None and gen >= 7:
        ti_tgt, tj_tgt, vmem_dflt = 128, 128, 52 * 1024 * 1024
    elif gen in (5, 6):
        ti_tgt, tj_tgt, vmem_dflt = 128, 256, 100 * 1024 * 1024
    else:
        ti_tgt, tj_tgt, vmem_dflt = 64, 128, 48 * 1024 * 1024
    ti = tile_i if tile_i is not None else _pick_tile(N, ti_tgt)
    tj = tile_j if tile_j is not None else _pick_tile(N, tj_tgt)
    if vmem_limit_bytes is None:
        vmem_limit_bytes = vmem_dflt
    assert N % ti == 0 and N % tj == 0, "N must be divisible by the tile sizes"

    eh = p['w1'].shape[1]
    m_dim = p['w2'].shape[1]

    # Split the concat-weights row-wise (concat-then-matmul == sum of matmuls).
    w1a = p['w1'][:D]                 # (D, EH)
    w1b = p['w1'][D:2 * D]            # (D, EH)
    w1c = p['w1'][2 * D:].astype(cdt)  # (1, EH)

    # i-invariant / j-invariant halves of the first edge Linear, precomputed by
    # XLA once per layer instead of inside every grid step.
    fa = (jnp.einsum('bnd,de->bne', feats, w1a) + p['b1']).astype(cdt)   # (B,N,EH)
    fb = jnp.einsum('bnd,de->bne', feats, w1b).astype(cdt)               # (B,N,EH)

    # LayerNorm over a size-1 feature outputs exactly ln_beta, so fold
    # scale * ln_beta straight into the last coors-MLP Linear.
    coef = SCALE * p['ln_b']
    w4c = (p['w4'].T * coef).astype(cdt)                # (1, CH)
    b4c = (p['b4'] * coef).reshape(1, 1).astype(f32)    # (1, 1)

    # j-side coordinates zero-padded 3 -> 8 so the in-kernel transpose is an
    # aligned (TJ, 8) -> (8, TJ) relayout.
    coors_j = jnp.concatenate([coors, jnp.zeros((B, N, 5), f32)], axis=-1)

    def r2(b):
        return b.reshape(1, -1).astype(f32)

    args = (feats, fa, fb, coors, coors_j,
            w1c, p['w2'].astype(cdt), r2(p['b2']),
            p['w3'].astype(cdt), r2(p['b3']),
            w4c, b4c,
            p['w5'][:D], p['w5'][D:], r2(p['b5']),
            p['w6'], r2(p['b6']))

    grid = (B, N // ti, N // tj)

    in_specs = [
        pl.BlockSpec((1, ti, D), lambda b, i, j: (b, i, 0)),    # feats   (i rows)
        pl.BlockSpec((1, ti, eh), lambda b, i, j: (b, i, 0)),   # fa      (i rows)
        pl.BlockSpec((1, tj, eh), lambda b, i, j: (b, j, 0)),   # fb      (j rows)
        pl.BlockSpec((1, ti, 3), lambda b, i, j: (b, i, 0)),    # coors   (i rows)
        pl.BlockSpec((1, tj, 8), lambda b, i, j: (b, j, 0)),    # coors_j (j rows)
    ]
    for a in args[5:]:                                          # all weights are 2-D
        in_specs.append(pl.BlockSpec(a.shape, lambda b, i, j: (0, 0)))

    out_shape = (jax.ShapeDtypeStruct((B, N, D), f32),
                 jax.ShapeDtypeStruct((B, N, 3), f32))
    out_specs = (pl.BlockSpec((1, ti, D), lambda b, i, j: (b, i, 0)),
                 pl.BlockSpec((1, ti, 3), lambda b, i, j: (b, i, 0)))

    scratch_shapes = [pltpu.VMEM((ti, m_dim), f32),   # m_i accumulator
                      pltpu.VMEM((ti, 3), f32)]       # coordinate-update accumulator

    node_out, coors_out = pl.pallas_call(
        _egnn_kernel,
        grid=grid,
        in_specs=in_specs,
        out_specs=out_specs,
        out_shape=out_shape,
        scratch_shapes=scratch_shapes,
        compiler_params=pltpu.CompilerParams(
            dimension_semantics=("parallel", "parallel", "arbitrary"),
            vmem_limit_bytes=vmem_limit_bytes),
    )(*args)
    return node_out, coors_out


def res_egnn_pallas(amino, geom, params, is_fea=False, keep_last_cords=None,
                    tile_i=None, tile_j=None, compute_dtype=None):
    """ResEGNN.forward semantics."""
    output = []
    for p in params:
        geom_init = geom
        amino, geom = egnn_layer_pallas(amino, geom, p, tile_i=tile_i,
                                        tile_j=tile_j, compute_dtype=compute_dtype)
        if keep_last_cords is not None:
            geom = geom.at[:, -keep_last_cords:].set(geom_init[:, -keep_last_cords:])
        output.append([amino, geom])
    return output if is_fea else geom


# --------------------------- parameter init ----------------------------------
def _linear_init(key, fan_in, fan_out):
    kw, kb = jax.random.split(key)
    bound = 1.0 / math.sqrt(fan_in)
    w = jax.random.uniform(kw, (fan_in, fan_out), jnp.float32, -bound, bound)
    b = jax.random.uniform(kb, (fan_out,), jnp.float32, -bound, bound)
    return w, b


def init_params(key, corrections=4, dim=D_IN, m_dim=M_DIM):
    layers = []
    e_in = 2 * dim + 1
    for _ in range(corrections):
        key, k1, k2, k3, k4, k5, k6, k7 = jax.random.split(key, 8)
        w1, b1 = _linear_init(k1, e_in, 2 * e_in)
        w2, b2 = _linear_init(k2, 2 * e_in, m_dim)
        w3, b3 = _linear_init(k3, m_dim, 4 * m_dim)
        w4, b4 = _linear_init(k4, 4 * m_dim, 1)
        w5, b5 = _linear_init(k5, dim + m_dim, 2 * dim)
        w6, b6 = _linear_init(k6, 2 * dim, dim)
        ln_g = jnp.ones((), jnp.float32)
        # NOTE: torch default beta is 0 (which zeroes the coordinate update);
        # use a deterministic non-zero beta so the coordinate path is exercised.
        ln_b = 0.1 * jax.random.normal(k7, (), jnp.float32)
        layers.append(dict(w1=w1, b1=b1, w2=w2, b2=b2, w3=w3, b3=b3,
                           w4=w4, b4=b4, w5=w5, b5=b5, w6=w6, b6=b6,
                           ln_g=ln_g, ln_b=ln_b))
    return layers


# --------------------------- pure-JAX reference -------------------------------
def _silu_ref(x):
    return x * jax.nn.sigmoid(x)


def _egnn_ref(feats, coors, p):
    hi = jax.lax.Precision.HIGHEST
    B, N, D = feats.shape
    rel = coors[:, :, None, :] - coors[:, None, :, :]
    rel_dist = jnp.sum(rel ** 2, axis=-1, keepdims=True)
    fi = jnp.broadcast_to(feats[:, :, None, :], (B, N, N, D))
    fj = jnp.broadcast_to(feats[:, None, :, :], (B, N, N, D))
    edge_in = jnp.concatenate([fi, fj, rel_dist], axis=-1)
    h1 = _silu_ref(jnp.einsum('bijk,kl->bijl', edge_in, p['w1'], precision=hi) + p['b1'])
    m_ij = _silu_ref(jnp.einsum('bijk,kl->bijl', h1, p['w2'], precision=hi) + p['b2'])
    ch = _silu_ref(jnp.einsum('bijk,kl->bijl', m_ij, p['w3'], precision=hi) + p['b3'])
    cw = (jnp.einsum('bijk,kl->bijl', ch, p['w4'], precision=hi) + p['b4'])[..., 0]
    norm = jnp.linalg.norm(rel, axis=-1, keepdims=True)
    normed = rel / jnp.maximum(norm, COORS_EPS)
    phase = (norm - norm) / jnp.sqrt(jnp.zeros_like(norm) + LN_EPS) * p['ln_g'] + p['ln_b']
    rel_n = phase * normed
    coors_out = jnp.einsum('bij,bijc->bic', cw * SCALE, rel_n, precision=hi) + coors
    m_i = jnp.sum(m_ij, axis=-2)
    node_in = jnp.concatenate([feats, m_i], axis=-1)
    nh = _silu_ref(jnp.einsum('bik,kl->bil', node_in, p['w5'], precision=hi) + p['b5'])
    node_out = jnp.einsum('bik,kl->bil', nh, p['w6'], precision=hi) + p['b6'] + feats
    return node_out, coors_out


def res_egnn_ref(amino, geom, params):
    for p in params:
        amino, geom = _egnn_ref(amino, geom, p)
    return geom


# ------------------------------------ main ------------------------------------
if __name__ == "__main__":
    key = jax.random.PRNGKey(0)
    B, N = 2, 16
    k_f, k_c, k_p = jax.random.split(key, 3)

    amino = jax.random.normal(k_f, (B, N, D_IN), jnp.float32)   # node features
    geom = jax.random.normal(k_c, (B, N, 3), jnp.float32)       # coordinates
    params = init_params(k_p, corrections=4)

    # small tiles (8) so the j-reduction accumulation and i-tiling are exercised
    run = jax.jit(functools.partial(res_egnn_pallas, params=params,
                                    tile_i=8, tile_j=8))
    geom_out = jax.block_until_ready(run(amino, geom))

    geom_ref = res_egnn_ref(amino, geom, params)
    assert geom_out.shape == (B, N, 3)
    max_err = float(jnp.max(jnp.abs(geom_out - geom_ref)))
    assert jnp.allclose(geom_out, geom_ref, atol=1e-2, rtol=1e-2), \
        f"mismatch vs reference (max abs err {max_err:.3e})"

    print("KERNEL_OK")
</pallas_src>

<mosaic_0001>
module attributes {stable_mosaic.version = 11 : i64} {
  func.func @_egnn_kernel(%arg0: i32, %arg1: i32, %arg2: i32, %arg3: memref<1x8x41xf32, #tpu.memory_space<vmem>>, %arg4: memref<1x8x166xf32, #tpu.memory_space<vmem>>, %arg5: memref<1x8x166xf32, #tpu.memory_space<vmem>>, %arg6: memref<1x8x3xf32, #tpu.memory_space<vmem>>, %arg7: memref<1x8x8xf32, #tpu.memory_space<vmem>>, %arg8: memref<1x166xf32, #tpu.memory_space<vmem>>, %arg9: memref<166x32xf32, #tpu.memory_space<vmem>>, %arg10: memref<1x32xf32, #tpu.memory_space<vmem>>, %arg11: memref<32x128xf32, #tpu.memory_space<vmem>>, %arg12: memref<1x128xf32, #tpu.memory_space<vmem>>, %arg13: memref<1x128xf32, #tpu.memory_space<vmem>>, %arg14: memref<1x1xf32, #tpu.memory_space<vmem>>, %arg15: memref<41x82xf32, #tpu.memory_space<vmem>>, %arg16: memref<32x82xf32, #tpu.memory_space<vmem>>, %arg17: memref<1x82xf32, #tpu.memory_space<vmem>>, %arg18: memref<82x41xf32, #tpu.memory_space<vmem>>, %arg19: memref<1x41xf32, #tpu.memory_space<vmem>>, %arg20: memref<1x8x41xf32, #tpu.memory_space<vmem>>, %arg21: memref<1x8x3xf32, #tpu.memory_space<vmem>>, %arg22: memref<8x32xf32, #tpu.memory_space<vmem>>, %arg23: memref<8x3xf32, #tpu.memory_space<vmem>>) attributes {dimension_semantics = [#tpu.dimension_semantics<parallel>, #tpu.dimension_semantics<parallel>, #tpu.dimension_semantics<arbitrary>], iteration_bounds = array<i64: 2, 2, 2>, scalar_prefetch = 0 : i64, scratch_operands = 2 : i64, tpu.core_type = #tpu.core_type<tc>, window_params = [{transform_indices = @transform_0, window_bounds = array<i64: 1, 8, 41>}, {transform_indices = @transform_1, window_bounds = array<i64: 1, 8, 166>}, {transform_indices = @transform_2, window_bounds = array<i64: 1, 8, 166>}, {transform_indices = @transform_3, window_bounds = array<i64: 1, 8, 3>}, {transform_indices = @transform_4, window_bounds = array<i64: 1, 8, 8>}, {pipeline_mode = #tpu.pipeline_mode<synchronous>, transform_indices = @transform_5, window_bounds = array<i64: 1, 166>}, {pipeline_mode = #tpu.pipeline_mode<synchronous>, transform_indices = @transform_6, window_bounds = array<i64: 166, 32>}, {pipeline_mode = #tpu.pipeline_mode<synchronous>, transform_indices = @transform_7, window_bounds = array<i64: 1, 32>}, {pipeline_mode = #tpu.pipeline_mode<synchronous>, transform_indices = @transform_8, window_bounds = array<i64: 32, 128>}, {pipeline_mode = #tpu.pipeline_mode<synchronous>, transform_indices = @transform_9, window_bounds = array<i64: 1, 128>}, {pipeline_mode = #tpu.pipeline_mode<synchronous>, transform_indices = @transform_10, window_bounds = array<i64: 1, 128>}, {pipeline_mode = #tpu.pipeline_mode<synchronous>, transform_indices = @transform_11, window_bounds = array<i64: 1, 1>}, {pipeline_mode = #tpu.pipeline_mode<synchronous>, transform_indices = @transform_12, window_bounds = array<i64: 41, 82>}, {pipeline_mode = #tpu.pipeline_mode<synchronous>, transform_indices = @transform_13, window_bounds = array<i64: 32, 82>}, {pipeline_mode = #tpu.pipeline_mode<synchronous>, transform_indices = @transform_14, window_bounds = array<i64: 1, 82>}, {pipeline_mode = #tpu.pipeline_mode<synchronous>, transform_indices = @transform_15, window_bounds = array<i64: 82, 41>}, {pipeline_mode = #tpu.pipeline_mode<synchronous>, transform_indices = @transform_16, window_bounds = array<i64: 1, 41>}, {transform_indices = @transform_17, window_bounds = array<i64: 1, 8, 41>}, {transform_indices = @transform_18, window_bounds = array<i64: 1, 8, 3>}]} {
    %c0_i32 = arith.constant 0 : i32
    %0 = arith.cmpi eq, %arg2, %c0_i32 : i32
    %1 = arith.extui %0 : i1 to i32
    %c0_i32_0 = arith.constant 0 : i32
    %2 = arith.cmpi ne, %1, %c0_i32_0 : i32
    scf.if %2 {
      %cst_51 = arith.constant 0.000000e+00 : f32
      %113 = vector.broadcast %cst_51 : f32 to vector<8x32xf32>
      %c0_52 = arith.constant 0 : index
      %c0_53 = arith.constant 0 : index
      %114 = vector.load %arg22[%c0_52, %c0_53] : memref<8x32xf32, #tpu.memory_space<vmem>>, vector<8x32xf32>
      tpu.vector_store %arg22[%c0_52, %c0_53], %113 {strides = array<i32>} : memref<8x32xf32, #tpu.memory_space<vmem>>, vector<8x32xf32>,
      %cst_54 = arith.constant 0.000000e+00 : f32
      %115 = vector.broadcast %cst_54 : f32 to vector<8x3xf32>
      %c0_55 = arith.constant 0 : index
      %c0_56 = arith.constant 0 : index
      %116 = vector.load %arg23[%c0_55, %c0_56] : memref<8x3xf32, #tpu.memory_space<vmem>>, vector<8x3xf32>
      tpu.vector_store %arg23[%c0_55, %c0_56], %115 {strides = array<i32>} : memref<8x3xf32, #tpu.memory_space<vmem>>, vector<8x3xf32>,
    } else {
    }
    %c0 = arith.constant 0 : index
    %c0_1 = arith.constant 0 : index
    %c0_2 = arith.constant 0 : index
    %3 = vector.load %arg6[%c0, %c0_1, %c0_2] : memref<1x8x3xf32, #tpu.memory_space<vmem>>, vector<1x8x3xf32>
    %4 = vector.shape_cast %3 : vector<1x8x3xf32> to vector<8x3xf32>
    %c0_3 = arith.constant 0 : index
    %c0_4 = arith.constant 0 : index
    %c0_5 = arith.constant 0 : index
    %5 = vector.load %arg7[%c0_3, %c0_4, %c0_5] : memref<1x8x8xf32, #tpu.memory_space<vmem>>, vector<1x8x8xf32>
    %6 = vector.shape_cast %5 : vector<1x8x8xf32> to vector<8x8xf32>
    %7 = tpu.transpose %6, [1, 0] : vector<8x8xf32> -> vector<8x8xf32>
    %8 = vector.extract_strided_slice %4 {offsets = [0, 0], sizes = [8, 1], strides = [1, 1]} : vector<8x3xf32> to vector<8x1xf32>
    %9 = vector.extract_strided_slice %7 {offsets = [0, 0], sizes = [1, 8], strides = [1, 1]} : vector<8x8xf32> to vector<1x8xf32>
    %10 = vector.broadcast %8 : vector<8x1xf32> to vector<8x8xf32>
    %11 = vector.broadcast %9 : vector<1x8xf32> to vector<8x8xf32>
    %12 = arith.subf %10, %11 : vector<8x8xf32>
    %13 = vector.extract_strided_slice %4 {offsets = [0, 1], sizes = [8, 1], strides = [1, 1]} : vector<8x3xf32> to vector<8x1xf32>
    %14 = vector.extract_strided_slice %7 {offsets = [1, 0], sizes = [1, 8], strides = [1, 1]} : vector<8x8xf32> to vector<1x8xf32>
    %15 = vector.broadcast %13 : vector<8x1xf32> to vector<8x8xf32>
    %16 = vector.broadcast %14 : vector<1x8xf32> to vector<8x8xf32>
    %17 = arith.subf %15, %16 : vector<8x8xf32>
    %18 = vector.extract_strided_slice %4 {offsets = [0, 2], sizes = [8, 1], strides = [1, 1]} : vector<8x3xf32> to vector<8x1xf32>
    %19 = vector.extract_strided_slice %7 {offsets = [2, 0], sizes = [1, 8], strides = [1, 1]} : vector<8x8xf32> to vector<1x8xf32>
    %20 = vector.broadcast %18 : vector<8x1xf32> to vector<8x8xf32>
    %21 = vector.broadcast %19 : vector<1x8xf32> to vector<8x8xf32>
    %22 = arith.subf %20, %21 : vector<8x8xf32>
    %23 = arith.mulf %12, %12 : vector<8x8xf32>
    %24 = arith.mulf %17, %17 : vector<8x8xf32>
    %25 = arith.addf %23, %24 : vector<8x8xf32>
    %26 = arith.mulf %22, %22 : vector<8x8xf32>
    %27 = arith.addf %25, %26 : vector<8x8xf32>
    %28 = vector.shape_cast %27 : vector<8x8xf32> to vector<8x8x1xf32>
    %c0_6 = arith.constant 0 : index
    %c0_7 = arith.constant 0 : index
    %c0_8 = arith.constant 0 : index
    %29 = vector.load %arg4[%c0_6, %c0_7, %c0_8] : memref<1x8x166xf32, #tpu.memory_space<vmem>>, vector<1x8x166xf32>
    %30 = vector.shape_cast %29 : vector<1x8x166xf32> to vector<8x166xf32>
    %31 = vector.shape_cast %30 : vector<8x166xf32> to vector<8x1x166xf32>
    %c0_9 = arith.constant 0 : index
    %c0_10 = arith.constant 0 : index
    %c0_11 = arith.constant 0 : index
    %32 = vector.load %arg5[%c0_9, %c0_10, %c0_11] : memref<1x8x166xf32, #tpu.memory_space<vmem>>, vector<1x8x166xf32>
    %33 = vector.shape_cast %32 : vector<1x8x166xf32> to vector<8x166xf32>
    %34 = vector.shape_cast %33 : vector<8x166xf32> to vector<1x8x166xf32>
    %35 = vector.broadcast %31 : vector<8x1x166xf32> to vector<8x8x166xf32>
    %36 = vector.broadcast %34 : vector<1x8x166xf32> to vector<8x8x166xf32>
    %37 = arith.addf %35, %36 : vector<8x8x166xf32>
    %c0_12 = arith.constant 0 : index
    %c0_13 = arith.constant 0 : index
    %38 = vector.load %arg8[%c0_12, %c0_13] : memref<1x166xf32, #tpu.memory_space<vmem>>, vector<1x166xf32>
    %39 = vector.shape_cast %38 : vector<1x166xf32> to vector<1x1x166xf32>
    %40 = vector.broadcast %28 : vector<8x8x1xf32> to vector<8x8x166xf32>
    %41 = vector.broadcast %39 : vector<1x1x166xf32> to vector<8x8x166xf32>
    %42 = arith.mulf %40, %41 : vector<8x8x166xf32>
    %43 = arith.addf %37, %42 : vector<8x8x166xf32>
    %cst = arith.constant 5.000000e-01 : f32
    %44 = vector.broadcast %cst : f32 to vector<8x8x166xf32>
    %45 = arith.mulf %43, %44 : vector<8x8x166xf32>
    %46 = math.tanh %45 : vector<8x8x166xf32>
    %cst_14 = arith.constant 5.000000e-01 : f32
    %47 = vector.broadcast %cst_14 : f32 to vector<8x8x166xf32>
    %48 = arith.mulf %46, %47 : vector<8x8x166xf32>
    %cst_15 = arith.constant 5.000000e-01 : f32
    %49 = vector.broadcast %cst_15 : f32 to vector<8x8x166xf32>
    %50 = arith.addf %48, %49 : vector<8x8x166xf32>
    %51 = arith.mulf %43, %50 : vector<8x8x166xf32>
    %52 = vector.shape_cast %51 : vector<8x8x166xf32> to vector<64x166xf32>
    %c0_16 = arith.constant 0 : index
    %c0_17 = arith.constant 0 : index
    %53 = vector.load %arg9[%c0_16, %c0_17] : memref<166x32xf32, #tpu.memory_space<vmem>>, vector<166x32xf32>
    %cst_18 = arith.constant dense<0.000000e+00> : vector<64x32xf32>
    %54 = tpu.matmul %52, %53, %cst_18 {dimension_numbers = #tpu.dot_dimension_numbers<[1], [0], [0], [1], [0, 0, 1, 1], [], []>} : vector<64x166xf32>, vector<166x32xf32>, vector<64x32xf32> -> vector<64x32xf32>
    %c0_19 = arith.constant 0 : index
    %c0_20 = arith.constant 0 : index
    %55 = vector.load %arg10[%c0_19, %c0_20] : memref<1x32xf32, #tpu.memory_space<vmem>>, vector<1x32xf32>
    %56 = vector.broadcast %55 : vector<1x32xf32> to vector<64x32xf32>
    %57 = arith.addf %54, %56 : vector<64x32xf32>
    %cst_21 = arith.constant 5.000000e-01 : f32
    %58 = vector.broadcast %cst_21 : f32 to vector<64x32xf32>
    %59 = arith.mulf %57, %58 : vector<64x32xf32>
    %60 = math.tanh %59 : vector<64x32xf32>
    %cst_22 = arith.constant 5.000000e-01 : f32
    %61 = vector.broadcast %cst_22 : f32 to vector<64x32xf32>
    %62 = arith.mulf %60, %61 : vector<64x32xf32>
    %cst_23 = arith.constant 5.000000e-01 : f32
    %63 = vector.broadcast %cst_23 : f32 to vector<64x32xf32>
    %64 = arith.addf %62, %63 : vector<64x32xf32>
    %65 = arith.mulf %57, %64 : vector<64x32xf32>
    %c0_24 = arith.constant 0 : index
    %c0_25 = arith.constant 0 : index
    %66 = vector.load %arg22[%c0_24, %c0_25] : memref<8x32xf32, #tpu.memory_space<vmem>>, vector<8x32xf32>
    %67 = vector.shape_cast %65 : vector<64x32xf32> to vector<8x8x32xf32>
    %cst_26 = arith.constant dense<0.000000e+00> : vector<8x32xf32>
    %68 = vector.multi_reduction <add>, %67, %cst_26 [1] : vector<8x8x32xf32> to vector<8x32xf32>
    %69 = arith.addf %66, %68 : vector<8x32xf32>
    %c0_27 = arith.constant 0 : index
    %c0_28 = arith.constant 0 : index
    %70 = vector.load %arg22[%c0_27, %c0_28] : memref<8x32xf32, #tpu.memory_space<vmem>>, vector<8x32xf32>
    tpu.vector_store %arg22[%c0_27, %c0_28], %69 {strides = array<i32>} : memref<8x32xf32, #tpu.memory_space<vmem>>, vector<8x32xf32>,
    %c0_29 = arith.constant 0 : index
    %c0_30 = arith.constant 0 : index
    %71 = vector.load %arg11[%c0_29, %c0_30] : memref<32x128xf32, #tpu.memory_space<vmem>>, vector<32x128xf32>
    %cst_31 = arith.constant dense<0.000000e+00> : vector<64x128xf32>
    %72 = tpu.matmul %65, %71, %cst_31 {dimension_numbers = #tpu.dot_dimension_numbers<[1], [0], [0], [1], [0, 0, 1, 1], [], []>} : vector<64x32xf32>, vector<32x128xf32>, vector<64x128xf32> -> vector<64x128xf32>
    %c0_32 = arith.constant 0 : index
    %c0_33 = arith.constant 0 : index
    %73 = vector.load %arg12[%c0_32, %c0_33] : memref<1x128xf32, #tpu.memory_space<vmem>>, vector<1x128xf32>
    %74 = vector.broadcast %73 : vector<1x128xf32> to vector<64x128xf32>
    %75 = arith.addf %72, %74 : vector<64x128xf32>
    %cst_34 = arith.constant 5.000000e-01 : f32
    %76 = vector.broadcast %cst_34 : f32 to vector<64x128xf32>
    %77 = arith.mulf %75, %76 : vector<64x128xf32>
    %78 = math.tanh %77 : vector<64x128xf32>
    %cst_35 = arith.constant 5.000000e-01 : f32
    %79 = vector.broadcast %cst_35 : f32 to vector<64x128xf32>
    %80 = arith.mulf %78, %79 : vector<64x128xf32>
    %cst_36 = arith.constant 5.000000e-01 : f32
    %81 = vector.broadcast %cst_36 : f32 to vector<64x128xf32>
    %82 = arith.addf %80, %81 : vector<64x128xf32>
    %83 = arith.mulf %75, %82 : vector<64x128xf32>
    %84 = vector.shape_cast %83 : vector<64x128xf32> to vector<8x8x128xf32>
    %c0_37 = arith.constant 0 : index
    %c0_38 = arith.constant 0 : index
    %85 = vector.load %arg13[%c0_37, %c0_38] : memref<1x128xf32, #tpu.memory_space<vmem>>, vector<1x128xf32>
    %86 = vector.shape_cast %85 : vector<1x128xf32> to vector<1x1x128xf32>
    %87 = vector.broadcast %86 : vector<1x1x128xf32> to vector<8x8x128xf32>
    %88 = arith.mulf %84, %87 : vector<8x8x128xf32>
    %cst_39 = arith.constant dense<0.000000e+00> : vector<8x8xf32>
    %89 = vector.multi_reduction <add>, %88, %cst_39 [2] : vector<8x8x128xf32> to vector<8x8xf32>
    %c0_40 = arith.constant 0 : index
    %c0_41 = arith.constant 0 : index
    %90 = vector.load %arg14[%c0_40, %c0_41] : memref<1x1xf32, #tpu.memory_space<vmem>>, vector<1x1xf32>
    %91 = vector.broadcast %90 : vector<1x1xf32> to vector<8x8xf32>
    %92 = arith.addf %89, %91 : vector<8x8xf32>
    %cst_42 = arith.constant 1.000000e-16 : f32
    %93 = vector.broadcast %cst_42 : f32 to vector<8x8xf32>
    %94 = arith.maximumf %27, %93 : vector<8x8xf32>
    %95 = math.rsqrt %94 : vector<8x8xf32>
    %96 = arith.mulf %92, %95 : vector<8x8xf32>
    %c0_43 = arith.constant 0 : index
    %c0_44 = arith.constant 0 : index
    %97 = vector.load %arg23[%c0_43, %c0_44] : memref<8x3xf32, #tpu.memory_space<vmem>>, vector<8x3xf32>
    %98 = arith.mulf %96, %12 : vector<8x8xf32>
    %cst_45 = arith.constant dense<0.000000e+00> : vector<8xf32>
    %99 = vector.multi_reduction <add>, %98, %cst_45 [1] : vector<8x8xf32> to vector<8xf32>
    %100 = vector.shape_cast %99 : vector<8xf32> to vector<8x1xf32>
    %101 = arith.mulf %96, %17 : vector<8x8xf32>
    %cst_46 = arith.constant dense<0.000000e+00> : vector<8xf32>
    %102 = vector.multi_reduction <add>, %101, %cst_46 [1] : vector<8x8xf32> to vector<8xf32>
    %103 = vector.shape_cast %102 : vector<8xf32> to vector<8x1xf32>
    %104 = arith.mulf %96, %22 : vector<8x8xf32>
    %cst_47 = arith.constant dense<0.000000e+00> : vector<8xf32>
    %105 = vector.multi_reduction <add>, %104, %cst_47 [1] : vector<8x8xf32> to vector<8xf32>
    %106 = vector.shape_cast %105 : vector<8xf32> to vector<8x1xf32>
    %107 = tpu.concatenate %100, %103, %106 in 1 : vector<8x1xf32>, vector<8x1xf32>, vector<8x1xf32> -> vector<8x3xf32>
    %108 = arith.addf %97, %107 : vector<8x3xf32>
    %c0_48 = arith.constant 0 : index
    %c0_49 = arith.constant 0 : index
    %109 = vector.load %arg23[%c0_48, %c0_49] : memref<8x3xf32, #tpu.memory_space<vmem>>, vector<8x3xf32>
    tpu.vector_store %arg23[%c0_48, %c0_49], %108 {strides = array<i32>} : memref<8x3xf32, #tpu.memory_space<vmem>>, vector<8x3xf32>,
    %c1_i32 = arith.constant 1 : i32
    %110 = arith.cmpi eq, %arg2, %c1_i32 : i32
    %111 = arith.extui %110 : i1 to i32
    %c0_i32_50 = arith.constant 0 : i32
    %112 = arith.cmpi ne, %111, %c0_i32_50 : i32
    scf.if %112 {
      %c0_51 = arith.constant 0 : index
      %c0_52 = arith.constant 0 : index
      %c0_53 = arith.constant 0 : index
      %113 = vector.load %arg3[%c0_51, %c0_52, %c0_53] : memref<1x8x41xf32, #tpu.memory_space<vmem>>, vector<1x8x41xf32>
      %114 = vector.shape_cast %113 : vector<1x8x41xf32> to vector<8x41xf32>
      %c0_54 = arith.constant 0 : index
      %c0_55 = arith.constant 0 : index
      %115 = vector.load %arg15[%c0_54, %c0_55] : memref<41x82xf32, #tpu.memory_space<vmem>>, vector<41x82xf32>
      %cst_56 = arith.constant dense<0.000000e+00> : vector<8x82xf32>
      %116 = tpu.matmul %114, %115, %cst_56 {dimension_numbers = #tpu.dot_dimension_numbers<[1], [0], [0], [1], [0, 0, 1, 1], [], []>} : vector<8x41xf32>, vector<41x82xf32>, vector<8x82xf32> -> vector<8x82xf32>
      %c0_57 = arith.constant 0 : index
      %c0_58 = arith.constant 0 : index
      %117 = vector.load %arg22[%c0_57, %c0_58] : memref<8x32xf32, #tpu.memory_space<vmem>>, vector<8x32xf32>
      %c0_59 = arith.constant 0 : index
      %c0_60 = arith.constant 0 : index
      %118 = vector.load %arg16[%c0_59, %c0_60] : memref<32x82xf32, #tpu.memory_space<vmem>>, vector<32x82xf32>
      %cst_61 = arith.constant dense<0.000000e+00> : vector<8x82xf32>
      %119 = tpu.matmul %117, %118, %cst_61 {dimension_numbers = #tpu.dot_dimension_numbers<[1], [0], [0], [1], [0, 0, 1, 1], [], []>} : vector<8x32xf32>, vector<32x82xf32>, vector<8x82xf32> -> vector<8x82xf32>
      %120 = arith.addf %116, %119 : vector<8x82xf32>
      %c0_62 = arith.constant 0 : index
      %c0_63 = arith.constant 0 : index
      %121 = vector.load %arg17[%c0_62, %c0_63] : memref<1x82xf32, #tpu.memory_space<vmem>>, vector<1x82xf32>
      %122 = vector.broadcast %121 : vector<1x82xf32> to vector<8x82xf32>
      %123 = arith.addf %120, %122 : vector<8x82xf32>
      %cst_64 = arith.constant 5.000000e-01 : f32
      %124 = vector.broadcast %cst_64 : f32 to vector<8x82xf32>
      %125 = arith.mulf %123, %124 : vector<8x82xf32>
      %126 = math.tanh %125 : vector<8x82xf32>
      %cst_65 = arith.constant 5.000000e-01 : f32
      %127 = vector.broadcast %cst_65 : f32 to vector<8x82xf32>
      %128 = arith.mulf %126, %127 : vector<8x82xf32>
      %cst_66 = arith.constant 5.000000e-01 : f32
      %129 = vector.broadcast %cst_66 : f32 to vector<8x82xf32>
      %130 = arith.addf %128, %129 : vector<8x82xf32>
      %131 = arith.mulf %123, %130 : vector<8x82xf32>
      %c0_67 = arith.constant 0 : index
      %c0_68 = arith.constant 0 : index
      %132 = vector.load %arg18[%c0_67, %c0_68] : memref<82x41xf32, #tpu.memory_space<vmem>>, vector<82x41xf32>
      %cst_69 = arith.constant dense<0.000000e+00> : vector<8x41xf32>
      %133 = tpu.matmul %131, %132, %cst_69 {dimension_numbers = #tpu.dot_dimension_numbers<[1], [0], [0], [1], [0, 0, 1, 1], [], []>} : vector<8x82xf32>, vector<82x41xf32>, vector<8x41xf32> -> vector<8x41xf32>
      %c0_70 = arith.constant 0 : index
      %c0_71 = arith.constant 0 : index
      %134 = vector.load %arg19[%c0_70, %c0_71] : memref<1x41xf32, #tpu.memory_space<vmem>>, vector<1x41xf32>
      %135 = vector.broadcast %134 : vector<1x41xf32> to vector<8x41xf32>
      %136 = arith.addf %133, %135 : vector<8x41xf32>
      %137 = arith.addf %136, %114 : vector<8x41xf32>
      %c0_72 = arith.constant 0 : index
      %c0_73 = arith.constant 0 : index
      %c0_74 = arith.constant 0 : index
      %138 = vector.load %arg20[%c0_72, %c0_73, %c0_74] : memref<1x8x41xf32, #tpu.memory_space<vmem>>, vector<1x8x41xf32>
      %139 = vector.shape_cast %138 : vector<1x8x41xf32> to vector<8x41xf32>
      %140 = vector.shape_cast %137 : vector<8x41xf32> to vector<1x8x41xf32>
      tpu.vector_store %arg20[%c0_72, %c0_73, %c0_74], %140 {strides = array<i32>} : memref<1x8x41xf32, #tpu.memory_space<vmem>>, vector<1x8x41xf32>,
      %c0_75 = arith.constant 0 : index
      %c0_76 = arith.constant 0 : index
      %141 = vector.load %arg23[%c0_75, %c0_76] : memref<8x3xf32, #tpu.memory_space<vmem>>, vector<8x3xf32>
      %142 = arith.addf %4, %141 : vector<8x3xf32>
      %c0_77 = arith.constant 0 : index
      %c0_78 = arith.constant 0 : index
      %c0_79 = arith.constant 0 : index
      %143 = vector.load %arg21[%c0_77, %c0_78, %c0_79] : memref<1x8x3xf32, #tpu.memory_space<vmem>>, vector<1x8x3xf32>
      %144 = vector.shape_cast %143 : vector<1x8x3xf32> to vector<8x3xf32>
      %145 = vector.shape_cast %142 : vector<8x3xf32> to vector<1x8x3xf32>
      tpu.vector_store %arg21[%c0_77, %c0_78, %c0_79], %145 {strides = array<i32>} : memref<1x8x3xf32, #tpu.memory_space<vmem>>, vector<1x8x3xf32>,
    } else {
    }
    return
  }
  func.func @transform_0(%arg0: i32, %arg1: i32, %arg2: i32) -> (i32, i32, i32) {
    %c0_i32 = arith.constant 0 : i32
    %c0_i32_0 = arith.constant 0 : i32
    return %arg0, %arg1, %c0_i32 : i32, i32, i32
  }
  func.func @transform_1(%arg0: i32, %arg1: i32, %arg2: i32) -> (i32, i32, i32) {
    %c0_i32 = arith.constant 0 : i32
    %c0_i32_0 = arith.constant 0 : i32
    return %arg0, %arg1, %c0_i32 : i32, i32, i32
  }
  func.func @transform_2(%arg0: i32, %arg1: i32, %arg2: i32) -> (i32, i32, i32) {
    %c0_i32 = arith.constant 0 : i32
    %c0_i32_0 = arith.constant 0 : i32
    return %arg0, %arg2, %c0_i32 : i32, i32, i32
  }
  func.func @transform_3(%arg0: i32, %arg1: i32, %arg2: i32) -> (i32, i32, i32) {
    %c0_i32 = arith.constant 0 : i32
    %c0_i32_0 = arith.constant 0 : i32
    return %arg0, %arg1, %c0_i32 : i32, i32, i32
  }
  func.func @transform_4(%arg0: i32, %arg1: i32, %arg2: i32) -> (i32, i32, i32) {
    %c0_i32 = arith.constant 0 : i32
    %c0_i32_0 = arith.constant 0 : i32
    return %arg0, %arg2, %c0_i32 : i32, i32, i32
  }
  func.func @transform_5(%arg0: i32, %arg1: i32, %arg2: i32) -> (i32, i32) {
    %c0_i32 = arith.constant 0 : i32
    %c0_i32_0 = arith.constant 0 : i32
    %c0_i32_1 = arith.constant 0 : i32
    return %c0_i32, %c0_i32_0 : i32, i32
  }
  func.func @transform_6(%arg0: i32, %arg1: i32, %arg2: i32) -> (i32, i32) {
    %c0_i32 = arith.constant 0 : i32
    %c0_i32_0 = arith.constant 0 : i32
    %c0_i32_1 = arith.constant 0 : i32
    return %c0_i32, %c0_i32_0 : i32, i32
  }
  func.func @transform_7(%arg0: i32, %arg1: i32, %arg2: i32) -> (i32, i32) {
    %c0_i32 = arith.constant 0 : i32
    %c0_i32_0 = arith.constant 0 : i32
    %c0_i32_1 = arith.constant 0 : i32
    return %c0_i32, %c0_i32_0 : i32, i32
  }
  func.func @transform_8(%arg0: i32, %arg1: i32, %arg2: i32) -> (i32, i32) {
    %c0_i32 = arith.constant 0 : i32
    %c0_i32_0 = arith.constant 0 : i32
    %c0_i32_1 = arith.constant 0 : i32
    return %c0_i32, %c0_i32_0 : i32, i32
  }
  func.func @transform_9(%arg0: i32, %arg1: i32, %arg2: i32) -> (i32, i32) {
    %c0_i32 = arith.constant 0 : i32
    %c0_i32_0 = arith.constant 0 : i32
    %c0_i32_1 = arith.constant 0 : i32
    return %c0_i32, %c0_i32_0 : i32, i32
  }
  func.func @transform_10(%arg0: i32, %arg1: i32, %arg2: i32) -> (i32, i32) {
    %c0_i32 = arith.constant 0 : i32
    %c0_i32_0 = arith.constant 0 : i32
    %c0_i32_1 = arith.constant 0 : i32
    return %c0_i32, %c0_i32_0 : i32, i32
  }
  func.func @transform_11(%arg0: i32, %arg1: i32, %arg2: i32) -> (i32, i32) {
    %c0_i32 = arith.constant 0 : i32
    %c0_i32_0 = arith.constant 0 : i32
    %c0_i32_1 = arith.constant 0 : i32
    return %c0_i32, %c0_i32_0 : i32, i32
  }
  func.func @transform_12(%arg0: i32, %arg1: i32, %arg2: i32) -> (i32, i32) {
    %c0_i32 = arith.constant 0 : i32
    %c0_i32_0 = arith.constant 0 : i32
    %c0_i32_1 = arith.constant 0 : i32
    return %c0_i32, %c0_i32_0 : i32, i32
  }
  func.func @transform_13(%arg0: i32, %arg1: i32, %arg2: i32) -> (i32, i32) {
    %c0_i32 = arith.constant 0 : i32
    %c0_i32_0 = arith.constant 0 : i32
    %c0_i32_1 = arith.constant 0 : i32
    return %c0_i32, %c0_i32_0 : i32, i32
  }
  func.func @transform_14(%arg0: i32, %arg1: i32, %arg2: i32) -> (i32, i32) {
    %c0_i32 = arith.constant 0 : i32
    %c0_i32_0 = arith.constant 0 : i32
    %c0_i32_1 = arith.constant 0 : i32
    return %c0_i32, %c0_i32_0 : i32, i32
  }
  func.func @transform_15(%arg0: i32, %arg1: i32, %arg2: i32) -> (i32, i32) {
    %c0_i32 = arith.constant 0 : i32
    %c0_i32_0 = arith.constant 0 : i32
    %c0_i32_1 = arith.constant 0 : i32
    return %c0_i32, %c0_i32_0 : i32, i32
  }
  func.func @transform_16(%arg0: i32, %arg1: i32, %arg2: i32) -> (i32, i32) {
    %c0_i32 = arith.constant 0 : i32
    %c0_i32_0 = arith.constant 0 : i32
    %c0_i32_1 = arith.constant 0 : i32
    return %c0_i32, %c0_i32_0 : i32, i32
  }
  func.func @transform_17(%arg0: i32, %arg1: i32, %arg2: i32) -> (i32, i32, i32) {
    %c0_i32 = arith.constant 0 : i32
    %c0_i32_0 = arith.constant 0 : i32
    return %arg0, %arg1, %c0_i32 : i32, i32, i32
  }
  func.func @transform_18(%arg0: i32, %arg1: i32, %arg2: i32) -> (i32, i32, i32) {
    %c0_i32 = arith.constant 0 : i32
    %c0_i32_0 = arith.constant 0 : i32
    return %arg0, %arg1, %c0_i32 : i32, i32, i32
  }
}

module attributes {stable_mosaic.version = 11 : i64} {
  func.func @_egnn_kernel(%arg0: i32, %arg1: i32, %arg2: i32, %arg3: memref<1x8x41xf32, #tpu.memory_space<vmem>>, %arg4: memref<1x8x166xf32, #tpu.memory_space<vmem>>, %arg5: memref<1x8x166xf32, #tpu.memory_space<vmem>>, %arg6: memref<1x8x3xf32, #tpu.memory_space<vmem>>, %arg7: memref<1x8x8xf32, #tpu.memory_space<vmem>>, %arg8: memref<1x166xf32, #tpu.memory_space<vmem>>, %arg9: memref<166x32xf32, #tpu.memory_space<vmem>>, %arg10: memref<1x32xf32, #tpu.memory_space<vmem>>, %arg11: memref<32x128xf32, #tpu.memory_space<vmem>>, %arg12: memref<1x128xf32, #tpu.memory_space<vmem>>, %arg13: memref<1x128xf32, #tpu.memory_space<vmem>>, %arg14: memref<1x1xf32, #tpu.memory_space<vmem>>, %arg15: memref<41x82xf32, #tpu.memory_space<vmem>>, %arg16: memref<32x82xf32, #tpu.memory_space<vmem>>, %arg17: memref<1x82xf32, #tpu.memory_space<vmem>>, %arg18: memref<82x41xf32, #tpu.memory_space<vmem>>, %arg19: memref<1x41xf32, #tpu.memory_space<vmem>>, %arg20: memref<1x8x41xf32, #tpu.memory_space<vmem>>, %arg21: memref<1x8x3xf32, #tpu.memory_space<vmem>>, %arg22: memref<8x32xf32, #tpu.memory_space<vmem>>, %arg23: memref<8x3xf32, #tpu.memory_space<vmem>>) attributes {dimension_semantics = [#tpu.dimension_semantics<parallel>, #tpu.dimension_semantics<parallel>, #tpu.dimension_semantics<arbitrary>], iteration_bounds = array<i64: 2, 2, 2>, scalar_prefetch = 0 : i64, scratch_operands = 2 : i64, tpu.core_type = #tpu.core_type<tc>, window_params = [{transform_indices = @transform_0, window_bounds = array<i64: 1, 8, 41>}, {transform_indices = @transform_1, window_bounds = array<i64: 1, 8, 166>}, {transform_indices = @transform_2, window_bounds = array<i64: 1, 8, 166>}, {transform_indices = @transform_3, window_bounds = array<i64: 1, 8, 3>}, {transform_indices = @transform_4, window_bounds = array<i64: 1, 8, 8>}, {pipeline_mode = #tpu.pipeline_mode<synchronous>, transform_indices = @transform_5, window_bounds = array<i64: 1, 166>}, {pipeline_mode = #tpu.pipeline_mode<synchronous>, transform_indices = @transform_6, window_bounds = array<i64: 166, 32>}, {pipeline_mode = #tpu.pipeline_mode<synchronous>, transform_indices = @transform_7, window_bounds = array<i64: 1, 32>}, {pipeline_mode = #tpu.pipeline_mode<synchronous>, transform_indices = @transform_8, window_bounds = array<i64: 32, 128>}, {pipeline_mode = #tpu.pipeline_mode<synchronous>, transform_indices = @transform_9, window_bounds = array<i64: 1, 128>}, {pipeline_mode = #tpu.pipeline_mode<synchronous>, transform_indices = @transform_10, window_bounds = array<i64: 1, 128>}, {pipeline_mode = #tpu.pipeline_mode<synchronous>, transform_indices = @transform_11, window_bounds = array<i64: 1, 1>}, {pipeline_mode = #tpu.pipeline_mode<synchronous>, transform_indices = @transform_12, window_bounds = array<i64: 41, 82>}, {pipeline_mode = #tpu.pipeline_mode<synchronous>, transform_indices = @transform_13, window_bounds = array<i64: 32, 82>}, {pipeline_mode = #tpu.pipeline_mode<synchronous>, transform_indices = @transform_14, window_bounds = array<i64: 1, 82>}, {pipeline_mode = #tpu.pipeline_mode<synchronous>, transform_indices = @transform_15, window_bounds = array<i64: 82, 41>}, {pipeline_mode = #tpu.pipeline_mode<synchronous>, transform_indices = @transform_16, window_bounds = array<i64: 1, 41>}, {transform_indices = @transform_17, window_bounds = array<i64: 1, 8, 41>}, {transform_indices = @transform_18, window_bounds = array<i64: 1, 8, 3>}]} {
    %c0_i32 = arith.constant 0 : i32
    %0 = arith.cmpi eq, %arg2, %c0_i32 : i32
    %1 = arith.extui %0 : i1 to i32
    %c0_i32_0 = arith.constant 0 : i32
    %2 = arith.cmpi ne, %1, %c0_i32_0 : i32
    scf.if %2 {
      %cst_51 = arith.constant 0.000000e+00 : f32
      %113 = vector.broadcast %cst_51 : f32 to vector<8x32xf32>
      %c0_52 = arith.constant 0 : index
      %c0_53 = arith.constant 0 : index
      %114 = vector.load %arg22[%c0_52, %c0_53] : memref<8x32xf32, #tpu.memory_space<vmem>>, vector<8x32xf32>
      tpu.vector_store %arg22[%c0_52, %c0_53], %113 {strides = array<i32>} : memref<8x32xf32, #tpu.memory_space<vmem>>, vector<8x32xf32>,
      %cst_54 = arith.constant 0.000000e+00 : f32
      %115 = vector.broadcast %cst_54 : f32 to vector<8x3xf32>
      %c0_55 = arith.constant 0 : index
      %c0_56 = arith.constant 0 : index
      %116 = vector.load %arg23[%c0_55, %c0_56] : memref<8x3xf32, #tpu.memory_space<vmem>>, vector<8x3xf32>
      tpu.vector_store %arg23[%c0_55, %c0_56], %115 {strides = array<i32>} : memref<8x3xf32, #tpu.memory_space<vmem>>, vector<8x3xf32>,
    } else {
    }
    %c0 = arith.constant 0 : index
    %c0_1 = arith.constant 0 : index
    %c0_2 = arith.constant 0 : index
    %3 = vector.load %arg6[%c0, %c0_1, %c0_2] : memref<1x8x3xf32, #tpu.memory_space<vmem>>, vector<1x8x3xf32>
    %4 = vector.shape_cast %3 : vector<1x8x3xf32> to vector<8x3xf32>
    %c0_3 = arith.constant 0 : index
    %c0_4 = arith.constant 0 : index
    %c0_5 = arith.constant 0 : index
    %5 = vector.load %arg7[%c0_3, %c0_4, %c0_5] : memref<1x8x8xf32, #tpu.memory_space<vmem>>, vector<1x8x8xf32>
    %6 = vector.shape_cast %5 : vector<1x8x8xf32> to vector<8x8xf32>
    %7 = tpu.transpose %6, [1, 0] : vector<8x8xf32> -> vector<8x8xf32>
    %8 = vector.extract_strided_slice %4 {offsets = [0, 0], sizes = [8, 1], strides = [1, 1]} : vector<8x3xf32> to vector<8x1xf32>
    %9 = vector.extract_strided_slice %7 {offsets = [0, 0], sizes = [1, 8], strides = [1, 1]} : vector<8x8xf32> to vector<1x8xf32>
    %10 = vector.broadcast %8 : vector<8x1xf32> to vector<8x8xf32>
    %11 = vector.broadcast %9 : vector<1x8xf32> to vector<8x8xf32>
    %12 = arith.subf %10, %11 : vector<8x8xf32>
    %13 = vector.extract_strided_slice %4 {offsets = [0, 1], sizes = [8, 1], strides = [1, 1]} : vector<8x3xf32> to vector<8x1xf32>
    %14 = vector.extract_strided_slice %7 {offsets = [1, 0], sizes = [1, 8], strides = [1, 1]} : vector<8x8xf32> to vector<1x8xf32>
    %15 = vector.broadcast %13 : vector<8x1xf32> to vector<8x8xf32>
    %16 = vector.broadcast %14 : vector<1x8xf32> to vector<8x8xf32>
    %17 = arith.subf %15, %16 : vector<8x8xf32>
    %18 = vector.extract_strided_slice %4 {offsets = [0, 2], sizes = [8, 1], strides = [1, 1]} : vector<8x3xf32> to vector<8x1xf32>
    %19 = vector.extract_strided_slice %7 {offsets = [2, 0], sizes = [1, 8], strides = [1, 1]} : vector<8x8xf32> to vector<1x8xf32>
    %20 = vector.broadcast %18 : vector<8x1xf32> to vector<8x8xf32>
    %21 = vector.broadcast %19 : vector<1x8xf32> to vector<8x8xf32>
    %22 = arith.subf %20, %21 : vector<8x8xf32>
    %23 = arith.mulf %12, %12 : vector<8x8xf32>
    %24 = arith.mulf %17, %17 : vector<8x8xf32>
    %25 = arith.addf %23, %24 : vector<8x8xf32>
    %26 = arith.mulf %22, %22 : vector<8x8xf32>
    %27 = arith.addf %25, %26 : vector<8x8xf32>
    %28 = vector.shape_cast %27 : vector<8x8xf32> to vector<8x8x1xf32>
    %c0_6 = arith.constant 0 : index
    %c0_7 = arith.constant 0 : index
    %c0_8 = arith.constant 0 : index
    %29 = vector.load %arg4[%c0_6, %c0_7, %c0_8] : memref<1x8x166xf32, #tpu.memory_space<vmem>>, vector<1x8x166xf32>
    %30 = vector.shape_cast %29 : vector<1x8x166xf32> to vector<8x166xf32>
    %31 = vector.shape_cast %30 : vector<8x166xf32> to vector<8x1x166xf32>
    %c0_9 = arith.constant 0 : index
    %c0_10 = arith.constant 0 : index
    %c0_11 = arith.constant 0 : index
    %32 = vector.load %arg5[%c0_9, %c0_10, %c0_11] : memref<1x8x166xf32, #tpu.memory_space<vmem>>, vector<1x8x166xf32>
    %33 = vector.shape_cast %32 : vector<1x8x166xf32> to vector<8x166xf32>
    %34 = vector.shape_cast %33 : vector<8x166xf32> to vector<1x8x166xf32>
    %35 = vector.broadcast %31 : vector<8x1x166xf32> to vector<8x8x166xf32>
    %36 = vector.broadcast %34 : vector<1x8x166xf32> to vector<8x8x166xf32>
    %37 = arith.addf %35, %36 : vector<8x8x166xf32>
    %c0_12 = arith.constant 0 : index
    %c0_13 = arith.constant 0 : index
    %38 = vector.load %arg8[%c0_12, %c0_13] : memref<1x166xf32, #tpu.memory_space<vmem>>, vector<1x166xf32>
    %39 = vector.shape_cast %38 : vector<1x166xf32> to vector<1x1x166xf32>
    %40 = vector.broadcast %28 : vector<8x8x1xf32> to vector<8x8x166xf32>
    %41 = vector.broadcast %39 : vector<1x1x166xf32> to vector<8x8x166xf32>
    %42 = arith.mulf %40, %41 : vector<8x8x166xf32>
    %43 = arith.addf %37, %42 : vector<8x8x166xf32>
    %cst = arith.constant 5.000000e-01 : f32
    %44 = vector.broadcast %cst : f32 to vector<8x8x166xf32>
    %45 = arith.mulf %43, %44 : vector<8x8x166xf32>
    %46 = math.tanh %45 : vector<8x8x166xf32>
    %cst_14 = arith.constant 5.000000e-01 : f32
    %47 = vector.broadcast %cst_14 : f32 to vector<8x8x166xf32>
    %48 = arith.mulf %46, %47 : vector<8x8x166xf32>
    %cst_15 = arith.constant 5.000000e-01 : f32
    %49 = vector.broadcast %cst_15 : f32 to vector<8x8x166xf32>
    %50 = arith.addf %48, %49 : vector<8x8x166xf32>
    %51 = arith.mulf %43, %50 : vector<8x8x166xf32>
    %52 = vector.shape_cast %51 : vector<8x8x166xf32> to vector<64x166xf32>
    %c0_16 = arith.constant 0 : index
    %c0_17 = arith.constant 0 : index
    %53 = vector.load %arg9[%c0_16, %c0_17] : memref<166x32xf32, #tpu.memory_space<vmem>>, vector<166x32xf32>
    %cst_18 = arith.constant dense<0.000000e+00> : vector<64x32xf32>
    %54 = tpu.matmul %52, %53, %cst_18 {dimension_numbers = #tpu.dot_dimension_numbers<[1], [0], [0], [1], [0, 0, 1, 1], [], []>} : vector<64x166xf32>, vector<166x32xf32>, vector<64x32xf32> -> vector<64x32xf32>
    %c0_19 = arith.constant 0 : index
    %c0_20 = arith.constant 0 : index
    %55 = vector.load %arg10[%c0_19, %c0_20] : memref<1x32xf32, #tpu.memory_space<vmem>>, vector<1x32xf32>
    %56 = vector.broadcast %55 : vector<1x32xf32> to vector<64x32xf32>
    %57 = arith.addf %54, %56 : vector<64x32xf32>
    %cst_21 = arith.constant 5.000000e-01 : f32
    %58 = vector.broadcast %cst_21 : f32 to vector<64x32xf32>
    %59 = arith.mulf %57, %58 : vector<64x32xf32>
    %60 = math.tanh %59 : vector<64x32xf32>
    %cst_22 = arith.constant 5.000000e-01 : f32
    %61 = vector.broadcast %cst_22 : f32 to vector<64x32xf32>
    %62 = arith.mulf %60, %61 : vector<64x32xf32>
    %cst_23 = arith.constant 5.000000e-01 : f32
    %63 = vector.broadcast %cst_23 : f32 to vector<64x32xf32>
    %64 = arith.addf %62, %63 : vector<64x32xf32>
    %65 = arith.mulf %57, %64 : vector<64x32xf32>
    %c0_24 = arith.constant 0 : index
    %c0_25 = arith.constant 0 : index
    %66 = vector.load %arg22[%c0_24, %c0_25] : memref<8x32xf32, #tpu.memory_space<vmem>>, vector<8x32xf32>
    %67 = vector.shape_cast %65 : vector<64x32xf32> to vector<8x8x32xf32>
    %cst_26 = arith.constant dense<0.000000e+00> : vector<8x32xf32>
    %68 = vector.multi_reduction <add>, %67, %cst_26 [1] : vector<8x8x32xf32> to vector<8x32xf32>
    %69 = arith.addf %66, %68 : vector<8x32xf32>
    %c0_27 = arith.constant 0 : index
    %c0_28 = arith.constant 0 : index
    %70 = vector.load %arg22[%c0_27, %c0_28] : memref<8x32xf32, #tpu.memory_space<vmem>>, vector<8x32xf32>
    tpu.vector_store %arg22[%c0_27, %c0_28], %69 {strides = array<i32>} : memref<8x32xf32, #tpu.memory_space<vmem>>, vector<8x32xf32>,
    %c0_29 = arith.constant 0 : index
    %c0_30 = arith.constant 0 : index
    %71 = vector.load %arg11[%c0_29, %c0_30] : memref<32x128xf32, #tpu.memory_space<vmem>>, vector<32x128xf32>
    %cst_31 = arith.constant dense<0.000000e+00> : vector<64x128xf32>
    %72 = tpu.matmul %65, %71, %cst_31 {dimension_numbers = #tpu.dot_dimension_numbers<[1], [0], [0], [1], [0, 0, 1, 1], [], []>} : vector<64x32xf32>, vector<32x128xf32>, vector<64x128xf32> -> vector<64x128xf32>
    %c0_32 = arith.constant 0 : index
    %c0_33 = arith.constant 0 : index
    %73 = vector.load %arg12[%c0_32, %c0_33] : memref<1x128xf32, #tpu.memory_space<vmem>>, vector<1x128xf32>
    %74 = vector.broadcast %73 : vector<1x128xf32> to vector<64x128xf32>
    %75 = arith.addf %72, %74 : vector<64x128xf32>
    %cst_34 = arith.constant 5.000000e-01 : f32
    %76 = vector.broadcast %cst_34 : f32 to vector<64x128xf32>
    %77 = arith.mulf %75, %76 : vector<64x128xf32>
    %78 = math.tanh %77 : vector<64x128xf32>
    %cst_35 = arith.constant 5.000000e-01 : f32
    %79 = vector.broadcast %cst_35 : f32 to vector<64x128xf32>
    %80 = arith.mulf %78, %79 : vector<64x128xf32>
    %cst_36 = arith.constant 5.000000e-01 : f32
    %81 = vector.broadcast %cst_36 : f32 to vector<64x128xf32>
    %82 = arith.addf %80, %81 : vector<64x128xf32>
    %83 = arith.mulf %75, %82 : vector<64x128xf32>
    %84 = vector.shape_cast %83 : vector<64x128xf32> to vector<8x8x128xf32>
    %c0_37 = arith.constant 0 : index
    %c0_38 = arith.constant 0 : index
    %85 = vector.load %arg13[%c0_37, %c0_38] : memref<1x128xf32, #tpu.memory_space<vmem>>, vector<1x128xf32>
    %86 = vector.shape_cast %85 : vector<1x128xf32> to vector<1x1x128xf32>
    %87 = vector.broadcast %86 : vector<1x1x128xf32> to vector<8x8x128xf32>
    %88 = arith.mulf %84, %87 : vector<8x8x128xf32>
    %cst_39 = arith.constant dense<0.000000e+00> : vector<8x8xf32>
    %89 = vector.multi_reduction <add>, %88, %cst_39 [2] : vector<8x8x128xf32> to vector<8x8xf32>
    %c0_40 = arith.constant 0 : index
    %c0_41 = arith.constant 0 : index
    %90 = vector.load %arg14[%c0_40, %c0_41] : memref<1x1xf32, #tpu.memory_space<vmem>>, vector<1x1xf32>
    %91 = vector.broadcast %90 : vector<1x1xf32> to vector<8x8xf32>
    %92 = arith.addf %89, %91 : vector<8x8xf32>
    %cst_42 = arith.constant 1.000000e-16 : f32
    %93 = vector.broadcast %cst_42 : f32 to vector<8x8xf32>
    %94 = arith.maximumf %27, %93 : vector<8x8xf32>
    %95 = math.rsqrt %94 : vector<8x8xf32>
    %96 = arith.mulf %92, %95 : vector<8x8xf32>
    %c0_43 = arith.constant 0 : index
    %c0_44 = arith.constant 0 : index
    %97 = vector.load %arg23[%c0_43, %c0_44] : memref<8x3xf32, #tpu.memory_space<vmem>>, vector<8x3xf32>
    %98 = arith.mulf %96, %12 : vector<8x8xf32>
    %cst_45 = arith.constant dense<0.000000e+00> : vector<8xf32>
    %99 = vector.multi_reduction <add>, %98, %cst_45 [1] : vector<8x8xf32> to vector<8xf32>
    %100 = vector.shape_cast %99 : vector<8xf32> to vector<8x1xf32>
    %101 = arith.mulf %96, %17 : vector<8x8xf32>
    %cst_46 = arith.constant dense<0.000000e+00> : vector<8xf32>
    %102 = vector.multi_reduction <add>, %101, %cst_46 [1] : vector<8x8xf32> to vector<8xf32>
    %103 = vector.shape_cast %102 : vector<8xf32> to vector<8x1xf32>
    %104 = arith.mulf %96, %22 : vector<8x8xf32>
    %cst_47 = arith.constant dense<0.000000e+00> : vector<8xf32>
    %105 = vector.multi_reduction <add>, %104, %cst_47 [1] : vector<8x8xf32> to vector<8xf32>
    %106 = vector.shape_cast %105 : vector<8xf32> to vector<8x1xf32>
    %107 = tpu.concatenate %100, %103, %106 in 1 : vector<8x1xf32>, vector<8x1xf32>, vector<8x1xf32> -> vector<8x3xf32>
    %108 = arith.addf %97, %107 : vector<8x3xf32>
    %c0_48 = arith.constant 0 : index
    %c0_49 = arith.constant 0 : index
    %109 = vector.load %arg23[%c0_48, %c0_49] : memref<8x3xf32, #tpu.memory_space<vmem>>, vector<8x3xf32>
    tpu.vector_store %arg23[%c0_48, %c0_49], %108 {strides = array<i32>} : memref<8x3xf32, #tpu.memory_space<vmem>>, vector<8x3xf32>,
    %c1_i32 = arith.constant 1 : i32
    %110 = arith.cmpi eq, %arg2, %c1_i32 : i32
    %111 = arith.extui %110 : i1 to i32
    %c0_i32_50 = arith.constant 0 : i32
    %112 = arith.cmpi ne, %111, %c0_i32_50 : i32
    scf.if %112 {
      %c0_51 = arith.constant 0 : index
      %c0_52 = arith.constant 0 : index
      %c0_53 = arith.constant 0 : index
      %113 = vector.load %arg3[%c0_51, %c0_52, %c0_53] : memref<1x8x41xf32, #tpu.memory_space<vmem>>, vector<1x8x41xf32>
      %114 = vector.shape_cast %113 : vector<1x8x41xf32> to vector<8x41xf32>
      %c0_54 = arith.constant 0 : index
      %c0_55 = arith.constant 0 : index
      %115 = vector.load %arg15[%c0_54, %c0_55] : memref<41x82xf32, #tpu.memory_space<vmem>>, vector<41x82xf32>
      %cst_56 = arith.constant dense<0.000000e+00> : vector<8x82xf32>
      %116 = tpu.matmul %114, %115, %cst_56 {dimension_numbers = #tpu.dot_dimension_numbers<[1], [0], [0], [1], [0, 0, 1, 1], [], []>} : vector<8x41xf32>, vector<41x82xf32>, vector<8x82xf32> -> vector<8x82xf32>
      %c0_57 = arith.constant 0 : index
      %c0_58 = arith.constant 0 : index
      %117 = vector.load %arg22[%c0_57, %c0_58] : memref<8x32xf32, #tpu.memory_space<vmem>>, vector<8x32xf32>
      %c0_59 = arith.constant 0 : index
      %c0_60 = arith.constant 0 : index
      %118 = vector.load %arg16[%c0_59, %c0_60] : memref<32x82xf32, #tpu.memory_space<vmem>>, vector<32x82xf32>
      %cst_61 = arith.constant dense<0.000000e+00> : vector<8x82xf32>
      %119 = tpu.matmul %117, %118, %cst_61 {dimension_numbers = #tpu.dot_dimension_numbers<[1], [0], [0], [1], [0, 0, 1, 1], [], []>} : vector<8x32xf32>, vector<32x82xf32>, vector<8x82xf32> -> vector<8x82xf32>
      %120 = arith.addf %116, %119 : vector<8x82xf32>
      %c0_62 = arith.constant 0 : index
      %c0_63 = arith.constant 0 : index
      %121 = vector.load %arg17[%c0_62, %c0_63] : memref<1x82xf32, #tpu.memory_space<vmem>>, vector<1x82xf32>
      %122 = vector.broadcast %121 : vector<1x82xf32> to vector<8x82xf32>
      %123 = arith.addf %120, %122 : vector<8x82xf32>
      %cst_64 = arith.constant 5.000000e-01 : f32
      %124 = vector.broadcast %cst_64 : f32 to vector<8x82xf32>
      %125 = arith.mulf %123, %124 : vector<8x82xf32>
      %126 = math.tanh %125 : vector<8x82xf32>
      %cst_65 = arith.constant 5.000000e-01 : f32
      %127 = vector.broadcast %cst_65 : f32 to vector<8x82xf32>
      %128 = arith.mulf %126, %127 : vector<8x82xf32>
      %cst_66 = arith.constant 5.000000e-01 : f32
      %129 = vector.broadcast %cst_66 : f32 to vector<8x82xf32>
      %130 = arith.addf %128, %129 : vector<8x82xf32>
      %131 = arith.mulf %123, %130 : vector<8x82xf32>
      %c0_67 = arith.constant 0 : index
      %c0_68 = arith.constant 0 : index
      %132 = vector.load %arg18[%c0_67, %c0_68] : memref<82x41xf32, #tpu.memory_space<vmem>>, vector<82x41xf32>
      %cst_69 = arith.constant dense<0.000000e+00> : vector<8x41xf32>
      %133 = tpu.matmul %131, %132, %cst_69 {dimension_numbers = #tpu.dot_dimension_numbers<[1], [0], [0], [1], [0, 0, 1, 1], [], []>} : vector<8x82xf32>, vector<82x41xf32>, vector<8x41xf32> -> vector<8x41xf32>
      %c0_70 = arith.constant 0 : index
      %c0_71 = arith.constant 0 : index
      %134 = vector.load %arg19[%c0_70, %c0_71] : memref<1x41xf32, #tpu.memory_space<vmem>>, vector<1x41xf32>
      %135 = vector.broadcast %134 : vector<1x41xf32> to vector<8x41xf32>
      %136 = arith.addf %133, %135 : vector<8x41xf32>
      %137 = arith.addf %136, %114 : vector<8x41xf32>
      %c0_72 = arith.constant 0 : index
      %c0_73 = arith.constant 0 : index
      %c0_74 = arith.constant 0 : index
      %138 = vector.load %arg20[%c0_72, %c0_73, %c0_74] : memref<1x8x41xf32, #tpu.memory_space<vmem>>, vector<1x8x41xf32>
      %139 = vector.shape_cast %138 : vector<1x8x41xf32> to vector<8x41xf32>
      %140 = vector.shape_cast %137 : vector<8x41xf32> to vector<1x8x41xf32>
      tpu.vector_store %arg20[%c0_72, %c0_73, %c0_74], %140 {strides = array<i32>} : memref<1x8x41xf32, #tpu.memory_space<vmem>>, vector<1x8x41xf32>,
      %c0_75 = arith.constant 0 : index
      %c0_76 = arith.constant 0 : index
      %141 = vector.load %arg23[%c0_75, %c0_76] : memref<8x3xf32, #tpu.memory_space<vmem>>, vector<8x3xf32>
      %142 = arith.addf %4, %141 : vector<8x3xf32>
      %c0_77 = arith.constant 0 : index
      %c0_78 = arith.constant 0 : index
      %c0_79 = arith.constant 0 : index
      %143 = vector.load %arg21[%c0_77, %c0_78, %c0_79] : memref<1x8x3xf32, #tpu.memory_space<vmem>>, vector<1x8x3xf32>
      %144 = vector.shape_cast %143 : vector<1x8x3xf32> to vector<8x3xf32>
      %145 = vector.shape_cast %142 : vector<8x3xf32> to vector<1x8x3xf32>
      tpu.vector_store %arg21[%c0_77, %c0_78, %c0_79], %145 {strides = array<i32>} : memref<1x8x3xf32, #tpu.memory_space<vmem>>, vector<1x8x3xf32>,
    } else {
    }
    return
  }
  func.func @transform_0(%arg0: i32, %arg1: i32, %arg2: i32) -> (i32, i32, i32) {
    %c0_i32 = arith.constant 0 : i32
    %c0_i32_0 = arith.constant 0 : i32
    return %arg0, %arg1, %c0_i32 : i32, i32, i32
  }
  func.func @transform_1(%arg0: i32, %arg1: i32, %arg2: i32) -> (i32, i32, i32) {
    %c0_i32 = arith.constant 0 : i32
    %c0_i32_0 = arith.constant 0 : i32
    return %arg0, %arg1, %c0_i32 : i32, i32, i32
  }
  func.func @transform_2(%arg0: i32, %arg1: i32, %arg2: i32) -> (i32, i32, i32) {
    %c0_i32 = arith.constant 0 : i32
    %c0_i32_0 = arith.constant 0 : i32
    return %arg0, %arg2, %c0_i32 : i32, i32, i32
  }
  func.func @transform_3(%arg0: i32, %arg1: i32, %arg2: i32) -> (i32, i32, i32) {
    %c0_i32 = arith.constant 0 : i32
    %c0_i32_0 = arith.constant 0 : i32
    return %arg0, %arg1, %c0_i32 : i32, i32, i32
  }
  func.func @transform_4(%arg0: i32, %arg1: i32, %arg2: i32) -> (i32, i32, i32) {
    %c0_i32 = arith.constant 0 : i32
    %c0_i32_0 = arith.constant 0 : i32
    return %arg0, %arg2, %c0_i32 : i32, i32, i32
  }
  func.func @transform_5(%arg0: i32, %arg1: i32, %arg2: i32) -> (i32, i32) {
    %c0_i32 = arith.constant 0 : i32
    %c0_i32_0 = arith.constant 0 : i32
    %c0_i32_1 = arith.constant 0 : i32
    return %c0_i32, %c0_i32_0 : i32, i32
  }
  func.func @transform_6(%arg0: i32, %arg1: i32, %arg2: i32) -> (i32, i32) {
    %c0_i32 = arith.constant 0 : i32
    %c0_i32_0 = arith.constant 0 : i32
    %c0_i32_1 = arith.constant 0 : i32
    return %c0_i32, %c0_i32_0 : i32, i32
  }
  func.func @transform_7(%arg0: i32, %arg1: i32, %arg2: i32) -> (i32, i32) {
    %c0_i32 = arith.constant 0 : i32
    %c0_i32_0 = arith.constant 0 : i32
    %c0_i32_1 = arith.constant 0 : i32
    return %c0_i32, %c0_i32_0 : i32, i32
  }
  func.func @transform_8(%arg0: i32, %arg1: i32, %arg2: i32) -> (i32, i32) {
    %c0_i32 = arith.constant 0 : i32
    %c0_i32_0 = arith.constant 0 : i32
    %c0_i32_1 = arith.constant 0 : i32
    return %c0_i32, %c0_i32_0 : i32, i32
  }
  func.func @transform_9(%arg0: i32, %arg1: i32, %arg2: i32) -> (i32, i32) {
    %c0_i32 = arith.constant 0 : i32
    %c0_i32_0 = arith.constant 0 : i32
    %c0_i32_1 = arith.constant 0 : i32
    return %c0_i32, %c0_i32_0 : i32, i32
  }
  func.func @transform_10(%arg0: i32, %arg1: i32, %arg2: i32) -> (i32, i32) {
    %c0_i32 = arith.constant 0 : i32
    %c0_i32_0 = arith.constant 0 : i32
    %c0_i32_1 = arith.constant 0 : i32
    return %c0_i32, %c0_i32_0 : i32, i32
  }
  func.func @transform_11(%arg0: i32, %arg1: i32, %arg2: i32) -> (i32, i32) {
    %c0_i32 = arith.constant 0 : i32
    %c0_i32_0 = arith.constant 0 : i32
    %c0_i32_1 = arith.constant 0 : i32
    return %c0_i32, %c0_i32_0 : i32, i32
  }
  func.func @transform_12(%arg0: i32, %arg1: i32, %arg2: i32) -> (i32, i32) {
    %c0_i32 = arith.constant 0 : i32
    %c0_i32_0 = arith.constant 0 : i32
    %c0_i32_1 = arith.constant 0 : i32
    return %c0_i32, %c0_i32_0 : i32, i32
  }
  func.func @transform_13(%arg0: i32, %arg1: i32, %arg2: i32) -> (i32, i32) {
    %c0_i32 = arith.constant 0 : i32
    %c0_i32_0 = arith.constant 0 : i32
    %c0_i32_1 = arith.constant 0 : i32
    return %c0_i32, %c0_i32_0 : i32, i32
  }
  func.func @transform_14(%arg0: i32, %arg1: i32, %arg2: i32) -> (i32, i32) {
    %c0_i32 = arith.constant 0 : i32
    %c0_i32_0 = arith.constant 0 : i32
    %c0_i32_1 = arith.constant 0 : i32
    return %c0_i32, %c0_i32_0 : i32, i32
  }
  func.func @transform_15(%arg0: i32, %arg1: i32, %arg2: i32) -> (i32, i32) {
    %c0_i32 = arith.constant 0 : i32
    %c0_i32_0 = arith.constant 0 : i32
    %c0_i32_1 = arith.constant 0 : i32
    return %c0_i32, %c0_i32_0 : i32, i32
  }
  func.func @transform_16(%arg0: i32, %arg1: i32, %arg2: i32) -> (i32, i32) {
    %c0_i32 = arith.constant 0 : i32
    %c0_i32_0 = arith.constant 0 : i32
    %c0_i32_1 = arith.constant 0 : i32
    return %c0_i32, %c0_i32_0 : i32, i32
  }
  func.func @transform_17(%arg0: i32, %arg1: i32, %arg2: i32) -> (i32, i32, i32) {
    %c0_i32 = arith.constant 0 : i32
    %c0_i32_0 = arith.constant 0 : i32
    return %arg0, %arg1, %c0_i32 : i32, i32, i32
  }
  func.func @transform_18(%arg0: i32, %arg1: i32, %arg2: i32) -> (i32, i32, i32) {
    %c0_i32 = arith.constant 0 : i32
    %c0_i32_0 = arith.constant 0 : i32
    return %arg0, %arg1, %c0_i32 : i32, i32, i32
  }
}

</mosaic_0001>

<llo_original>
// kernel: res_egnn_pallas.4
$region0: #{res_egnn_pallas.4}
  #allocation0 [shape = 'u32[]', space=smem, size = 0x4, offset = 0x4, fixed_abs, tag = 'smem constant byte address 0x4 - core index']
  #allocation1 [shape = 'u32[144,128]{1,0:T(1,128)}', space=vmem, size = 0x12000, scoped, tag = 'internal scratch']
  #allocation2 [shape = 'f32[8,32]{1,0:T(8,128)}', space=vmem, size = 0x1000, scoped, tag = 'scratch operand']
  #allocation3 [shape = 'f32[8,3]{1,0:T(8,128)}', space=vmem, size = 0x1000, scoped, tag = 'scratch operand']
  #allocation4 [shape = 'f32[1,1]{1,0:T(1,128)S(1)}', space=vmem, size = 0x200, scoped, tag = 'scoped memory for res_egnn_pallas.4']
  %s0 = inlined_call_operand.vmem [shape: f32[2,16,41], index: 0, kind: input, shape index: {}]
  %s1 = inlined_call_operand.vmem [shape: f32[2,16,166], index: 1, kind: input, shape index: {}]
  %s2 = inlined_call_operand.vmem [shape: f32[2,16,166], index: 2, kind: input, shape index: {}]
  %s3 = inlined_call_operand.vmem [shape: f32[2,16,3], index: 3, kind: input, shape index: {}]
  %s4 = inlined_call_operand.vmem [shape: f32[2,16,8], index: 4, kind: input, shape index: {}]
  %s5 = inlined_call_operand.vmem [shape: f32[1,166], index: 5, kind: input, shape index: {}]
  %s6 = inlined_call_operand.vmem [shape: f32[166,32], index: 6, kind: input, shape index: {}]
  %s7 = inlined_call_operand.vmem [shape: f32[1,32], index: 7, kind: input, shape index: {}]
  %s8 = inlined_call_operand.vmem [shape: f32[32,128], index: 8, kind: input, shape index: {}]
  %s9 = inlined_call_operand.vmem [shape: f32[1,128], index: 9, kind: input, shape index: {}]
  %s10 = inlined_call_operand.vmem [shape: f32[1,128], index: 10, kind: input, shape index: {}]
  %s11 = inlined_call_operand.<no memory space> [shape: f32[1,1], index: 11, kind: input, shape index: {}]
  %s12 = inlined_call_operand.vmem [shape: f32[41,82], index: 12, kind: input, shape index: {}]
  %s13 = inlined_call_operand.vmem [shape: f32[32,82], index: 13, kind: input, shape index: {}]
  %s14 = inlined_call_operand.vmem [shape: f32[1,82], index: 14, kind: input, shape index: {}]
  %s15 = inlined_call_operand.vmem [shape: f32[82,41], index: 15, kind: input, shape index: {}]
  %s16 = inlined_call_operand.vmem [shape: f32[1,41], index: 16, kind: input, shape index: {}]
  %s17 = inlined_call_operand.vmem [shape: f32[2,16,41], index: 17, kind: output, shape index: {0}]
  %s18 = inlined_call_operand.vmem [shape: f32[2,16,3], index: 18, kind: output, shape index: {1}]
  %19 = xla_tuple %s17, %s18
  %s20 = sld [smem:[#allocation0]]
  $region117: #{res_egnn_pallas.4} parent=0
    _
  %s22 = ssub.s32 1, %s20
  %s23 = scalar_select 0, %s22, %s20
  %v24 = vstv %s11
  %25 = vst [vmem:[#allocation4] sm:$0x1] %v24
  loop: start=0, step=1, limit=10
  $region2: #{res_egnn_pallas.4} parent=0 // loop_pre_header
    _
  $region3: #{res_egnn_pallas.4} parent=0 // loop_header
    %s27 = sphi 0, %s31
    %p28 = scmp.ge.s32.totalorder %s27, 10
    %s34 = sphi 0, %s53
    %s35 = sphi 0, %s49
    %s36 = sphi 0, %s45
    %s37 = sphi 0, %s34
    %s38 = sphi 0, %s35
    %s39 = sphi 0, %s36
    %s40 = sphi 0, %s37
    %s41 = sphi 0, %s38
    %s42 = sphi 0, %s39
    %s58 = sphi 0, %s60
    %s61 = sphi 0, %s58
    %s62 = sphi 0, %s61
    %s78 = sphi 0, %s62
    %s86 = sphi 0, %s88
    %s89 = sphi 0, %s86
    %s90 = sphi 0, %s89
    %s106 = sphi 0, %s90
    %s114 = sphi 0, %s116
    %s117 = sphi 0, %s114
    %s118 = sphi 0, %s117
    %s134 = sphi 0, %s118
    %s142 = sphi 0, %s144
    %s145 = sphi 0, %s142
    %s146 = sphi 0, %s145
    %s162 = sphi 0, %s146
    %s170 = sphi 0, %s172
    %s173 = sphi 0, %s170
    %s174 = sphi 0, %s173
    %s190 = sphi 0, %s174
    %s194 = sphi 0, %s194
    %s196 = sphi 0, %s194
    %s197 = sphi 0, %s196
    %s211 = sphi 0, %s197
    %s215 = sphi 0, %s215
    %s217 = sphi 0, %s215
    %s218 = sphi 0, %s217
    %s232 = sphi 0, %s218
    %s236 = sphi 0, %s236
    %s238 = sphi 0, %s236
    %s239 = sphi 0, %s238
    %s253 = sphi 0, %s239
    %s257 = sphi 0, %s257
    %s259 = sphi 0, %s257
    %s260 = sphi 0, %s259
    %s274 = sphi 0, %s260
    %s278 = sphi 0, %s278
    %s280 = sphi 0, %s278
    %s281 = sphi 0, %s280
    %s295 = sphi 0, %s281
    %s299 = sphi 0, %s299
    %s301 = sphi 0, %s299
    %s302 = sphi 0, %s301
    %s316 = sphi 0, %s302
    %s320 = sphi 0, %s320
    %s322 = sphi 0, %s320
    %s323 = sphi 0, %s322
    %s337 = sphi 0, %s323
    %s341 = sphi 0, %s341
    %s343 = sphi 0, %s341
    %s344 = sphi 0, %s343
    %s358 = sphi 0, %s344
    %s362 = sphi 0, %s362
    %s364 = sphi 0, %s362
    %s365 = sphi 0, %s364
    %s379 = sphi 0, %s365
    %s383 = sphi 0, %s383
    %s385 = sphi 0, %s383
    %s386 = sphi 0, %s385
    %s400 = sphi 0, %s386
    %s404 = sphi 0, %s404
    %s406 = sphi 0, %s404
    %s407 = sphi 0, %s406
    %s421 = sphi 0, %s407
    %s425 = sphi 0, %s425
    %s427 = sphi 0, %s425
    %s428 = sphi 0, %s427
    %s442 = sphi 0, %s428
    %s450 = sphi 0, %s452
    %s453 = sphi 0, %s450
    %s454 = sphi 0, %s453
    %s470 = sphi 0, %s454
    %s478 = sphi 0, %s480
    %s481 = sphi 0, %s478
    %s482 = sphi 0, %s481
    %s498 = sphi 0, %s482
  $region4: #{res_egnn_pallas.4} parent=0 // loop_header_branch
    %30 = sbr.rel (%p28) target = $region8
  $region5: #{res_egnn_pallas.4} parent=0 // loop_body
    %s32 = ssub.s32 %s27, 1
    %s33 = ssub.s32 %s27, 2
    %s43 = sadd.s32 1, %s36
    %p44 = scmp.ge.s32.totalorder %s43, 2
    %s45 = scalar_select %p44, 0, %s43
    %s46 = sadd.s32 1, %s35
    %s47 = scalar_select %p44, %s46, %s35
    %p48 = scmp.ge.s32.totalorder %s47, 2
    %s49 = scalar_select %p48, 0, %s47
    %s50 = sadd.s32 1, %s34
    %s51 = scalar_select %p48, %s50, %s34
    %p52 = scmp.ge.s32.totalorder %s51, 2
    %s53 = scalar_select %p52, 0, %s51
    %s54 = ssub.s32 %s34, %s53
    %s55 = ssub.s32 %s35, %s49
    %s56 = sor.u32 %s54, %s55
    %p57 = scmp.eq.s32.totalorder %s56, 0
    %s59 = sadd.s32 %s58, 1
    %s60 = scalar_select %p57, %s58, %s59
    %p63 = pneg %p57
    %p64 = scmp.eq.s32.totalorder %s27, 7
    %p65 = por %p63, %p64
    %p66 = scmp.ne.s32.totalorder %s58, %s61
    %p67 = scmp.eq.s32.totalorder %s27, 0
    %p68 = por %p66, %p67
    %p69 = scmp.ne.s32.totalorder %s58, %s61
    %p70 = scmp.eq.s32.totalorder %s32, 7
    %p71 = por %p69, %p70
    %p72 = scmp.ne.s32.totalorder %s61, %s62
    %p73 = scmp.eq.s32.totalorder %s32, 0
    %p74 = por %p72, %p73
    %p75 = scmp.ne.s32.totalorder %s61, %s62
    %p76 = scmp.eq.s32.totalorder %s33, 7
    %p77 = por %p75, %p76
    %p79 = scmp.ne.s32.totalorder %s62, %s78
    %p80 = scmp.eq.s32.totalorder %s33, 0
    %p81 = por %p79, %p80
    %s82 = ssub.s32 %s34, %s53
    %s83 = ssub.s32 %s35, %s49
    %s84 = sor.u32 %s82, %s83
    %p85 = scmp.eq.s32.totalorder %s84, 0
    %s87 = sadd.s32 %s86, 1
    %s88 = scalar_select %p85, %s86, %s87
    %p91 = pneg %p85
    %p92 = scmp.eq.s32.totalorder %s27, 7
    %p93 = por %p91, %p92
    %p94 = scmp.ne.s32.totalorder %s86, %s89
    %p95 = scmp.eq.s32.totalorder %s27, 0
    %p96 = por %p94, %p95
    %p97 = scmp.ne.s32.totalorder %s86, %s89
    %p98 = scmp.eq.s32.totalorder %s32, 7
    %p99 = por %p97, %p98
    %p100 = scmp.ne.s32.totalorder %s89, %s90
    %p101 = scmp.eq.s32.totalorder %s32, 0
    %p102 = por %p100, %p101
    %p103 = scmp.ne.s32.totalorder %s89, %s90
    %p104 = scmp.eq.s32.totalorder %s33, 7
    %p105 = por %p103, %p104
    %p107 = scmp.ne.s32.totalorder %s90, %s106
    %p108 = scmp.eq.s32.totalorder %s33, 0
    %p109 = por %p107, %p108
    %s110 = ssub.s32 %s34, %s53
    %s111 = ssub.s32 %s36, %s45
    %s112 = sor.u32 %s110, %s111
    %p113 = scmp.eq.s32.totalorder %s112, 0
    %s115 = sadd.s32 %s114, 1
    %s116 = scalar_select %p113, %s114, %s115
    %p119 = pneg %p113
    %p120 = scmp.eq.s32.totalorder %s27, 7
    %p121 = por %p119, %p120
    %p122 = scmp.ne.s32.totalorder %s114, %s117
    %p123 = scmp.eq.s32.totalorder %s27, 0
    %p124 = por %p122, %p123
    %p125 = scmp.ne.s32.totalorder %s114, %s117
    %p126 = scmp.eq.s32.totalorder %s32, 7
    %p127 = por %p125, %p126
    %p128 = scmp.ne.s32.totalorder %s117, %s118
    %p129 = scmp.eq.s32.totalorder %s32, 0
    %p130 = por %p128, %p129
    %p131 = scmp.ne.s32.totalorder %s117, %s118
    %p132 = scmp.eq.s32.totalorder %s33, 7
    %p133 = por %p131, %p132
    %p135 = scmp.ne.s32.totalorder %s118, %s134
    %p136 = scmp.eq.s32.totalorder %s33, 0
    %p137 = por %p135, %p136
    %s138 = ssub.s32 %s34, %s53
    %s139 = ssub.s32 %s35, %s49
    %s140 = sor.u32 %s138, %s139
    %p141 = scmp.eq.s32.totalorder %s140, 0
    %s143 = sadd.s32 %s142, 1
    %s144 = scalar_select %p141, %s142, %s143
    %p147 = pneg %p141
    %p148 = scmp.eq.s32.totalorder %s27, 7
    %p149 = por %p147, %p148
    %p150 = scmp.ne.s32.totalorder %s142, %s145
    %p151 = scmp.eq.s32.totalorder %s27, 0
    %p152 = por %p150, %p151
    %p153 = scmp.ne.s32.totalorder %s142, %s145
    %p154 = scmp.eq.s32.totalorder %s32, 7
    %p155 = por %p153, %p154
    %p156 = scmp.ne.s32.totalorder %s145, %s146
    %p157 = scmp.eq.s32.totalorder %s32, 0
    %p158 = por %p156, %p157
    %p159 = scmp.ne.s32.totalorder %s145, %s146
    %p160 = scmp.eq.s32.totalorder %s33, 7
    %p161 = por %p159, %p160
    %p163 = scmp.ne.s32.totalorder %s146, %s162
    %p164 = scmp.eq.s32.totalorder %s33, 0
    %p165 = por %p163, %p164
    %s166 = ssub.s32 %s34, %s53
    %s167 = ssub.s32 %s36, %s45
    %s168 = sor.u32 %s166, %s167
    %p169 = scmp.eq.s32.totalorder %s168, 0
    %s171 = sadd.s32 %s170, 1
    %s172 = scalar_select %p169, %s170, %s171
    %p175 = pneg %p169
    %p176 = scmp.eq.s32.totalorder %s27, 7
    %p177 = por %p175, %p176
    %p178 = scmp.ne.s32.totalorder %s170, %s173
    %p179 = scmp.eq.s32.totalorder %s27, 0
    %p180 = por %p178, %p179
    %p181 = scmp.ne.s32.totalorder %s170, %s173
    %p182 = scmp.eq.s32.totalorder %s32, 7
    %p183 = por %p181, %p182
    %p184 = scmp.ne.s32.totalorder %s173, %s174
    %p185 = scmp.eq.s32.totalorder %s32, 0
    %p186 = por %p184, %p185
    %p187 = scmp.ne.s32.totalorder %s173, %s174
    %p188 = scmp.eq.s32.totalorder %s33, 7
    %p189 = por %p187, %p188
    %p191 = scmp.ne.s32.totalorder %s174, %s190
    %p192 = scmp.eq.s32.totalorder %s33, 0
    %p193 = por %p191, %p192
    %s195 = sadd.s32 %s194, 1
    %p198 = scmp.eq.s32.totalorder %s27, 7
    %p199 = scmp.ne.s32.totalorder %s194, %s196
    %p200 = scmp.eq.s32.totalorder %s27, 0
    %p201 = por %p199, %p200
    %p202 = scmp.ne.s32.totalorder %s194, %s196
    %p203 = scmp.eq.s32.totalorder %s32, 7
    %p204 = por %p202, %p203
    %p205 = scmp.ne.s32.totalorder %s196, %s197
    %p206 = scmp.eq.s32.totalorder %s32, 0
    %p207 = por %p205, %p206
    %p208 = scmp.ne.s32.totalorder %s196, %s197
    %p209 = scmp.eq.s32.totalorder %s33, 7
    %p210 = por %p208, %p209
    %p212 = scmp.ne.s32.totalorder %s197, %s211
    %p213 = scmp.eq.s32.totalorder %s33, 0
    %p214 = por %p212, %p213
    %s216 = sadd.s32 %s215, 1
    %p219 = scmp.eq.s32.totalorder %s27, 7
    %p220 = scmp.ne.s32.totalorder %s215, %s217
    %p221 = scmp.eq.s32.totalorder %s27, 0
    %p222 = por %p220, %p221
    %p223 = scmp.ne.s32.totalorder %s215, %s217
    %p224 = scmp.eq.s32.totalorder %s32, 7
    %p225 = por %p223, %p224
    %p226 = scmp.ne.s32.totalorder %s217, %s218
    %p227 = scmp.eq.s32.totalorder %s32, 0
    %p228 = por %p226, %p227
    %p229 = scmp.ne.s32.totalorder %s217, %s218
    %p230 = scmp.eq.s32.totalorder %s33, 7
    %p231 = por %p229, %p230
    %p233 = scmp.ne.s32.totalorder %s218, %s232
    %p234 = scmp.eq.s32.totalorder %s33, 0
    %p235 = por %p233, %p234
    %s237 = sadd.s32 %s236, 1
    %p240 = scmp.eq.s32.totalorder %s27, 7
    %p241 = scmp.ne.s32.totalorder %s236, %s238
    %p242 = scmp.eq.s32.totalorder %s27, 0
    %p243 = por %p241, %p242
    %p244 = scmp.ne.s32.totalorder %s236, %s238
    %p245 = scmp.eq.s32.totalorder %s32, 7
    %p246 = por %p244, %p245
    %p247 = scmp.ne.s32.totalorder %s238, %s239
    %p248 = scmp.eq.s32.totalorder %s32, 0
    %p249 = por %p247, %p248
    %p250 = scmp.ne.s32.totalorder %s238, %s239
    %p251 = scmp.eq.s32.totalorder %s33, 7
    %p252 = por %p250, %p251
    %p254 = scmp.ne.s32.totalorder %s239, %s253
    %p255 = scmp.eq.s32.totalorder %s33, 0
    %p256 = por %p254, %p255
    %s258 = sadd.s32 %s257, 1
    %p261 = scmp.eq.s32.totalorder %s27, 7
    %p262 = scmp.ne.s32.totalorder %s257, %s259
    %p263 = scmp.eq.s32.totalorder %s27, 0
    %p264 = por %p262, %p263
    %p265 = scmp.ne.s32.totalorder %s257, %s259
    %p266 = scmp.eq.s32.totalorder %s32, 7
    %p267 = por %p265, %p266
    %p268 = scmp.ne.s32.totalorder %s259, %s260
    %p269 = scmp.eq.s32.totalorder %s32, 0
    %p270 = por %p268, %p269
    %p271 = scmp.ne.s32.totalorder %s259, %s260
    %p272 = scmp.eq.s32.totalorder %s33, 7
    %p273 = por %p271, %p272
    %p275 = scmp.ne.s32.totalorder %s260, %s274
    %p276 = scmp.eq.s32.totalorder %s33, 0
    %p277 = por %p275, %p276
    %s279 = sadd.s32 %s278, 1
    %p282 = scmp.eq.s32.totalorder %s27, 7
    %p283 = scmp.ne.s32.totalorder %s278, %s280
    %p284 = scmp.eq.s32.totalorder %s27, 0
    %p285 = por %p283, %p284
    %p286 = scmp.ne.s32.totalorder %s278, %s280
    %p287 = scmp.eq.s32.totalorder %s32, 7
    %p288 = por %p286, %p287
    %p289 = scmp.ne.s32.totalorder %s280, %s281
    %p290 = scmp.eq.s32.totalorder %s32, 0
    %p291 = por %p289, %p290
    %p292 = scmp.ne.s32.totalorder %s280, %s281
    %p293 = scmp.eq.s32.totalorder %s33, 7
    %p294 = por %p292, %p293
    %p296 = scmp.ne.s32.totalorder %s281, %s295
    %p297 = scmp.eq.s32.totalorder %s33, 0
    %p298 = por %p296, %p297
    %s300 = sadd.s32 %s299, 1
    %p303 = scmp.eq.s32.totalorder %s27, 7
    %p304 = scmp.ne.s32.totalorder %s299, %s301
    %p305 = scmp.eq.s32.totalorder %s27, 0
    %p306 = por %p304, %p305
    %p307 = scmp.ne.s32.totalorder %s299, %s301
    %p308 = scmp.eq.s32.totalorder %s32, 7
    %p309 = por %p307, %p308
    %p310 = scmp.ne.s32.totalorder %s301, %s302
    %p311 = scmp.eq.s32.totalorder %s32, 0
    %p312 = por %p310, %p311
    %p313 = scmp.ne.s32.totalorder %s301, %s302
    %p314 = scmp.eq.s32.totalorder %s33, 7
    %p315 = por %p313, %p314
    %p317 = scmp.ne.s32.totalorder %s302, %s316
    %p318 = scmp.eq.s32.totalorder %s33, 0
    %p319 = por %p317, %p318
    %s321 = sadd.s32 %s320, 1
    %p324 = scmp.eq.s32.totalorder %s27, 7
    %p325 = scmp.ne.s32.totalorder %s320, %s322
    %p326 = scmp.eq.s32.totalorder %s27, 0
    %p327 = por %p325, %p326
    %p328 = scmp.ne.s32.totalorder %s320, %s322
    %p329 = scmp.eq.s32.totalorder %s32, 7
    %p330 = por %p328, %p329
    %p331 = scmp.ne.s32.totalorder %s322, %s323
    %p332 = scmp.eq.s32.totalorder %s32, 0
    %p333 = por %p331, %p332
    %p334 = scmp.ne.s32.totalorder %s322, %s323
    %p335 = scmp.eq.s32.totalorder %s33, 7
    %p336 = por %p334, %p335
    %p338 = scmp.ne.s32.totalorder %s323, %s337
    %p339 = scmp.eq.s32.totalorder %s33, 0
    %p340 = por %p338, %p339
    %s342 = sadd.s32 %s341, 1
    %p345 = scmp.eq.s32.totalorder %s27, 7
    %p346 = scmp.ne.s32.totalorder %s341, %s343
    %p347 = scmp.eq.s32.totalorder %s27, 0
    %p348 = por %p346, %p347
    %p349 = scmp.ne.s32.totalorder %s341, %s343
    %p350 = scmp.eq.s32.totalorder %s32, 7
    %p351 = por %p349, %p350
    %p352 = scmp.ne.s32.totalorder %s343, %s344
    %p353 = scmp.eq.s32.totalorder %s32, 0
    %p354 = por %p352, %p353
    %p355 = scmp.ne.s32.totalorder %s343, %s344
    %p356 = scmp.eq.s32.totalorder %s33, 7
    %p357 = por %p355, %p356
    %p359 = scmp.ne.s32.totalorder %s344, %s358
    %p360 = scmp.eq.s32.totalorder %s33, 0
    %p361 = por %p359, %p360
    %s363 = sadd.s32 %s362, 1
    %p366 = scmp.eq.s32.totalorder %s27, 7
    %p367 = scmp.ne.s32.totalorder %s362, %s364
    %p368 = scmp.eq.s32.totalorder %s27, 0
    %p369 = por %p367, %p368
    %p370 = scmp.ne.s32.totalorder %s362, %s364
    %p371 = scmp.eq.s32.totalorder %s32, 7
    %p372 = por %p370, %p371
    %p373 = scmp.ne.s32.totalorder %s364, %s365
    %p374 = scmp.eq.s32.totalorder %s32, 0
    %p375 = por %p373, %p374
    %p376 = scmp.ne.s32.totalorder %s364, %s365
    %p377 = scmp.eq.s32.totalorder %s33, 7
    %p378 = por %p376, %p377
    %p380 = scmp.ne.s32.totalorder %s365, %s379
    %p381 = scmp.eq.s32.totalorder %s33, 0
    %p382 = por %p380, %p381
    %s384 = sadd.s32 %s383, 1
    %p387 = scmp.eq.s32.totalorder %s27, 7
    %p388 = scmp.ne.s32.totalorder %s383, %s385
    %p389 = scmp.eq.s32.totalorder %s27, 0
    %p390 = por %p388, %p389
    %p391 = scmp.ne.s32.totalorder %s383, %s385
    %p392 = scmp.eq.s32.totalorder %s32, 7
    %p393 = por %p391, %p392
    %p394 = scmp.ne.s32.totalorder %s385, %s386
    %p395 = scmp.eq.s32.totalorder %s32, 0
    %p396 = por %p394, %p395
    %p397 = scmp.ne.s32.totalorder %s385, %s386
    %p398 = scmp.eq.s32.totalorder %s33, 7
    %p399 = por %p397, %p398
    %p401 = scmp.ne.s32.totalorder %s386, %s400
    %p402 = scmp.eq.s32.totalorder %s33, 0
    %p403 = por %p401, %p402
    %s405 = sadd.s32 %s404, 1
    %p408 = scmp.eq.s32.totalorder %s27, 7
    %p409 = scmp.ne.s32.totalorder %s404, %s406
    %p410 = scmp.eq.s32.totalorder %s27, 0
    %p411 = por %p409, %p410
    %p412 = scmp.ne.s32.totalorder %s404, %s406
    %p413 = scmp.eq.s32.totalorder %s32, 7
    %p414 = por %p412, %p413
    %p415 = scmp.ne.s32.totalorder %s406, %s407
    %p416 = scmp.eq.s32.totalorder %s32, 0
    %p417 = por %p415, %p416
    %p418 = scmp.ne.s32.totalorder %s406, %s407
    %p419 = scmp.eq.s32.totalorder %s33, 7
    %p420 = por %p418, %p419
    %p422 = scmp.ne.s32.totalorder %s407, %s421
    %p423 = scmp.eq.s32.totalorder %s33, 0
    %p424 = por %p422, %p423
    %s426 = sadd.s32 %s425, 1
    %p429 = scmp.eq.s32.totalorder %s27, 7
    %p430 = scmp.ne.s32.totalorder %s425, %s427
    %p431 = scmp.eq.s32.totalorder %s27, 0
    %p432 = por %p430, %p431
    %p433 = scmp.ne.s32.totalorder %s425, %s427
    %p434 = scmp.eq.s32.totalorder %s32, 7
    %p435 = por %p433, %p434
    %p436 = scmp.ne.s32.totalorder %s427, %s428
    %p437 = scmp.eq.s32.totalorder %s32, 0
    %p438 = por %p436, %p437
    %p439 = scmp.ne.s32.totalorder %s427, %s428
    %p440 = scmp.eq.s32.totalorder %s33, 7
    %p441 = por %p439, %p440
    %p443 = scmp.ne.s32.totalorder %s428, %s442
    %p444 = scmp.eq.s32.totalorder %s33, 0
    %p445 = por %p443, %p444
    %s446 = ssub.s32 %s34, %s53
    %s447 = ssub.s32 %s35, %s49
    %s448 = sor.u32 %s446, %s447
    %p449 = scmp.eq.s32.totalorder %s448, 0
    %s451 = sadd.s32 %s450, 1
    %s452 = scalar_select %p449, %s450, %s451
    %p455 = pneg %p449
    %p456 = scmp.eq.s32.totalorder %s27, 7
    %p457 = por %p455, %p456
    %p458 = scmp.ne.s32.totalorder %s450, %s453
    %p459 = scmp.eq.s32.totalorder %s27, 0
    %p460 = por %p458, %p459
    %p461 = scmp.ne.s32.totalorder %s450, %s453
    %p462 = scmp.eq.s32.totalorder %s32, 7
    %p463 = por %p461, %p462
    %p464 = scmp.ne.s32.totalorder %s453, %s454
    %p465 = scmp.eq.s32.totalorder %s32, 0
    %p466 = por %p464, %p465
    %p467 = scmp.ne.s32.totalorder %s453, %s454
    %p468 = scmp.eq.s32.totalorder %s33, 7
    %p469 = por %p467, %p468
    %p471 = scmp.ne.s32.totalorder %s454, %s470
    %p472 = scmp.eq.s32.totalorder %s33, 0
    %p473 = por %p471, %p472
    %s474 = ssub.s32 %s34, %s53
    %s475 = ssub.s32 %s35, %s49
    %s476 = sor.u32 %s474, %s475
    %p477 = scmp.eq.s32.totalorder %s476, 0
    %s479 = sadd.s32 %s478, 1
    %s480 = scalar_select %p477, %s478, %s479
    %p483 = pneg %p477
    %p484 = scmp.eq.s32.totalorder %s27, 7
    %p485 = por %p483, %p484
    %p486 = scmp.ne.s32.totalorder %s478, %s481
    %p487 = scmp.eq.s32.totalorder %s27, 0
    %p488 = por %p486, %p487
    %p489 = scmp.ne.s32.totalorder %s478, %s481
    %p490 = scmp.eq.s32.totalorder %s32, 7
    %p491 = por %p489, %p490
    %p492 = scmp.ne.s32.totalorder %s481, %s482
    %p493 = scmp.eq.s32.totalorder %s32, 0
    %p494 = por %p492, %p493
    %p495 = scmp.ne.s32.totalorder %s481, %s482
    %p496 = scmp.eq.s32.totalorder %s33, 7
    %p497 = por %p495, %p496
    %p499 = scmp.ne.s32.totalorder %s482, %s498
    %p500 = scmp.eq.s32.totalorder %s33, 0
    %p501 = por %p499, %p500
    %p502 = scmp.le.s32.totalorder 1, %s27
    %p503 = scmp.lt.s32.totalorder %s27, 9
    %p504 = pnand %p502, %p503
    %p505 = pneg %p504
    // Predicated region
    $region9: #{res_egnn_pallas.4} parent=5 // pred_check
      _
    $region10: #{res_egnn_pallas.4} parent=5 // pred_check_branch
      %507 = sbr.rel (%p504) target = $region12
    $region11: #{res_egnn_pallas.4} parent=5 // pred_region
      %s508 = ssub.s32 %s27, 1
      // Predicated region
      $region13: #{res_egnn_pallas.4} parent=11 // pred_check
        %p509 = pneg %p207
      $region14: #{res_egnn_pallas.4} parent=11 // pred_check_branch
        %511 = sbr.rel (%p509) target = $region16
      $region15: #{res_egnn_pallas.4} parent=11 // pred_region
        _
      $region16: #{res_egnn_pallas.4} parent=11 // pred_fallthru
        _
      // Predicated region
      $region17: #{res_egnn_pallas.4} parent=11 // pred_check
        %p512 = pneg %p228
      $region18: #{res_egnn_pallas.4} parent=11 // pred_check_branch
        %514 = sbr.rel (%p512) target = $region20
      $region19: #{res_egnn_pallas.4} parent=11 // pred_region
        _
      $region20: #{res_egnn_pallas.4} parent=11 // pred_fallthru
        _
      // Predicated region
      $region21: #{res_egnn_pallas.4} parent=11 // pred_check
        %p515 = pneg %p249
      $region22: #{res_egnn_pallas.4} parent=11 // pred_check_branch
        %517 = sbr.rel (%p515) target = $region24
      $region23: #{res_egnn_pallas.4} parent=11 // pred_region
        _
      $region24: #{res_egnn_pallas.4} parent=11 // pred_fallthru
        _
      // Predicated region
      $region25: #{res_egnn_pallas.4} parent=11 // pred_check
        %p518 = pneg %p270
      $region26: #{res_egnn_pallas.4} parent=11 // pred_check_branch
        %520 = sbr.rel (%p518) target = $region28
      $region27: #{res_egnn_pallas.4} parent=11 // pred_region
        _
      $region28: #{res_egnn_pallas.4} parent=11 // pred_fallthru
        _
      // Predicated region
      $region29: #{res_egnn_pallas.4} parent=11 // pred_check
        %p521 = pneg %p291
      $region30: #{res_egnn_pallas.4} parent=11 // pred_check_branch
        %523 = sbr.rel (%p521) target = $region32
      $region31: #{res_egnn_pallas.4} parent=11 // pred_region
        _
      $region32: #{res_egnn_pallas.4} parent=11 // pred_fallthru
        _
      // Predicated region
      $region33: #{res_egnn_pallas.4} parent=11 // pred_check
        %p524 = pneg %p312
      $region34: #{res_egnn_pallas.4} parent=11 // pred_check_branch
        %526 = sbr.rel (%p524) target = $region36
      $region35: #{res_egnn_pallas.4} parent=11 // pred_region
        _
      $region36: #{res_egnn_pallas.4} parent=11 // pred_fallthru
        _
      // Predicated region
      $region37: #{res_egnn_pallas.4} parent=11 // pred_check
        %p527 = pneg %p333
      $region38: #{res_egnn_pallas.4} parent=11 // pred_check_branch
        %529 = sbr.rel (%p527) target = $region40
      $region39: #{res_egnn_pallas.4} parent=11 // pred_region
        _
      $region40: #{res_egnn_pallas.4} parent=11 // pred_fallthru
        _
      // Predicated region
      $region41: #{res_egnn_pallas.4} parent=11 // pred_check
        %p530 = pneg %p354
      $region42: #{res_egnn_pallas.4} parent=11 // pred_check_branch
        %532 = sbr.rel (%p530) target = $region44
      $region43: #{res_egnn_pallas.4} parent=11 // pred_region
        _
      $region44: #{res_egnn_pallas.4} parent=11 // pred_fallthru
        _
      // Predicated region
      $region45: #{res_egnn_pallas.4} parent=11 // pred_check
        %p533 = pneg %p375
      $region46: #{res_egnn_pallas.4} parent=11 // pred_check_branch
        %535 = sbr.rel (%p533) target = $region48
      $region47: #{res_egnn_pallas.4} parent=11 // pred_region
        _
      $region48: #{res_egnn_pallas.4} parent=11 // pred_fallthru
        _
      // Predicated region
      $region49: #{res_egnn_pallas.4} parent=11 // pred_check
        %p536 = pneg %p396
      $region50: #{res_egnn_pallas.4} parent=11 // pred_check_branch
        %538 = sbr.rel (%p536) target = $region52
      $region51: #{res_egnn_pallas.4} parent=11 // pred_region
        _
      $region52: #{res_egnn_pallas.4} parent=11 // pred_fallthru
        _
      // Predicated region
      $region53: #{res_egnn_pallas.4} parent=11 // pred_check
        %p539 = pneg %p417
      $region54: #{res_egnn_pallas.4} parent=11 // pred_check_branch
        %541 = sbr.rel (%p539) target = $region56
      $region55: #{res_egnn_pallas.4} parent=11 // pred_region
        _
      $region56: #{res_egnn_pallas.4} parent=11 // pred_fallthru
        _
      // Predicated region
      $region57: #{res_egnn_pallas.4} parent=11 // pred_check
        %p542 = pneg %p438
      $region58: #{res_egnn_pallas.4} parent=11 // pred_check_branch
        %544 = sbr.rel (%p542) target = $region60
      $region59: #{res_egnn_pallas.4} parent=11 // pred_region
        _
      $region60: #{res_egnn_pallas.4} parent=11 // pred_fallthru
        _
    $region12: #{res_egnn_pallas.4} parent=5 // pred_fallthru
      _
    %p545 = scmp.lt.s32.totalorder %s27, 8
    // Predicated region
    $region61: #{res_egnn_pallas.4} parent=5 // pred_check
      %p546 = pneg %p545
    $region62: #{res_egnn_pallas.4} parent=5 // pred_check_branch
      %548 = sbr.rel (%p546) target = $region64
    $region63: #{res_egnn_pallas.4} parent=5 // pred_region
      // Predicated region
      $region65: #{res_egnn_pallas.4} parent=63 // pred_check
        %p549 = pneg %p68
      $region66: #{res_egnn_pallas.4} parent=63 // pred_check_branch
        %551 = sbr.rel (%p549) target = $region68
      $region67: #{res_egnn_pallas.4} parent=63 // pred_region
        %p552 = scmp.lt.s32.totalorder %s34, 1
        %s553 = scalar_select %p552, %s34, 1
        %p554 = scmp.lt.s32.totalorder %s35, 1
        %s555 = scalar_select %p554, %s35, 1
        %s556 = smul.addr %s553, 2
        %s557 = sadd.s32 %s555, %s556
        %s558 = smul.addr %s557, 8
        %s559 = scalar_lea.vmem %s0, %s558
      $region68: #{res_egnn_pallas.4} parent=63 // pred_fallthru
        _
      // Predicated region
      $region69: #{res_egnn_pallas.4} parent=63 // pred_check
        %p560 = pneg %p96
      $region70: #{res_egnn_pallas.4} parent=63 // pred_check_branch
        %562 = sbr.rel (%p560) target = $region72
      $region71: #{res_egnn_pallas.4} parent=63 // pred_region
        %p563 = scmp.lt.s32.totalorder %s34, 1
        %s564 = scalar_select %p563, %s34, 1
        %p565 = scmp.lt.s32.totalorder %s35, 1
        %s566 = scalar_select %p565, %s35, 1
        %s567 = smul.addr %s566, 2
        %s568 = smul.addr %s564, 4
        %s569 = sadd.s32 %s567, %s568
        %s570 = smul.addr %s569, 8
        %s571 = scalar_lea.vmem %s1, %s570
      $region72: #{res_egnn_pallas.4} parent=63 // pred_fallthru
        _
      // Predicated region
      $region73: #{res_egnn_pallas.4} parent=63 // pred_check
        %p572 = pneg %p124
      $region74: #{res_egnn_pallas.4} parent=63 // pred_check_branch
        %574 = sbr.rel (%p572) target = $region76
      $region75: #{res_egnn_pallas.4} parent=63 // pred_region
        %p575 = scmp.lt.s32.totalorder %s34, 1
        %s576 = scalar_select %p575, %s34, 1
        %p577 = scmp.lt.s32.totalorder %s36, 1
        %s578 = scalar_select %p577, %s36, 1
        %s579 = smul.addr %s578, 2
        %s580 = smul.addr %s576, 4
        %s581 = sadd.s32 %s579, %s580
        %s582 = smul.addr %s581, 8
        %s583 = scalar_lea.vmem %s2, %s582
      $region76: #{res_egnn_pallas.4} parent=63 // pred_fallthru
        _
      // Predicated region
      $region77: #{res_egnn_pallas.4} parent=63 // pred_check
        %p584 = pneg %p152
      $region78: #{res_egnn_pallas.4} parent=63 // pred_check_branch
        %586 = sbr.rel (%p584) target = $region80
      $region79: #{res_egnn_pallas.4} parent=63 // pred_region
        %p587 = scmp.lt.s32.totalorder %s34, 1
        %s588 = scalar_select %p587, %s34, 1
        %p589 = scmp.lt.s32.totalorder %s35, 1
        %s590 = scalar_select %p589, %s35, 1
        %s591 = smul.addr %s588, 2
        %s592 = sadd.s32 %s590, %s591
        %s593 = smul.addr %s592, 8
        %s594 = scalar_lea.vmem %s3, %s593
      $region80: #{res_egnn_pallas.4} parent=63 // pred_fallthru
        _
      // Predicated region
      $region81: #{res_egnn_pallas.4} parent=63 // pred_check
        %p595 = pneg %p180
      $region82: #{res_egnn_pallas.4} parent=63 // pred_check_branch
        %597 = sbr.rel (%p595) target = $region84
      $region83: #{res_egnn_pallas.4} parent=63 // pred_region
        %p598 = scmp.lt.s32.totalorder %s34, 1
        %s599 = scalar_select %p598, %s34, 1
        %p600 = scmp.lt.s32.totalorder %s36, 1
        %s601 = scalar_select %p600, %s36, 1
        %s602 = smul.addr %s599, 2
        %s603 = sadd.s32 %s601, %s602
        %s604 = smul.addr %s603, 8
        %s605 = scalar_lea.vmem %s4, %s604
      $region84: #{res_egnn_pallas.4} parent=63 // pred_fallthru
        _
    $region64: #{res_egnn_pallas.4} parent=5 // pred_fallthru
      _
    %p606 = scmp.le.s32.totalorder 1, %s27
    %p607 = scmp.lt.s32.totalorder %s27, 9
    %p608 = pnand %p606, %p607
    %p609 = pneg %p608
    // Predicated region
    $region85: #{res_egnn_pallas.4} parent=5 // pred_check
      _
    $region86: #{res_egnn_pallas.4} parent=5 // pred_check_branch
      %611 = sbr.rel (%p608) target = $region88
    $region87: #{res_egnn_pallas.4} parent=5 // pred_region
      %s612 = ssub.s32 %s27, 1
      %p613 = scmp.lt.s32.totalorder %s37, 1
      %s614 = scalar_select %p613, %s37, 1
      %p615 = scmp.lt.s32.totalorder %s38, 1
      %s616 = scalar_select %p615, %s38, 1
      %s617 = smul.addr %s614, 2
      %s618 = sadd.s32 %s616, %s617
      %s619 = smul.addr %s618, 8
      %s620 = scalar_lea.vmem %s0, %s619
      %p621 = pneg %p74
      %p622 = pneg %p71
      %p623 = scmp.lt.s32.totalorder %s37, 1
      %s624 = scalar_select %p623, %s37, 1
      %p625 = scmp.lt.s32.totalorder %s38, 1
      %s626 = scalar_select %p625, %s38, 1
      %s627 = smul.addr %s626, 2
      %s628 = smul.addr %s624, 4
      %s629 = sadd.s32 %s627, %s628
      %s630 = smul.addr %s629, 8
      %s631 = scalar_lea.vmem %s1, %s630
      %p632 = pneg %p102
      %p633 = pneg %p99
      %p634 = scmp.lt.s32.totalorder %s37, 1
      %s635 = scalar_select %p634, %s37, 1
      %p636 = scmp.lt.s32.totalorder %s39, 1
      %s637 = scalar_select %p636, %s39, 1
      %s638 = smul.addr %s637, 2
      %s639 = smul.addr %s635, 4
      %s640 = sadd.s32 %s638, %s639
      %s641 = smul.addr %s640, 8
      %s642 = scalar_lea.vmem %s2, %s641
      %p643 = pneg %p130
      %p644 = pneg %p127
      %p645 = scmp.lt.s32.totalorder %s37, 1
      %s646 = scalar_select %p645, %s37, 1
      %p647 = scmp.lt.s32.totalorder %s38, 1
      %s648 = scalar_select %p647, %s38, 1
      %s649 = smul.addr %s646, 2
      %s650 = sadd.s32 %s648, %s649
      %s651 = smul.addr %s650, 8
      %s652 = scalar_lea.vmem %s3, %s651
      %p653 = pneg %p158
      %p654 = pneg %p155
      %p655 = scmp.lt.s32.totalorder %s37, 1
      %s656 = scalar_select %p655, %s37, 1
      %p657 = scmp.lt.s32.totalorder %s39, 1
      %s658 = scalar_select %p657, %s39, 1
      %s659 = smul.addr %s656, 2
      %s660 = sadd.s32 %s658, %s659
      %s661 = smul.addr %s660, 8
      %s662 = scalar_lea.vmem %s4, %s661
      %p663 = pneg %p186
      %p664 = pneg %p183
      %p665 = pneg %p207
      %p666 = pneg %p204
      %p667 = pneg %p228
      %p668 = pneg %p225
      %p669 = pneg %p249
      %p670 = pneg %p246
      %p671 = pneg %p270
      %p672 = pneg %p267
      %p673 = pneg %p291
      %p674 = pneg %p288
      %p675 = pneg %p312
      %p676 = pneg %p309
      %p677 = pneg %p333
      %p678 = pneg %p330
      %p679 = pneg %p354
      %p680 = pneg %p351
      %p681 = pneg %p375
      %p682 = pneg %p372
      %p683 = pneg %p396
      %p684 = pneg %p393
      %p685 = pneg %p417
      %p686 = pneg %p414
      %p687 = pneg %p438
      %p688 = pneg %p435
      %p689 = pneg %p466
      %p690 = pneg %p463
      %p691 = scmp.lt.s32.totalorder %s37, 1
      %s692 = scalar_select %p691, %s37, 1
      %p693 = scmp.lt.s32.totalorder %s38, 1
      %s694 = scalar_select %p693, %s38, 1
      %s695 = smul.addr %s692, 2
      %s696 = sadd.s32 %s694, %s695
      %s697 = smul.addr %s696, 8
      %s698 = scalar_lea.vmem %s17, %s697
      %p699 = pneg %p494
      %p700 = pneg %p491
      %p701 = scmp.lt.s32.totalorder %s37, 1
      %s702 = scalar_select %p701, %s37, 1
      %p703 = scmp.lt.s32.totalorder %s38, 1
      %s704 = scalar_select %p703, %s38, 1
      %s705 = smul.addr %s702, 2
      %s706 = sadd.s32 %s704, %s705
      %s707 = smul.addr %s706, 8
      %s708 = scalar_lea.vmem %s18, %s707
      %p709 = scmp.lt.s32.totalorder %s37, 1
      %s710 = scalar_select %p709, %s37, 1
      %p711 = scmp.lt.s32.totalorder %s38, 1
      %s712 = scalar_select %p711, %s38, 1
      %s713 = smul.addr %s710, 2
      %s714 = sadd.s32 %s712, %s713
      %s715 = smul.addr %s714, 8
      %s716 = scalar_lea.vmem %s0, %s715
      %p717 = scmp.lt.s32.totalorder %s37, 1
      %s718 = scalar_select %p717, %s37, 1
      %p719 = scmp.lt.s32.totalorder %s38, 1
      %s720 = scalar_select %p719, %s38, 1
      %s721 = smul.addr %s720, 2
      %s722 = smul.addr %s718, 4
      %s723 = sadd.s32 %s721, %s722
      %s724 = smul.addr %s723, 8
      %s725 = scalar_lea.vmem %s1, %s724
      %p726 = scmp.lt.s32.totalorder %s37, 1
      %s727 = scalar_select %p726, %s37, 1
      %p728 = scmp.lt.s32.totalorder %s39, 1
      %s729 = scalar_select %p728, %s39, 1
      %s730 = smul.addr %s729, 2
      %s731 = smul.addr %s727, 4
      %s732 = sadd.s32 %s730, %s731
      %s733 = smul.addr %s732, 8
      %s734 = scalar_lea.vmem %s2, %s733
      %p735 = scmp.lt.s32.totalorder %s37, 1
      %s736 = scalar_select %p735, %s37, 1
      %p737 = scmp.lt.s32.totalorder %s38, 1
      %s738 = scalar_select %p737, %s38, 1
      %s739 = smul.addr %s736, 2
      %s740 = sadd.s32 %s738, %s739
      %s741 = smul.addr %s740, 8
      %s742 = scalar_lea.vmem %s3, %s741
      %p743 = scmp.lt.s32.totalorder %s37, 1
      %s744 = scalar_select %p743, %s37, 1
      %p745 = scmp.lt.s32.totalorder %s39, 1
      %s746 = scalar_select %p745, %s39, 1
      %s747 = smul.addr %s744, 2
      %s748 = sadd.s32 %s746, %s747
      %s749 = smul.addr %s748, 8
      %s750 = scalar_lea.vmem %s4, %s749
      %p751 = scmp.lt.s32.totalorder %s37, 1
      %s752 = scalar_select %p751, %s37, 1
      %p753 = scmp.lt.s32.totalorder %s38, 1
      %s754 = scalar_select %p753, %s38, 1
      %s755 = smul.addr %s752, 2
      %s756 = sadd.s32 %s754, %s755
      %s757 = smul.addr %s756, 8
      %s758 = scalar_lea.vmem %s17, %s757
      %p759 = scmp.lt.s32.totalorder %s37, 1
      %s760 = scalar_select %p759, %s37, 1
      %p761 = scmp.lt.s32.totalorder %s38, 1
      %s762 = scalar_select %p761, %s38, 1
      %s763 = smul.addr %s760, 2
      %s764 = sadd.s32 %s762, %s763
      %s765 = smul.addr %s764, 8
      %s766 = scalar_lea.vmem %s18, %s765
      %p767 = scmp.eq.s32.totalorder %s39, 0
      // Predicated region
      $region89: #{res_egnn_pallas.4} parent=87 // pred_check
        %p768 = pneg %p767
      $region90: #{res_egnn_pallas.4} parent=87 // pred_check_branch
        %770 = sbr.rel (%p768) target = $region92
      $region91: #{res_egnn_pallas.4} parent=87 // pred_region
        %vm771 = vcmask 261120
        %772 = vst.msk [vmem:[#allocation2] sm:$0xff] %vm771, 0.0
        %vm773 = vcmask 23552
        %774 = vst.msk [vmem:[#allocation3] sm:$0xff] %vm773, 0.0
      $region92: #{res_egnn_pallas.4} parent=87 // pred_fallthru
        _
      %v775 = vld [vmem:[%s742] sm:$0xff]
      %v776 = vld [vmem:[%s750] sm:$0xff]
      %777 = vxpose.xlu0.b32.start [1/16] %v776, 128
      %778 = vxpose.xlu0.b32.cont [2/16] 0.0, 128
      %779 = vxpose.xlu0.b32.cont [3/16] 0.0, 128
      %780 = vxpose.xlu0.b32.cont [4/16] 0.0, 128
      %781 = vxpose.xlu0.b32.cont [5/16] 0.0, 128
      %782 = vxpose.xlu0.b32.cont [6/16] 0.0, 128
      %783 = vxpose.xlu0.b32.cont [7/16] 0.0, 128
      %784 = vxpose.xlu0.b32.cont [8/16] 0.0, 128
      %785 = vxpose.xlu0.b32.cont [9/16] 0.0, 128
      %786 = vxpose.xlu0.b32.cont [10/16] 0.0, 128
      %787 = vxpose.xlu0.b32.cont [11/16] 0.0, 128
      %788 = vxpose.xlu0.b32.cont [12/16] 0.0, 128
      %789 = vxpose.xlu0.b32.cont [13/16] 0.0, 128
      %790 = vxpose.xlu0.b32.cont [14/16] 0.0, 128
      %791 = vxpose.xlu0.b32.cont [15/16] 0.0, 128
      %792 = vxpose.xlu0.b32.end [16/16] 0.0, 128
      %v793 = vpop.trf.xlu0
      %v794 = vpop.trf.xlu0
      %v795 = vpop.trf.xlu0
      %v796 = vpop.trf.xlu0
      %v797 = vpop.trf.xlu0
      %v798 = vpop.trf.xlu0
      %v799 = vpop.trf.xlu0
      %v800 = vpop.trf.xlu0
      %v801 = vpop.trf.xlu0
      %v802 = vpop.trf.xlu0
      %v803 = vpop.trf.xlu0
      %v804 = vpop.trf.xlu0
      %v805 = vpop.trf.xlu0
      %v806 = vpop.trf.xlu0
      %v807 = vpop.trf.xlu0
      %v808 = vpop.trf.xlu0
      %810 = vset.pattern.permute.xlu0 0
      %811 = vperm.xlu0 %810, %v775
      %v812 = vpop.permute.xlu0 %811
      %v814 = vlaneseq
      %v815 = vshrl.u32 %v814, 7
      %v816 = vsub.s32 0, %v815
      %v817 = vrot.slane %v793, %v816
      %v818 = vsub.f32 %v812, %v817
      %819 = vset.pattern.permute.xlu0 1
      %820 = vperm.xlu0 %819, %v775
      %v821 = vpop.permute.xlu0 %820
      %v823 = vlaneseq
      %v824 = vshrl.u32 %v823, 7
      %v825 = vsub.s32 1, %v824
      %v826 = vrot.slane %v793, %v825
      %v827 = vsub.f32 %v821, %v826
      %828 = vset.pattern.permute.xlu0 2
      %829 = vperm.xlu0 %828, %v775
      %v830 = vpop.permute.xlu0 %829
      %v832 = vlaneseq
      %v833 = vshrl.u32 %v832, 7
      %v834 = vsub.s32 2, %v833
      %v835 = vrot.slane %v793, %v834
      %v836 = vsub.f32 %v830, %v835
      %v837 = vmul.f32 %v818, %v818
      %v838 = vmul.f32 %v827, %v827
      %v839 = vadd.f32 %v837, %v838
      %v840 = vmul.f32 %v836, %v836
      %v841 = vadd.f32 %v839, %v840
      %v842 = vlaneseq
      %v843 = vshrl.u32 %v842, 7
      %v844 = vsub.s32 0, %v843
      %v845 = vrot.slane %v841, %v844
      %847 = vbcast.lane.b32.xlu0 %v845, 256
      %v848 = vpop.permute.xlu0 %847
      %v849 = vlaneseq
      %v850 = vshrl.u32 %v849, 7
      %v851 = vsub.s32 1, %v850
      %v852 = vrot.slane %v841, %v851
      %854 = vbcast.lane.b32.xlu0 %v852, 256
      %v855 = vpop.permute.xlu0 %854
      %v856 = vlaneseq
      %v857 = vshrl.u32 %v856, 7
      %v858 = vsub.s32 2, %v857
      %v859 = vrot.slane %v841, %v858
      %861 = vbcast.lane.b32.xlu0 %v859, 256
      %v862 = vpop.permute.xlu0 %861
      %v863 = vlaneseq
      %v864 = vshrl.u32 %v863, 7
      %v865 = vsub.s32 3, %v864
      %v866 = vrot.slane %v841, %v865
      %868 = vbcast.lane.b32.xlu0 %v866, 256
      %v869 = vpop.permute.xlu0 %868
      %v870 = vlaneseq
      %v871 = vshrl.u32 %v870, 7
      %v872 = vsub.s32 4, %v871
      %v873 = vrot.slane %v841, %v872
      %875 = vbcast.lane.b32.xlu0 %v873, 256
      %v876 = vpop.permute.xlu0 %875
      %v877 = vlaneseq
      %v878 = vshrl.u32 %v877, 7
      %v879 = vsub.s32 5, %v878
      %v880 = vrot.slane %v841, %v879
      %882 = vbcast.lane.b32.xlu0 %v880, 256
      %v883 = vpop.permute.xlu0 %882
      %v884 = vlaneseq
      %v885 = vshrl.u32 %v884, 7
      %v886 = vsub.s32 6, %v885
      %v887 = vrot.slane %v841, %v886
      %889 = vbcast.lane.b32.xlu0 %v887, 256
      %v890 = vpop.permute.xlu0 %889
      %v891 = vlaneseq
      %v892 = vshrl.u32 %v891, 7
      %v893 = vsub.s32 7, %v892
      %v894 = vrot.slane %v841, %v893
      %896 = vbcast.lane.b32.xlu0 %v894, 256
      %v897 = vpop.permute.xlu0 %896
      %v898 = vld [vmem:[%s725] sm:$0xff]
      %v899 = vld [vmem:[%s725 + $0x8] sm:$0xff]
      %v902 = vcombine.low %v898, %v899
      %v903 = vcombine.high %v898, %v899
      %v905 = vunpack.c.l.s4 1966171168
      %v906 = vunpack.c.0.s8 %v905
      %v907 = vlaneseq
      %v908 = vshrl.u32 %v907, 7
      %v909 = vsub.s32 %v906, %v908
      %v910 = vrot.slane %v902, %v909
      %v912 = vunpack.c.l.s4 1966171168
      %v913 = vunpack.c.0.s8 %v912
      %v914 = vlaneseq
      %v915 = vshrl.u32 %v914, 7
      %v916 = vsub.s32 %v913, %v915
      %v917 = vrot.slane %v903, %v916
      %v918 = vcombine.high %v910, %v910
      %v919 = vcombine.high %v917, %v917
      %v921 = vunpack.c.l.s4 1966171168
      %v922 = vunpack.c.0.s8 %v921
      %v923 = vlaneseq
      %v924 = vshrl.u32 %v923, 7
      %v925 = vsub.s32 %v922, %v924
      %v926 = vrot.slane %v910, %v925
      %v928 = vunpack.c.l.s4 1966171168
      %v929 = vunpack.c.0.s8 %v928
      %v930 = vlaneseq
      %v931 = vshrl.u32 %v930, 7
      %v932 = vsub.s32 %v929, %v931
      %v933 = vrot.slane %v917, %v932
      %v935 = vunpack.c.l.s4 1966171168
      %v936 = vunpack.c.0.s8 %v935
      %v937 = vlaneseq
      %v938 = vshrl.u32 %v937, 7
      %v939 = vsub.s32 %v936, %v938
      %v940 = vrot.slane %v918, %v939
      %v942 = vunpack.c.l.s4 1966171168
      %v943 = vunpack.c.0.s8 %v942
      %v944 = vlaneseq
      %v945 = vshrl.u32 %v944, 7
      %v946 = vsub.s32 %v943, %v945
      %v947 = vrot.slane %v919, %v946
      %v948 = vcombine.high %v926, %v926
      %v949 = vcombine.high %v933, %v933
      %v950 = vcombine.high %v940, %v940
      %v951 = vcombine.high %v947, %v947
      %v952 = vld [vmem:[%s734] sm:$0xff]
      %v953 = vld [vmem:[%s734 + $0x8] sm:$0xff]
      %v954 = vlaneseq
      %v955 = vshrl.u32 %v954, 7
      %v956 = vsub.s32 0, %v955
      %v957 = vrot.slane %v926, %v956
      %v958 = vlaneseq
      %v959 = vshrl.u32 %v958, 7
      %v960 = vsub.s32 1, %v959
      %v961 = vrot.slane %v926, %v960
      %v962 = vlaneseq
      %v963 = vshrl.u32 %v962, 7
      %v964 = vsub.s32 0, %v963
      %v965 = vrot.slane %v940, %v964
      %v966 = vlaneseq
      %v967 = vshrl.u32 %v966, 7
      %v968 = vsub.s32 1, %v967
      %v969 = vrot.slane %v940, %v968
      %v970 = vlaneseq
      %v971 = vshrl.u32 %v970, 7
      %v972 = vsub.s32 0, %v971
      %v973 = vrot.slane %v948, %v972
      %v974 = vlaneseq
      %v975 = vshrl.u32 %v974, 7
      %v976 = vsub.s32 1, %v975
      %v977 = vrot.slane %v948, %v976
      %v978 = vlaneseq
      %v979 = vshrl.u32 %v978, 7
      %v980 = vsub.s32 0, %v979
      %v981 = vrot.slane %v950, %v980
      %v982 = vlaneseq
      %v983 = vshrl.u32 %v982, 7
      %v984 = vsub.s32 1, %v983
      %v985 = vrot.slane %v950, %v984
      %v986 = vlaneseq
      %v987 = vshrl.u32 %v986, 7
      %v988 = vsub.s32 0, %v987
      %v989 = vrot.slane %v933, %v988
      %v990 = vlaneseq
      %v991 = vshrl.u32 %v990, 7
      %v992 = vsub.s32 1, %v991
      %v993 = vrot.slane %v933, %v992
      %v994 = vlaneseq
      %v995 = vshrl.u32 %v994, 7
      %v996 = vsub.s32 0, %v995
      %v997 = vrot.slane %v947, %v996
      %v998 = vlaneseq
      %v999 = vshrl.u32 %v998, 7
      %v1000 = vsub.s32 1, %v999
      %v1001 = vrot.slane %v947, %v1000
      %v1002 = vlaneseq
      %v1003 = vshrl.u32 %v1002, 7
      %v1004 = vsub.s32 0, %v1003
      %v1005 = vrot.slane %v949, %v1004
      %v1006 = vlaneseq
      %v1007 = vshrl.u32 %v1006, 7
      %v1008 = vsub.s32 1, %v1007
      %v1009 = vrot.slane %v949, %v1008
      %v1010 = vlaneseq
      %v1011 = vshrl.u32 %v1010, 7
      %v1012 = vsub.s32 0, %v1011
      %v1013 = vrot.slane %v951, %v1012
      %v1014 = vlaneseq
      %v1015 = vshrl.u32 %v1014, 7
      %v1016 = vsub.s32 1, %v1015
      %v1017 = vrot.slane %v951, %v1016
      %v1034 = vadd.f32 %v957, %v952
      %v1035 = vadd.f32 %v961, %v953
      %v1036 = vadd.f32 %v965, %v952
      %v1037 = vadd.f32 %v969, %v953
      %v1038 = vadd.f32 %v973, %v952
      %v1039 = vadd.f32 %v977, %v953
      %v1040 = vadd.f32 %v981, %v952
      %v1041 = vadd.f32 %v985, %v953
      %v1042 = vadd.f32 %v989, %v952
      %v1043 = vadd.f32 %v993, %v953
      %v1044 = vadd.f32 %v997, %v952
      %v1045 = vadd.f32 %v1001, %v953
      %v1046 = vadd.f32 %v1005, %v952
      %v1047 = vadd.f32 %v1009, %v953
      %v1048 = vadd.f32 %v1013, %v952
      %v1049 = vadd.f32 %v1017, %v953
      %v1050 = vld [vmem:[%s5] sm:$0x3]
      %v1052 = vlaneseq
      %v1053 = vshrl.u32 %v1052, 7
      %v1054 = vsub.s32 0, %v1053
      %v1055 = vrot.slane %v1050, %v1054
      %v1056 = vlaneseq
      %v1057 = vshrl.u32 %v1056, 7
      %v1058 = vsub.s32 1, %v1057
      %v1059 = vrot.slane %v1050, %v1058
      %v1062 = vmul.f32 %v848, %v1055
      %v1063 = vmul.f32 %v848, %v1059
      %v1064 = vmul.f32 %v855, %v1055
      %v1065 = vmul.f32 %v855, %v1059
      %v1066 = vmul.f32 %v862, %v1055
      %v1067 = vmul.f32 %v862, %v1059
      %v1068 = vmul.f32 %v869, %v1055
      %v1069 = vmul.f32 %v869, %v1059
      %v1070 = vmul.f32 %v876, %v1055
      %v1071 = vmul.f32 %v876, %v1059
      %v1072 = vmul.f32 %v883, %v1055
      %v1073 = vmul.f32 %v883, %v1059
      %v1074 = vmul.f32 %v890, %v1055
      %v1075 = vmul.f32 %v890, %v1059
      %v1076 = vmul.f32 %v897, %v1055
      %v1077 = vmul.f32 %v897, %v1059
      %v1078 = vadd.f32 %v1034, %v1062
      %v1079 = vadd.f32 %v1035, %v1063
      %v1080 = vadd.f32 %v1036, %v1064
      %v1081 = vadd.f32 %v1037, %v1065
      %v1082 = vadd.f32 %v1038, %v1066
      %v1083 = vadd.f32 %v1039, %v1067
      %v1084 = vadd.f32 %v1040, %v1068
      %v1085 = vadd.f32 %v1041, %v1069
      %v1086 = vadd.f32 %v1042, %v1070
      %v1087 = vadd.f32 %v1043, %v1071
      %v1088 = vadd.f32 %v1044, %v1072
      %v1089 = vadd.f32 %v1045, %v1073
      %v1090 = vadd.f32 %v1046, %v1074
      %v1091 = vadd.f32 %v1047, %v1075
      %v1092 = vadd.f32 %v1048, %v1076
      %v1093 = vadd.f32 %v1049, %v1077
      %v1094 = vmul.f32 %v1078, 0.5
      %v1095 = vmul.f32 %v1079, 0.5
      %v1096 = vmul.f32 %v1080, 0.5
      %v1097 = vmul.f32 %v1081, 0.5
      %v1098 = vmul.f32 %v1082, 0.5
      %v1099 = vmul.f32 %v1083, 0.5
      %v1100 = vmul.f32 %v1084, 0.5
      %v1101 = vmul.f32 %v1085, 0.5
      %v1102 = vmul.f32 %v1086, 0.5
      %v1103 = vmul.f32 %v1087, 0.5
      %v1104 = vmul.f32 %v1088, 0.5
      %v1105 = vmul.f32 %v1089, 0.5
      %v1106 = vmul.f32 %v1090, 0.5
      %v1107 = vmul.f32 %v1091, 0.5
      %v1108 = vmul.f32 %v1092, 0.5
      %v1109 = vmul.f32 %v1093, 0.5
      %v1110 = vtanh.pop %v1094
      %v1111 = vtanh.pop %v1095
      %v1112 = vtanh.pop %v1096
      %v1113 = vtanh.pop %v1097
      %v1114 = vtanh.pop %v1098
      %v1115 = vtanh.pop %v1099
      %v1116 = vtanh.pop %v1100
      %v1117 = vtanh.pop %v1101
      %v1118 = vtanh.pop %v1102
      %v1119 = vtanh.pop %v1103
      %v1120 = vtanh.pop %v1104
      %v1121 = vtanh.pop %v1105
      %v1122 = vtanh.pop %v1106
      %v1123 = vtanh.pop %v1107
      %v1124 = vtanh.pop %v1108
      %v1125 = vtanh.pop %v1109
      %v1126 = vmul.f32 %v1110, 0.5
      %v1127 = vmul.f32 %v1111, 0.5
      %v1128 = vmul.f32 %v1112, 0.5
      %v1129 = vmul.f32 %v1113, 0.5
      %v1130 = vmul.f32 %v1114, 0.5
      %v1131 = vmul.f32 %v1115, 0.5
      %v1132 = vmul.f32 %v1116, 0.5
      %v1133 = vmul.f32 %v1117, 0.5
      %v1134 = vmul.f32 %v1118, 0.5
      %v1135 = vmul.f32 %v1119, 0.5
      %v1136 = vmul.f32 %v1120, 0.5
      %v1137 = vmul.f32 %v1121, 0.5
      %v1138 = vmul.f32 %v1122, 0.5
      %v1139 = vmul.f32 %v1123, 0.5
      %v1140 = vmul.f32 %v1124, 0.5
      %v1141 = vmul.f32 %v1125, 0.5
      %v1142 = vadd.f32 %v1126, 0.5
      %v1143 = vadd.f32 %v1127, 0.5
      %v1144 = vadd.f32 %v1128, 0.5
      %v1145 = vadd.f32 %v1129, 0.5
      %v1146 = vadd.f32 %v1130, 0.5
      %v1147 = vadd.f32 %v1131, 0.5
      %v1148 = vadd.f32 %v1132, 0.5
      %v1149 = vadd.f32 %v1133, 0.5
      %v1150 = vadd.f32 %v1134, 0.5
      %v1151 = vadd.f32 %v1135, 0.5
      %v1152 = vadd.f32 %v1136, 0.5
      %v1153 = vadd.f32 %v1137, 0.5
      %v1154 = vadd.f32 %v1138, 0.5
      %v1155 = vadd.f32 %v1139, 0.5
      %v1156 = vadd.f32 %v1140, 0.5
      %v1157 = vadd.f32 %v1141, 0.5
      %v1158 = vmul.f32 %v1078, %v1142
      %v1159 = vmul.f32 %v1079, %v1143
      %v1160 = vmul.f32 %v1080, %v1144
      %v1161 = vmul.f32 %v1081, %v1145
      %v1162 = vmul.f32 %v1082, %v1146
      %v1163 = vmul.f32 %v1083, %v1147
      %v1164 = vmul.f32 %v1084, %v1148
      %v1165 = vmul.f32 %v1085, %v1149
      %v1166 = vmul.f32 %v1086, %v1150
      %v1167 = vmul.f32 %v1087, %v1151
      %v1168 = vmul.f32 %v1088, %v1152
      %v1169 = vmul.f32 %v1089, %v1153
      %v1170 = vmul.f32 %v1090, %v1154
      %v1171 = vmul.f32 %v1091, %v1155
      %v1172 = vmul.f32 %v1092, %v1156
      %v1173 = vmul.f32 %v1093, %v1157
      %v1174 = vld [vmem:[%s6] sm:$0xff]
      %v1175 = vld [vmem:[%s6 + $0x8] sm:$0xff]
      %v1176 = vld [vmem:[%s6 + $0x10] sm:$0xff]
      %v1177 = vld [vmem:[%s6 + $0x18] sm:$0xff]
      %v1178 = vld [vmem:[%s6 + $0x20] sm:$0xff]
      %v1179 = vld [vmem:[%s6 + $0x28] sm:$0xff]
      %v1180 = vld [vmem:[%s6 + $0x30] sm:$0xff]
      %v1181 = vld [vmem:[%s6 + $0x38] sm:$0xff]
      %v1182 = vld [vmem:[%s6 + $0x40] sm:$0xff]
      %v1183 = vld [vmem:[%s6 + $0x48] sm:$0xff]
      %v1184 = vld [vmem:[%s6 + $0x50] sm:$0xff]
      %v1185 = vld [vmem:[%s6 + $0x58] sm:$0xff]
      %v1186 = vld [vmem:[%s6 + $0x60] sm:$0xff]
      %v1187 = vld [vmem:[%s6 + $0x68] sm:$0xff]
      %v1188 = vld [vmem:[%s6 + $0x70] sm:$0xff]
      %v1189 = vld [vmem:[%s6 + $0x78] sm:$0xff]
      %v1190 = vld [vmem:[%s6 + $0x80] sm:$0xff]
      %v1191 = vld [vmem:[%s6 + $0x88] sm:$0xff]
      %v1192 = vld [vmem:[%s6 + $0x90] sm:$0xff]
      %v1193 = vld [vmem:[%s6 + $0x98] sm:$0xff]
      %v1194 = vld [vmem:[%s6 + $0xa0] sm:$0x3f]
      %v1195 = vld [vmem:[%s7] sm:$0x1]
      %v1197 = vlaneseq
      %v1198 = vshrl.u32 %v1197, 7
      %v1199 = vsub.s32 0, %v1198
      %v1200 = vrot.slane %v1195, %v1199
      %vm1202 = vcmask 310272
      %v1204 = vsel %vm1202, %v1159, 0
      %v1207 = vsel %vm1202, %v1161, 0
      %v1210 = vsel %vm1202, %v1163, 0
      %v1213 = vsel %vm1202, %v1165, 0
      %v1216 = vsel %vm1202, %v1167, 0
      %v1219 = vsel %vm1202, %v1169, 0
      %v1222 = vsel %vm1202, %v1171, 0
      %v1225 = vsel %vm1202, %v1173, 0
      %vm1227 = vcmask 1045504
      %v1229 = vsel %vm1227, %v1194, 0
      %1231 = vmatprep.subr.mxu0 0.0
      %1232 = vmatpush1.msra.mxu0 %v1174
      %1233 = vmatprep.subr.mxu0 0.0
      %1234 = vmatpush1.msra.mxu0 %v1175
      %1235 = vmatprep.subr.mxu0 0.0
      %1236 = vmatpush1.msra.mxu0 %v1176
      %1237 = vmatprep.subr.mxu0 0.0
      %1238 = vmatpush1.msra.mxu0 %v1177
      %1239 = vmatprep.subr.mxu0 0.0
      %1240 = vmatpush1.msra.mxu0 %v1178
      %1241 = vmatprep.subr.mxu0 0.0
      %1242 = vmatpush1.msra.mxu0 %v1179
      %1243 = vmatprep.subr.mxu0 0.0
      %1244 = vmatpush1.msra.mxu0 %v1180
      %1245 = vmatprep.subr.mxu0 0.0
      %1246 = vmatpush1.msra.mxu0 %v1181
      %1247 = vmatprep.subr.mxu0 0.0
      %1248 = vmatpush1.msra.mxu0 %v1182
      %1249 = vmatprep.subr.mxu0 0.0
      %1250 = vmatpush1.msra.mxu0 %v1183
      %1251 = vmatprep.subr.mxu0 0.0
      %1252 = vmatpush1.msra.mxu0 %v1184
      %1253 = vmatprep.subr.mxu0 0.0
      %1254 = vmatpush1.msra.mxu0 %v1185
      %1255 = vmatprep.subr.mxu0 0.0
      %1256 = vmatpush1.msra.mxu0 %v1186
      %1257 = vmatprep.subr.mxu0 0.0
      %1258 = vmatpush1.msra.mxu0 %v1187
      %1259 = vmatprep.subr.mxu0 0.0
      %1260 = vmatpush1.msra.mxu0 %v1188
      %1261 = vmatprep.subr.mxu0 0.0
      %1262 = vmatpush1.msra.mxu0 %v1189
      %1263 = vmatprep.subr.mxu0 0.0
      %1264 = vmatpush1.msra.mxu0 %v1190
      %1265 = vmatprep.subr.mxu0 0.0
      %1266 = vmatpush1.msra.mxu0 %v1191
      %1267 = vmatprep.subr.mxu0 0.0
      %1268 = vmatpush1.msra.mxu0 %v1192
      %1269 = vmatprep.subr.mxu0 0.0
      %1270 = vmatpush1.msra.mxu0 %v1193
      %1271 = vmatprep.subr.mxu0 0.0
      %1272 = vmatpush1.msra.mxu0 %v1229
      %1273 = vmatprep.subr.mxu0 0.0
      %1274 = vmatpush1.msra.mxu0 0.0
      %1275 = vmatprep.subr.mxu0 0.0
      %1276 = vmatpush1.msra.mxu0 0.0
      %1277 = vmatprep.subr.mxu0 0.0
      %1278 = vmatpush1.msra.mxu0 0.0
      %1279 = vmatprep.subr.mxu0 0.0
      %1280 = vmatpush1.msra.mxu0 0.0
      %1281 = vmatprep.subr.mxu0 0.0
      %1282 = vmatpush1.msra.mxu0 0.0
      %1283 = vmatprep.subr.mxu0 0.0
      %1284 = vmatpush1.msra.mxu0 0.0
      %1285 = vmatprep.subr.mxu0 0.0
      %1286 = vmatpush1.msra.mxu0 0.0
      %1287 = vmatprep.subr.mxu0 0.0
      %1288 = vmatpush1.msra.mxu0 0.0
      %1289 = vmatprep.subr.mxu0 0.0
      %1290 = vmatpush1.msra.mxu0 0.0
      %1291 = vmatprep.subr.mxu0 0.0
      %1292 = vmatpush1.msra.mxu0 0.0
      %1293 = vmatprep.subr.mxu0 0.0
      %1294 = vmatpush1.msra.mxu0 0.0
      %1295 = vmatprep.mubr.f32.mxu0 %v1204
      %1296 = vmatmul.mubr.f32.gmra.mrb[0].mxu0 %v1158
      %v1297 = vpop.f32.mrb[0].mxu0
      %v1298 = vadd.f32 %v1200, %v1297
      %v1299 = vpop.f32.mrb[0].mxu0
      %1300 = vmatprep.mubr.f32.mxu0 %v1207
      %1301 = vmatmul.mubr.f32.gmra.mrb[0].mxu0 %v1160
      %v1302 = vpop.f32.mrb[0].mxu0
      %v1303 = vadd.f32 %v1200, %v1302
      %v1304 = vpop.f32.mrb[0].mxu0
      %1305 = vmatprep.mubr.f32.mxu0 %v1210
      %1306 = vmatmul.mubr.f32.gmra.mrb[0].mxu0 %v1162
      %v1307 = vpop.f32.mrb[0].mxu0
      %v1308 = vadd.f32 %v1200, %v1307
      %v1309 = vpop.f32.mrb[0].mxu0
      %1310 = vmatprep.mubr.f32.mxu0 %v1213
      %1311 = vmatmul.mubr.f32.gmra.mrb[0].mxu0 %v1164
      %v1312 = vpop.f32.mrb[0].mxu0
      %v1313 = vadd.f32 %v1200, %v1312
      %v1314 = vpop.f32.mrb[0].mxu0
      %1315 = vmatprep.mubr.f32.mxu0 %v1216
      %1316 = vmatmul.mubr.f32.gmra.mrb[0].mxu0 %v1166
      %v1317 = vpop.f32.mrb[0].mxu0
      %v1318 = vadd.f32 %v1200, %v1317
      %v1319 = vpop.f32.mrb[0].mxu0
      %1320 = vmatprep.mubr.f32.mxu0 %v1219
      %1321 = vmatmul.mubr.f32.gmra.mrb[0].mxu0 %v1168
      %v1322 = vpop.f32.mrb[0].mxu0
      %v1323 = vadd.f32 %v1200, %v1322
      %v1324 = vpop.f32.mrb[0].mxu0
      %1325 = vmatprep.mubr.f32.mxu0 %v1222
      %1326 = vmatmul.mubr.f32.gmra.mrb[0].mxu0 %v1170
      %v1327 = vpop.f32.mrb[0].mxu0
      %v1328 = vadd.f32 %v1200, %v1327
      %v1329 = vpop.f32.mrb[0].mxu0
      %1330 = vmatprep.mubr.f32.mxu0 %v1225
      %1331 = vmatmul.mubr.f32.gmra.mrb[0].mxu0 %v1172
      %v1332 = vpop.f32.mrb[0].mxu0
      %v1333 = vadd.f32 %v1200, %v1332
      %v1334 = vpop.f32.mrb[0].mxu0
      %1335 = vdwg.mxu0
      %v1336 = vmul.f32 %v1298, 0.5
      %v1337 = vmul.f32 %v1303, 0.5
      %v1338 = vmul.f32 %v1308, 0.5
      %v1339 = vmul.f32 %v1313, 0.5
      %v1340 = vmul.f32 %v1318, 0.5
      %v1341 = vmul.f32 %v1323, 0.5
      %v1342 = vmul.f32 %v1328, 0.5
      %v1343 = vmul.f32 %v1333, 0.5
      %v1344 = vtanh.pop %v1336
      %v1345 = vtanh.pop %v1337
      %v1346 = vtanh.pop %v1338
      %v1347 = vtanh.pop %v1339
      %v1348 = vtanh.pop %v1340
      %v1349 = vtanh.pop %v1341
      %v1350 = vtanh.pop %v1342
      %v1351 = vtanh.pop %v1343
      %v1352 = vmul.f32 %v1344, 0.5
      %v1353 = vmul.f32 %v1345, 0.5
      %v1354 = vmul.f32 %v1346, 0.5
      %v1355 = vmul.f32 %v1347, 0.5
      %v1356 = vmul.f32 %v1348, 0.5
      %v1357 = vmul.f32 %v1349, 0.5
      %v1358 = vmul.f32 %v1350, 0.5
      %v1359 = vmul.f32 %v1351, 0.5
      %v1360 = vadd.f32 %v1352, 0.5
      %v1361 = vadd.f32 %v1353, 0.5
      %v1362 = vadd.f32 %v1354, 0.5
      %v1363 = vadd.f32 %v1355, 0.5
      %v1364 = vadd.f32 %v1356, 0.5
      %v1365 = vadd.f32 %v1357, 0.5
      %v1366 = vadd.f32 %v1358, 0.5
      %v1367 = vadd.f32 %v1359, 0.5
      %v1368 = vmul.f32 %v1298, %v1360
      %v1369 = vmul.f32 %v1303, %v1361
      %v1370 = vmul.f32 %v1308, %v1362
      %v1371 = vmul.f32 %v1313, %v1363
      %v1372 = vmul.f32 %v1318, %v1364
      %v1373 = vmul.f32 %v1323, %v1365
      %v1374 = vmul.f32 %v1328, %v1366
      %v1375 = vmul.f32 %v1333, %v1367
      %v1376 = vld [vmem:[#allocation2] sm:$0xff]
      %vm1377 = vcmask 261120
      %v1378 = vsel %vm1377, %v1368, 0.0
      %v1379 = vrot.slane %v1378, 4
      %v1380 = vadd.f32 %v1378, %v1379
      %v1381 = vrot.slane %v1380, 2
      %v1382 = vadd.f32 %v1380, %v1381
      %v1383 = vrot.slane %v1382, 1
      %v1384 = vadd.f32 %v1382, %v1383
      %v1385 = vsel %vm1377, %v1369, 0.0
      %v1386 = vrot.slane %v1385, 4
      %v1387 = vadd.f32 %v1385, %v1386
      %v1388 = vrot.slane %v1387, 2
      %v1389 = vadd.f32 %v1387, %v1388
      %v1390 = vrot.slane %v1389, 1
      %v1391 = vadd.f32 %v1389, %v1390
      %v1392 = vsel %vm1377, %v1370, 0.0
      %v1393 = vrot.slane %v1392, 4
      %v1394 = vadd.f32 %v1392, %v1393
      %v1395 = vrot.slane %v1394, 2
      %v1396 = vadd.f32 %v1394, %v1395
      %v1397 = vrot.slane %v1396, 1
      %v1398 = vadd.f32 %v1396, %v1397
      %v1399 = vsel %vm1377, %v1371, 0.0
      %v1400 = vrot.slane %v1399, 4
      %v1401 = vadd.f32 %v1399, %v1400
      %v1402 = vrot.slane %v1401, 2
      %v1403 = vadd.f32 %v1401, %v1402
      %v1404 = vrot.slane %v1403, 1
      %v1405 = vadd.f32 %v1403, %v1404
      %v1406 = vsel %vm1377, %v1372, 0.0
      %v1407 = vrot.slane %v1406, 4
      %v1408 = vadd.f32 %v1406, %v1407
      %v1409 = vrot.slane %v1408, 2
      %v1410 = vadd.f32 %v1408, %v1409
      %v1411 = vrot.slane %v1410, 1
      %v1412 = vadd.f32 %v1410, %v1411
      %v1413 = vsel %vm1377, %v1373, 0.0
      %v1414 = vrot.slane %v1413, 4
      %v1415 = vadd.f32 %v1413, %v1414
      %v1416 = vrot.slane %v1415, 2
      %v1417 = vadd.f32 %v1415, %v1416
      %v1418 = vrot.slane %v1417, 1
      %v1419 = vadd.f32 %v1417, %v1418
      %v1420 = vsel %vm1377, %v1374, 0.0
      %v1421 = vrot.slane %v1420, 4
      %v1422 = vadd.f32 %v1420, %v1421
      %v1423 = vrot.slane %v1422, 2
      %v1424 = vadd.f32 %v1422, %v1423
      %v1425 = vrot.slane %v1424, 1
      %v1426 = vadd.f32 %v1424, %v1425
      %v1427 = vsel %vm1377, %v1375, 0.0
      %v1428 = vrot.slane %v1427, 4
      %v1429 = vadd.f32 %v1427, %v1428
      %v1430 = vrot.slane %v1429, 2
      %v1431 = vadd.f32 %v1429, %v1430
      %v1432 = vrot.slane %v1431, 1
      %v1433 = vadd.f32 %v1431, %v1432
      %vm1442 = vcmask 1041409
      %v1443 = vsel %vm1442, %v1391, %v1384
      %vm1444 = vcmask 1042434
      %v1445 = vsel %vm1444, %v1398, %v1443
      %vm1446 = vcmask 1043459
      %v1447 = vsel %vm1446, %v1405, %v1445
      %vm1448 = vcmask 1044484
      %v1449 = vsel %vm1448, %v1412, %v1447
      %vm1450 = vcmask 1045509
      %v1451 = vsel %vm1450, %v1419, %v1449
      %vm1452 = vcmask 1046534
      %v1453 = vsel %vm1452, %v1426, %v1451
      %vm1454 = vcmask 1047559
      %v1455 = vsel %vm1454, %v1433, %v1453
      %v1457 = vadd.f32 %v1376, %v1455
      %1458 = vst.msk [vmem:[#allocation2] sm:$0xff] %vm1377, %v1457
      %v1459 = vld [vmem:[%s8] sm:$0xff]
      %v1460 = vld [vmem:[%s8 + $0x8] sm:$0xff]
      %v1461 = vld [vmem:[%s8 + $0x10] sm:$0xff]
      %v1462 = vld [vmem:[%s8 + $0x18] sm:$0xff]
      %v1463 = vld [vmem:[%s9] sm:$0x1]
      %v1465 = vlaneseq
      %v1466 = vshrl.u32 %v1465, 7
      %v1467 = vsub.s32 0, %v1466
      %v1468 = vrot.slane %v1463, %v1467
      %v1471 = vsel %vm1377, %v1368, 0
      %v1474 = vsel %vm1377, %v1369, 0
      %v1477 = vsel %vm1377, %v1370, 0
      %v1480 = vsel %vm1377, %v1371, 0
      %v1483 = vsel %vm1377, %v1372, 0
      %v1486 = vsel %vm1377, %v1373, 0
      %v1489 = vsel %vm1377, %v1374, 0
      %v1492 = vsel %vm1377, %v1375, 0
      %1494 = vmatprep.subr.mxu0 0.0
      %1495 = vmatpush1.msra.mxu0 %v1459
      %1496 = vmatprep.subr.mxu0 0.0
      %1497 = vmatpush1.msra.mxu0 %v1460
      %1498 = vmatprep.subr.mxu0 0.0
      %1499 = vmatpush1.msra.mxu0 %v1461
      %1500 = vmatprep.subr.mxu0 0.0
      %1501 = vmatpush1.msra.mxu0 %v1462
      %1502 = vmatprep.subr.mxu0 0.0
      %1503 = vmatpush1.msra.mxu0 0.0
      %1504 = vmatprep.subr.mxu0 0.0
      %1505 = vmatpush1.msra.mxu0 0.0
      %1506 = vmatprep.subr.mxu0 0.0
      %1507 = vmatpush1.msra.mxu0 0.0
      %1508 = vmatprep.subr.mxu0 0.0
      %1509 = vmatpush1.msra.mxu0 0.0
      %1510 = vmatprep.subr.mxu0 0.0
      %1511 = vmatpush1.msra.mxu0 0.0
      %1512 = vmatprep.subr.mxu0 0.0
      %1513 = vmatpush1.msra.mxu0 0.0
      %1514 = vmatprep.subr.mxu0 0.0
      %1515 = vmatpush1.msra.mxu0 0.0
      %1516 = vmatprep.subr.mxu0 0.0
      %1517 = vmatpush1.msra.mxu0 0.0
      %1518 = vmatprep.subr.mxu0 0.0
      %1519 = vmatpush1.msra.mxu0 0.0
      %1520 = vmatprep.subr.mxu0 0.0
      %1521 = vmatpush1.msra.mxu0 0.0
      %1522 = vmatprep.subr.mxu0 0.0
      %1523 = vmatpush1.msra.mxu0 0.0
      %1524 = vmatprep.subr.mxu0 0.0
      %1525 = vmatpush1.msra.mxu0 0.0
      %1526 = vmatprep.subr.mxu0 0.0
      %1527 = vmatpush1.msra.mxu0 0.0
      %1528 = vmatprep.subr.mxu0 0.0
      %1529 = vmatpush1.msra.mxu0 0.0
      %1530 = vmatprep.subr.mxu0 0.0
      %1531 = vmatpush1.msra.mxu0 0.0
      %1532 = vmatprep.subr.mxu0 0.0
      %1533 = vmatpush1.msra.mxu0 0.0
      %1534 = vmatprep.subr.mxu0 0.0
      %1535 = vmatpush1.msra.mxu0 0.0
      %1536 = vmatprep.subr.mxu0 0.0
      %1537 = vmatpush1.msra.mxu0 0.0
      %1538 = vmatprep.subr.mxu0 0.0
      %1539 = vmatpush1.msra.mxu0 0.0
      %1540 = vmatprep.subr.mxu0 0.0
      %1541 = vmatpush1.msra.mxu0 0.0
      %1542 = vmatprep.subr.mxu0 0.0
      %1543 = vmatpush1.msra.mxu0 0.0
      %1544 = vmatprep.subr.mxu0 0.0
      %1545 = vmatpush1.msra.mxu0 0.0
      %1546 = vmatprep.subr.mxu0 0.0
      %1547 = vmatpush1.msra.mxu0 0.0
      %1548 = vmatprep.subr.mxu0 0.0
      %1549 = vmatpush1.msra.mxu0 0.0
      %1550 = vmatprep.subr.mxu0 0.0
      %1551 = vmatpush1.msra.mxu0 0.0
      %1552 = vmatprep.subr.mxu0 0.0
      %1553 = vmatpush1.msra.mxu0 0.0
      %1554 = vmatprep.subr.mxu0 0.0
      %1555 = vmatpush1.msra.mxu0 0.0
      %1556 = vmatprep.subr.mxu0 0.0
      %1557 = vmatpush1.msra.mxu0 0.0
      %1558 = vmatprep.mubr.f32.mxu0 0.0
      %1559 = vmatmul.mubr.f32.gmra.mrb[0].mxu0 %v1471
      %v1560 = vpop.f32.mrb[0].mxu0
      %v1561 = vadd.f32 %v1468, %v1560
      %v1562 = vpop.f32.mrb[0].mxu0
      %1563 = vmatprep.mubr.f32.mxu0 0.0
      %1564 = vmatmul.mubr.f32.gmra.mrb[0].mxu0 %v1474
      %v1565 = vpop.f32.mrb[0].mxu0
      %v1566 = vadd.f32 %v1468, %v1565
      %v1567 = vpop.f32.mrb[0].mxu0
      %1568 = vmatprep.mubr.f32.mxu0 0.0
      %1569 = vmatmul.mubr.f32.gmra.mrb[0].mxu0 %v1477
      %v1570 = vpop.f32.mrb[0].mxu0
      %v1571 = vadd.f32 %v1468, %v1570
      %v1572 = vpop.f32.mrb[0].mxu0
      %1573 = vmatprep.mubr.f32.mxu0 0.0
      %1574 = vmatmul.mubr.f32.gmra.mrb[0].mxu0 %v1480
      %v1575 = vpop.f32.mrb[0].mxu0
      %v1576 = vadd.f32 %v1468, %v1575
      %v1577 = vpop.f32.mrb[0].mxu0
      %1578 = vmatprep.mubr.f32.mxu0 0.0
      %1579 = vmatmul.mubr.f32.gmra.mrb[0].mxu0 %v1483
      %v1580 = vpop.f32.mrb[0].mxu0
      %v1581 = vadd.f32 %v1468, %v1580
      %v1582 = vpop.f32.mrb[0].mxu0
      %1583 = vmatprep.mubr.f32.mxu0 0.0
      %1584 = vmatmul.mubr.f32.gmra.mrb[0].mxu0 %v1486
      %v1585 = vpop.f32.mrb[0].mxu0
      %v1586 = vadd.f32 %v1468, %v1585
      %v1587 = vpop.f32.mrb[0].mxu0
      %1588 = vmatprep.mubr.f32.mxu0 0.0
      %1589 = vmatmul.mubr.f32.gmra.mrb[0].mxu0 %v1489
      %v1590 = vpop.f32.mrb[0].mxu0
      %v1591 = vadd.f32 %v1468, %v1590
      %v1592 = vpop.f32.mrb[0].mxu0
      %1593 = vmatprep.mubr.f32.mxu0 0.0
      %1594 = vmatmul.mubr.f32.gmra.mrb[0].mxu0 %v1492
      %v1595 = vpop.f32.mrb[0].mxu0
      %v1596 = vadd.f32 %v1468, %v1595
      %v1597 = vpop.f32.mrb[0].mxu0
      %1598 = vdwg.mxu0
      %v1599 = vmul.f32 %v1561, 0.5
      %v1600 = vmul.f32 %v1566, 0.5
      %v1601 = vmul.f32 %v1571, 0.5
      %v1602 = vmul.f32 %v1576, 0.5
      %v1603 = vmul.f32 %v1581, 0.5
      %v1604 = vmul.f32 %v1586, 0.5
      %v1605 = vmul.f32 %v1591, 0.5
      %v1606 = vmul.f32 %v1596, 0.5
      %v1607 = vtanh.pop %v1599
      %v1608 = vtanh.pop %v1600
      %v1609 = vtanh.pop %v1601
      %v1610 = vtanh.pop %v1602
      %v1611 = vtanh.pop %v1603
      %v1612 = vtanh.pop %v1604
      %v1613 = vtanh.pop %v1605
      %v1614 = vtanh.pop %v1606
      %v1615 = vmul.f32 %v1607, 0.5
      %v1616 = vmul.f32 %v1608, 0.5
      %v1617 = vmul.f32 %v1609, 0.5
      %v1618 = vmul.f32 %v1610, 0.5
      %v1619 = vmul.f32 %v1611, 0.5
      %v1620 = vmul.f32 %v1612, 0.5
      %v1621 = vmul.f32 %v1613, 0.5
      %v1622 = vmul.f32 %v1614, 0.5
      %v1623 = vadd.f32 %v1615, 0.5
      %v1624 = vadd.f32 %v1616, 0.5
      %v1625 = vadd.f32 %v1617, 0.5
      %v1626 = vadd.f32 %v1618, 0.5
      %v1627 = vadd.f32 %v1619, 0.5
      %v1628 = vadd.f32 %v1620, 0.5
      %v1629 = vadd.f32 %v1621, 0.5
      %v1630 = vadd.f32 %v1622, 0.5
      %v1631 = vmul.f32 %v1561, %v1623
      %v1632 = vmul.f32 %v1566, %v1624
      %v1633 = vmul.f32 %v1571, %v1625
      %v1634 = vmul.f32 %v1576, %v1626
      %v1635 = vmul.f32 %v1581, %v1627
      %v1636 = vmul.f32 %v1586, %v1628
      %v1637 = vmul.f32 %v1591, %v1629
      %v1638 = vmul.f32 %v1596, %v1630
      %v1639 = vld [vmem:[%s10] sm:$0x1]
      %v1641 = vlaneseq
      %v1642 = vshrl.u32 %v1641, 7
      %v1643 = vsub.s32 0, %v1642
      %v1644 = vrot.slane %v1639, %v1643
      %v1646 = vmul.f32 %v1631, %v1644
      %v1647 = vmul.f32 %v1632, %v1644
      %v1648 = vmul.f32 %v1633, %v1644
      %v1649 = vmul.f32 %v1634, %v1644
      %v1650 = vmul.f32 %v1635, %v1644
      %v1651 = vmul.f32 %v1636, %v1644
      %v1652 = vmul.f32 %v1637, %v1644
      %v1653 = vmul.f32 %v1638, %v1644
      %1654 = vadd.xlane.f32.xlu0 %v1646
      %v1655 = vpop.xlane.xlu0 %1654
      %1656 = vadd.xlane.f32.xlu0 %v1647
      %v1657 = vpop.xlane.xlu0 %1656
      %1658 = vadd.xlane.f32.xlu0 %v1648
      %v1659 = vpop.xlane.xlu0 %1658
      %1660 = vadd.xlane.f32.xlu0 %v1649
      %v1661 = vpop.xlane.xlu0 %1660
      %1662 = vadd.xlane.f32.xlu0 %v1650
      %v1663 = vpop.xlane.xlu0 %1662
      %1664 = vadd.xlane.f32.xlu0 %v1651
      %v1665 = vpop.xlane.xlu0 %1664
      %1666 = vadd.xlane.f32.xlu0 %v1652
      %v1667 = vpop.xlane.xlu0 %1666
      %1668 = vadd.xlane.f32.xlu0 %v1653
      %v1669 = vpop.xlane.xlu0 %1668
      %v1670 = vld [vmem:[#allocation4] sm:$0x1]
      %v1672 = vlaneseq
      %v1673 = vshrl.u32 %v1672, 7
      %v1674 = vsub.s32 0, %v1673
      %v1675 = vrot.slane %v1670, %v1674
      %1676 = vset.pattern.permute.xlu0 0
      %1677 = vperm.xlu0 %1676, %v1675
      %v1678 = vpop.permute.xlu0 %1677
      %v1680 = vadd.f32 %v1655, %v1678
      %v1681 = vadd.f32 %v1657, %v1678
      %v1682 = vadd.f32 %v1659, %v1678
      %v1683 = vadd.f32 %v1661, %v1678
      %v1684 = vadd.f32 %v1663, %v1678
      %v1685 = vadd.f32 %v1665, %v1678
      %v1686 = vadd.f32 %v1667, %v1678
      %v1687 = vadd.f32 %v1669, %v1678
      %v1688 = vmax.f32 %v841, 1e-16
      %v1689 = vrsqrt.pop %v1688
      %v1691 = vlaneseq
      %v1692 = vshrl.u32 %v1691, 7
      %v1693 = vsub.s32 0, %v1692
      %v1694 = vrot.slane %v1689, %v1693
      %1696 = vbcast.lane.b32.xlu0 %v1694, 256
      %v1697 = vpop.permute.xlu0 %1696
      %v1698 = vlaneseq
      %v1699 = vshrl.u32 %v1698, 7
      %v1700 = vsub.s32 1, %v1699
      %v1701 = vrot.slane %v1689, %v1700
      %1703 = vbcast.lane.b32.xlu0 %v1701, 256
      %v1704 = vpop.permute.xlu0 %1703
      %v1705 = vlaneseq
      %v1706 = vshrl.u32 %v1705, 7
      %v1707 = vsub.s32 2, %v1706
      %v1708 = vrot.slane %v1689, %v1707
      %1710 = vbcast.lane.b32.xlu0 %v1708, 256
      %v1711 = vpop.permute.xlu0 %1710
      %v1712 = vlaneseq
      %v1713 = vshrl.u32 %v1712, 7
      %v1714 = vsub.s32 3, %v1713
      %v1715 = vrot.slane %v1689, %v1714
      %1717 = vbcast.lane.b32.xlu0 %v1715, 256
      %v1718 = vpop.permute.xlu0 %1717
      %v1719 = vlaneseq
      %v1720 = vshrl.u32 %v1719, 7
      %v1721 = vsub.s32 4, %v1720
      %v1722 = vrot.slane %v1689, %v1721
      %1724 = vbcast.lane.b32.xlu0 %v1722, 256
      %v1725 = vpop.permute.xlu0 %1724
      %v1726 = vlaneseq
      %v1727 = vshrl.u32 %v1726, 7
      %v1728 = vsub.s32 5, %v1727
      %v1729 = vrot.slane %v1689, %v1728
      %1731 = vbcast.lane.b32.xlu0 %v1729, 256
      %v1732 = vpop.permute.xlu0 %1731
      %v1733 = vlaneseq
      %v1734 = vshrl.u32 %v1733, 7
      %v1735 = vsub.s32 6, %v1734
      %v1736 = vrot.slane %v1689, %v1735
      %1738 = vbcast.lane.b32.xlu0 %v1736, 256
      %v1739 = vpop.permute.xlu0 %1738
      %v1740 = vlaneseq
      %v1741 = vshrl.u32 %v1740, 7
      %v1742 = vsub.s32 7, %v1741
      %v1743 = vrot.slane %v1689, %v1742
      %1745 = vbcast.lane.b32.xlu0 %v1743, 256
      %v1746 = vpop.permute.xlu0 %1745
      %v1755 = vmul.f32 %v1680, %v1697
      %v1756 = vmul.f32 %v1681, %v1704
      %v1757 = vmul.f32 %v1682, %v1711
      %v1758 = vmul.f32 %v1683, %v1718
      %v1759 = vmul.f32 %v1684, %v1725
      %v1760 = vmul.f32 %v1685, %v1732
      %v1761 = vmul.f32 %v1686, %v1739
      %v1762 = vmul.f32 %v1687, %v1746
      %v1763 = vld [vmem:[#allocation3] sm:$0xff]
      %v1765 = vlaneseq
      %v1766 = vshrl.u32 %v1765, 7
      %v1767 = vsub.s32 0, %v1766
      %v1768 = vrot.slane %v818, %v1767
      %1770 = vbcast.lane.b32.xlu0 %v1768, 256
      %v1771 = vpop.permute.xlu0 %1770
      %v1772 = vlaneseq
      %v1773 = vshrl.u32 %v1772, 7
      %v1774 = vsub.s32 1, %v1773
      %v1775 = vrot.slane %v818, %v1774
      %1777 = vbcast.lane.b32.xlu0 %v1775, 256
      %v1778 = vpop.permute.xlu0 %1777
      %v1779 = vlaneseq
      %v1780 = vshrl.u32 %v1779, 7
      %v1781 = vsub.s32 2, %v1780
      %v1782 = vrot.slane %v818, %v1781
      %1784 = vbcast.lane.b32.xlu0 %v1782, 256
      %v1785 = vpop.permute.xlu0 %1784
      %v1786 = vlaneseq
      %v1787 = vshrl.u32 %v1786, 7
      %v1788 = vsub.s32 3, %v1787
      %v1789 = vrot.slane %v818, %v1788
      %1791 = vbcast.lane.b32.xlu0 %v1789, 256
      %v1792 = vpop.permute.xlu0 %1791
      %v1793 = vlaneseq
      %v1794 = vshrl.u32 %v1793, 7
      %v1795 = vsub.s32 4, %v1794
      %v1796 = vrot.slane %v818, %v1795
      %1798 = vbcast.lane.b32.xlu0 %v1796, 256
      %v1799 = vpop.permute.xlu0 %1798
      %v1800 = vlaneseq
      %v1801 = vshrl.u32 %v1800, 7
      %v1802 = vsub.s32 5, %v1801
      %v1803 = vrot.slane %v818, %v1802
      %1805 = vbcast.lane.b32.xlu0 %v1803, 256
      %v1806 = vpop.permute.xlu0 %1805
      %v1807 = vlaneseq
      %v1808 = vshrl.u32 %v1807, 7
      %v1809 = vsub.s32 6, %v1808
      %v1810 = vrot.slane %v818, %v1809
      %1812 = vbcast.lane.b32.xlu0 %v1810, 256
      %v1813 = vpop.permute.xlu0 %1812
      %v1814 = vlaneseq
      %v1815 = vshrl.u32 %v1814, 7
      %v1816 = vsub.s32 7, %v1815
      %v1817 = vrot.slane %v818, %v1816
      %1819 = vbcast.lane.b32.xlu0 %v1817, 256
      %v1820 = vpop.permute.xlu0 %1819
      %v1829 = vmul.f32 %v1755, %v1771
      %v1830 = vmul.f32 %v1756, %v1778
      %v1831 = vmul.f32 %v1757, %v1785
      %v1832 = vmul.f32 %v1758, %v1792
      %v1833 = vmul.f32 %v1759, %v1799
      %v1834 = vmul.f32 %v1760, %v1806
      %v1835 = vmul.f32 %v1761, %v1813
      %v1836 = vmul.f32 %v1762, %v1820
      %1845 = vset.pattern.permute.xlu0 0
      %1846 = vperm.xlu0 %1845, %v1829
      %v1847 = vpop.permute.xlu0 %1846
      %1848 = vset.pattern.permute.xlu0 0
      %1849 = vperm.xlu0 %1848, %v1830
      %v1850 = vpop.permute.xlu0 %1849
      %1851 = vset.pattern.permute.xlu0 0
      %1852 = vperm.xlu0 %1851, %v1831
      %v1853 = vpop.permute.xlu0 %1852
      %1854 = vset.pattern.permute.xlu0 0
      %1855 = vperm.xlu0 %1854, %v1832
      %v1856 = vpop.permute.xlu0 %1855
      %1857 = vset.pattern.permute.xlu0 0
      %1858 = vperm.xlu0 %1857, %v1833
      %v1859 = vpop.permute.xlu0 %1858
      %1860 = vset.pattern.permute.xlu0 0
      %1861 = vperm.xlu0 %1860, %v1834
      %v1862 = vpop.permute.xlu0 %1861
      %1863 = vset.pattern.permute.xlu0 0
      %1864 = vperm.xlu0 %1863, %v1835
      %v1865 = vpop.permute.xlu0 %1864
      %1866 = vset.pattern.permute.xlu0 0
      %1867 = vperm.xlu0 %1866, %v1836
      %v1868 = vpop.permute.xlu0 %1867
      %v1869 = vlaneseq
      %v1870 = vand.u32 %v1869, 127
      %v1871 = vlaneseq
      %v1872 = vshrl.u32 %v1871, 7
      %v1873 = vsub.s32 %v1870, %v1872
      %v1874 = vrot.slane %v1847, %v1873
      %v1875 = vlaneseq
      %v1876 = vshrl.u32 %v1875, 7
      %v1877 = vsub.s32 %v1870, %v1876
      %v1878 = vrot.slane %v1850, %v1877
      %v1879 = vlaneseq
      %v1880 = vshrl.u32 %v1879, 7
      %v1881 = vsub.s32 %v1870, %v1880
      %v1882 = vrot.slane %v1853, %v1881
      %v1883 = vlaneseq
      %v1884 = vshrl.u32 %v1883, 7
      %v1885 = vsub.s32 %v1870, %v1884
      %v1886 = vrot.slane %v1856, %v1885
      %v1887 = vlaneseq
      %v1888 = vshrl.u32 %v1887, 7
      %v1889 = vsub.s32 %v1870, %v1888
      %v1890 = vrot.slane %v1859, %v1889
      %v1891 = vlaneseq
      %v1892 = vshrl.u32 %v1891, 7
      %v1893 = vsub.s32 %v1870, %v1892
      %v1894 = vrot.slane %v1862, %v1893
      %v1895 = vlaneseq
      %v1896 = vshrl.u32 %v1895, 7
      %v1897 = vsub.s32 %v1870, %v1896
      %v1898 = vrot.slane %v1865, %v1897
      %v1899 = vlaneseq
      %v1900 = vshrl.u32 %v1899, 7
      %v1901 = vsub.s32 %v1870, %v1900
      %v1902 = vrot.slane %v1868, %v1901
      %v1903 = vsel %vm1442, %v1878, %v1874
      %v1904 = vsel %vm1444, %v1882, %v1903
      %v1905 = vsel %vm1446, %v1886, %v1904
      %v1906 = vsel %vm1448, %v1890, %v1905
      %v1907 = vsel %vm1450, %v1894, %v1906
      %v1908 = vsel %vm1452, %v1898, %v1907
      %v1909 = vsel %vm1454, %v1902, %v1908
      %vm1911 = vcmask 64512
      %v1912 = vsel %vm1911, %v1909, 0.0
      %1913 = vadd.xlane.f32.xlu0 %v1912
      %v1914 = vpop.xlane.xlu0 %1913
      %v1916 = vlaneseq
      %v1917 = vshrl.u32 %v1916, 7
      %v1918 = vsub.s32 0, %v1917
      %v1919 = vrot.slane %v827, %v1918
      %1921 = vbcast.lane.b32.xlu0 %v1919, 256
      %v1922 = vpop.permute.xlu0 %1921
      %v1923 = vlaneseq
      %v1924 = vshrl.u32 %v1923, 7
      %v1925 = vsub.s32 1, %v1924
      %v1926 = vrot.slane %v827, %v1925
      %1928 = vbcast.lane.b32.xlu0 %v1926, 256
      %v1929 = vpop.permute.xlu0 %1928
      %v1930 = vlaneseq
      %v1931 = vshrl.u32 %v1930, 7
      %v1932 = vsub.s32 2, %v1931
      %v1933 = vrot.slane %v827, %v1932
      %1935 = vbcast.lane.b32.xlu0 %v1933, 256
      %v1936 = vpop.permute.xlu0 %1935
      %v1937 = vlaneseq
      %v1938 = vshrl.u32 %v1937, 7
      %v1939 = vsub.s32 3, %v1938
      %v1940 = vrot.slane %v827, %v1939
      %1942 = vbcast.lane.b32.xlu0 %v1940, 256
      %v1943 = vpop.permute.xlu0 %1942
      %v1944 = vlaneseq
      %v1945 = vshrl.u32 %v1944, 7
      %v1946 = vsub.s32 4, %v1945
      %v1947 = vrot.slane %v827, %v1946
      %1949 = vbcast.lane.b32.xlu0 %v1947, 256
      %v1950 = vpop.permute.xlu0 %1949
      %v1951 = vlaneseq
      %v1952 = vshrl.u32 %v1951, 7
      %v1953 = vsub.s32 5, %v1952
      %v1954 = vrot.slane %v827, %v1953
      %1956 = vbcast.lane.b32.xlu0 %v1954, 256
      %v1957 = vpop.permute.xlu0 %1956
      %v1958 = vlaneseq
      %v1959 = vshrl.u32 %v1958, 7
      %v1960 = vsub.s32 6, %v1959
      %v1961 = vrot.slane %v827, %v1960
      %1963 = vbcast.lane.b32.xlu0 %v1961, 256
      %v1964 = vpop.permute.xlu0 %1963
      %v1965 = vlaneseq
      %v1966 = vshrl.u32 %v1965, 7
      %v1967 = vsub.s32 7, %v1966
      %v1968 = vrot.slane %v827, %v1967
      %1970 = vbcast.lane.b32.xlu0 %v1968, 256
      %v1971 = vpop.permute.xlu0 %1970
      %v1980 = vmul.f32 %v1755, %v1922
      %v1981 = vmul.f32 %v1756, %v1929
      %v1982 = vmul.f32 %v1757, %v1936
      %v1983 = vmul.f32 %v1758, %v1943
      %v1984 = vmul.f32 %v1759, %v1950
      %v1985 = vmul.f32 %v1760, %v1957
      %v1986 = vmul.f32 %v1761, %v1964
      %v1987 = vmul.f32 %v1762, %v1971
      %1996 = vset.pattern.permute.xlu0 0
      %1997 = vperm.xlu0 %1996, %v1980
      %v1998 = vpop.permute.xlu0 %1997
      %1999 = vset.pattern.permute.xlu0 0
      %2000 = vperm.xlu0 %1999, %v1981
      %v2001 = vpop.permute.xlu0 %2000
      %2002 = vset.pattern.permute.xlu0 0
      %2003 = vperm.xlu0 %2002, %v1982
      %v2004 = vpop.permute.xlu0 %2003
      %2005 = vset.pattern.permute.xlu0 0
      %2006 = vperm.xlu0 %2005, %v1983
      %v2007 = vpop.permute.xlu0 %2006
      %2008 = vset.pattern.permute.xlu0 0
      %2009 = vperm.xlu0 %2008, %v1984
      %v2010 = vpop.permute.xlu0 %2009
      %2011 = vset.pattern.permute.xlu0 0
      %2012 = vperm.xlu0 %2011, %v1985
      %v2013 = vpop.permute.xlu0 %2012
      %2014 = vset.pattern.permute.xlu0 0
      %2015 = vperm.xlu0 %2014, %v1986
      %v2016 = vpop.permute.xlu0 %2015
      %2017 = vset.pattern.permute.xlu0 0
      %2018 = vperm.xlu0 %2017, %v1987
      %v2019 = vpop.permute.xlu0 %2018
      %v2020 = vlaneseq
      %v2021 = vshrl.u32 %v2020, 7
      %v2022 = vsub.s32 %v1870, %v2021
      %v2023 = vrot.slane %v1998, %v2022
      %v2024 = vlaneseq
      %v2025 = vshrl.u32 %v2024, 7
      %v2026 = vsub.s32 %v1870, %v2025
      %v2027 = vrot.slane %v2001, %v2026
      %v2028 = vlaneseq
      %v2029 = vshrl.u32 %v2028, 7
      %v2030 = vsub.s32 %v1870, %v2029
      %v2031 = vrot.slane %v2004, %v2030
      %v2032 = vlaneseq
      %v2033 = vshrl.u32 %v2032, 7
      %v2034 = vsub.s32 %v1870, %v2033
      %v2035 = vrot.slane %v2007, %v2034
      %v2036 = vlaneseq
      %v2037 = vshrl.u32 %v2036, 7
      %v2038 = vsub.s32 %v1870, %v2037
      %v2039 = vrot.slane %v2010, %v2038
      %v2040 = vlaneseq
      %v2041 = vshrl.u32 %v2040, 7
      %v2042 = vsub.s32 %v1870, %v2041
      %v2043 = vrot.slane %v2013, %v2042
      %v2044 = vlaneseq
      %v2045 = vshrl.u32 %v2044, 7
      %v2046 = vsub.s32 %v1870, %v2045
      %v2047 = vrot.slane %v2016, %v2046
      %v2048 = vlaneseq
      %v2049 = vshrl.u32 %v2048, 7
      %v2050 = vsub.s32 %v1870, %v2049
      %v2051 = vrot.slane %v2019, %v2050
      %v2052 = vsel %vm1442, %v2027, %v2023
      %v2053 = vsel %vm1444, %v2031, %v2052
      %v2054 = vsel %vm1446, %v2035, %v2053
      %v2055 = vsel %vm1448, %v2039, %v2054
      %v2056 = vsel %vm1450, %v2043, %v2055
      %v2057 = vsel %vm1452, %v2047, %v2056
      %v2058 = vsel %vm1454, %v2051, %v2057
      %v2060 = vsel %vm1911, %v2058, 0.0
      %2061 = vadd.xlane.f32.xlu0 %v2060
      %v2062 = vpop.xlane.xlu0 %2061
      %v2064 = vlaneseq
      %v2065 = vshrl.u32 %v2064, 7
      %v2066 = vsub.s32 0, %v2065
      %v2067 = vrot.slane %v836, %v2066
      %2069 = vbcast.lane.b32.xlu0 %v2067, 256
      %v2070 = vpop.permute.xlu0 %2069
      %v2071 = vlaneseq
      %v2072 = vshrl.u32 %v2071, 7
      %v2073 = vsub.s32 1, %v2072
      %v2074 = vrot.slane %v836, %v2073
      %2076 = vbcast.lane.b32.xlu0 %v2074, 256
      %v2077 = vpop.permute.xlu0 %2076
      %v2078 = vlaneseq
      %v2079 = vshrl.u32 %v2078, 7
      %v2080 = vsub.s32 2, %v2079
      %v2081 = vrot.slane %v836, %v2080
      %2083 = vbcast.lane.b32.xlu0 %v2081, 256
      %v2084 = vpop.permute.xlu0 %2083
      %v2085 = vlaneseq
      %v2086 = vshrl.u32 %v2085, 7
      %v2087 = vsub.s32 3, %v2086
      %v2088 = vrot.slane %v836, %v2087
      %2090 = vbcast.lane.b32.xlu0 %v2088, 256
      %v2091 = vpop.permute.xlu0 %2090
      %v2092 = vlaneseq
      %v2093 = vshrl.u32 %v2092, 7
      %v2094 = vsub.s32 4, %v2093
      %v2095 = vrot.slane %v836, %v2094
      %2097 = vbcast.lane.b32.xlu0 %v2095, 256
      %v2098 = vpop.permute.xlu0 %2097
      %v2099 = vlaneseq
      %v2100 = vshrl.u32 %v2099, 7
      %v2101 = vsub.s32 5, %v2100
      %v2102 = vrot.slane %v836, %v2101
      %2104 = vbcast.lane.b32.xlu0 %v2102, 256
      %v2105 = vpop.permute.xlu0 %2104
      %v2106 = vlaneseq
      %v2107 = vshrl.u32 %v2106, 7
      %v2108 = vsub.s32 6, %v2107
      %v2109 = vrot.slane %v836, %v2108
      %2111 = vbcast.lane.b32.xlu0 %v2109, 256
      %v2112 = vpop.permute.xlu0 %2111
      %v2113 = vlaneseq
      %v2114 = vshrl.u32 %v2113, 7
      %v2115 = vsub.s32 7, %v2114
      %v2116 = vrot.slane %v836, %v2115
      %2118 = vbcast.lane.b32.xlu0 %v2116, 256
      %v2119 = vpop.permute.xlu0 %2118
      %v2128 = vmul.f32 %v1755, %v2070
      %v2129 = vmul.f32 %v1756, %v2077
      %v2130 = vmul.f32 %v1757, %v2084
      %v2131 = vmul.f32 %v1758, %v2091
      %v2132 = vmul.f32 %v1759, %v2098
      %v2133 = vmul.f32 %v1760, %v2105
      %v2134 = vmul.f32 %v1761, %v2112
      %v2135 = vmul.f32 %v1762, %v2119
      %2144 = vset.pattern.permute.xlu0 0
      %2145 = vperm.xlu0 %2144, %v2128
      %v2146 = vpop.permute.xlu0 %2145
      %2147 = vset.pattern.permute.xlu0 0
      %2148 = vperm.xlu0 %2147, %v2129
      %v2149 = vpop.permute.xlu0 %2148
      %2150 = vset.pattern.permute.xlu0 0
      %2151 = vperm.xlu0 %2150, %v2130
      %v2152 = vpop.permute.xlu0 %2151
      %2153 = vset.pattern.permute.xlu0 0
      %2154 = vperm.xlu0 %2153, %v2131
      %v2155 = vpop.permute.xlu0 %2154
      %2156 = vset.pattern.permute.xlu0 0
      %2157 = vperm.xlu0 %2156, %v2132
      %v2158 = vpop.permute.xlu0 %2157
      %2159 = vset.pattern.permute.xlu0 0
      %2160 = vperm.xlu0 %2159, %v2133
      %v2161 = vpop.permute.xlu0 %2160
      %2162 = vset.pattern.permute.xlu0 0
      %2163 = vperm.xlu0 %2162, %v2134
      %v2164 = vpop.permute.xlu0 %2163
      %2165 = vset.pattern.permute.xlu0 0
      %2166 = vperm.xlu0 %2165, %v2135
      %v2167 = vpop.permute.xlu0 %2166
      %v2168 = vlaneseq
      %v2169 = vshrl.u32 %v2168, 7
      %v2170 = vsub.s32 %v1870, %v2169
      %v2171 = vrot.slane %v2146, %v2170
      %v2172 = vlaneseq
      %v2173 = vshrl.u32 %v2172, 7
      %v2174 = vsub.s32 %v1870, %v2173
      %v2175 = vrot.slane %v2149, %v2174
      %v2176 = vlaneseq
      %v2177 = vshrl.u32 %v2176, 7
      %v2178 = vsub.s32 %v1870, %v2177
      %v2179 = vrot.slane %v2152, %v2178
      %v2180 = vlaneseq
      %v2181 = vshrl.u32 %v2180, 7
      %v2182 = vsub.s32 %v1870, %v2181
      %v2183 = vrot.slane %v2155, %v2182
      %v2184 = vlaneseq
      %v2185 = vshrl.u32 %v2184, 7
      %v2186 = vsub.s32 %v1870, %v2185
      %v2187 = vrot.slane %v2158, %v2186
      %v2188 = vlaneseq
      %v2189 = vshrl.u32 %v2188, 7
      %v2190 = vsub.s32 %v1870, %v2189
      %v2191 = vrot.slane %v2161, %v2190
      %v2192 = vlaneseq
      %v2193 = vshrl.u32 %v2192, 7
      %v2194 = vsub.s32 %v1870, %v2193
      %v2195 = vrot.slane %v2164, %v2194
      %v2196 = vlaneseq
      %v2197 = vshrl.u32 %v2196, 7
      %v2198 = vsub.s32 %v1870, %v2197
      %v2199 = vrot.slane %v2167, %v2198
      %v2200 = vsel %vm1442, %v2175, %v2171
      %v2201 = vsel %vm1444, %v2179, %v2200
      %v2202 = vsel %vm1446, %v2183, %v2201
      %v2203 = vsel %vm1448, %v2187, %v2202
      %v2204 = vsel %vm1450, %v2191, %v2203
      %v2205 = vsel %vm1452, %v2195, %v2204
      %v2206 = vsel %vm1454, %v2199, %v2205
      %v2208 = vsel %vm1911, %v2206, 0.0
      %2209 = vadd.xlane.f32.xlu0 %v2208
      %v2210 = vpop.xlane.xlu0 %2209
      %vm2211 = vcmask 7168
      %v2212 = vsel %vm2211, %v1914, %v2062
      %vm2213 = vcmask 15360
      %v2214 = vsel %vm2213, %v2212, %v2210
      %v2215 = vadd.f32 %v1763, %v2214
      %vm2216 = vcmask 23552
      %2217 = vst.msk [vmem:[#allocation3] sm:$0xff] %vm2216, %v2215
      %p2218 = scmp.eq.s32.totalorder %s39, 1
      // Predicated region
      $region93: #{res_egnn_pallas.4} parent=87 // pred_check
        %p2219 = pneg %p2218
      $region94: #{res_egnn_pallas.4} parent=87 // pred_check_branch
        %2221 = sbr.rel (%p2219) target = $region96
      $region95: #{res_egnn_pallas.4} parent=87 // pred_region
        %v2222 = vld [vmem:[%s716] sm:$0xff]
        %v2223 = vld [vmem:[%s12] sm:$0xff]
        %v2224 = vld [vmem:[%s12 + $0x8] sm:$0xff]
        %v2225 = vld [vmem:[%s12 + $0x10] sm:$0xff]
        %v2226 = vld [vmem:[%s12 + $0x18] sm:$0xff]
        %v2227 = vld [vmem:[%s12 + $0x20] sm:$0xff]
        %v2228 = vld [vmem:[%s12 + $0x28] sm:$0x1]
        %v2229 = vld [vmem:[#allocation2] sm:$0xff]
        %v2230 = vld [vmem:[%s13] sm:$0xff]
        %v2231 = vld [vmem:[%s13 + $0x8] sm:$0xff]
        %v2232 = vld [vmem:[%s13 + $0x10] sm:$0xff]
        %v2233 = vld [vmem:[%s13 + $0x18] sm:$0xff]
        %v2235 = vsel %vm1377, %v2229, 0
        %2237 = vmatprep.subr.mxu0 0.0
        %2238 = vmatpush1.msra.mxu0 %v2230
        %2239 = vmatprep.subr.mxu0 0.0
        %2240 = vmatpush1.msra.mxu0 %v2231
        %2241 = vmatprep.subr.mxu0 0.0
        %2242 = vmatpush1.msra.mxu0 %v2232
        %2243 = vmatprep.subr.mxu0 0.0
        %2244 = vmatpush1.msra.mxu0 %v2233
        %2245 = vmatprep.subr.mxu0 0.0
        %2246 = vmatpush1.msra.mxu0 0.0
        %2247 = vmatprep.subr.mxu0 0.0
        %2248 = vmatpush1.msra.mxu0 0.0
        %2249 = vmatprep.subr.mxu0 0.0
        %2250 = vmatpush1.msra.mxu0 0.0
        %2251 = vmatprep.subr.mxu0 0.0
        %2252 = vmatpush1.msra.mxu0 0.0
        %2253 = vmatprep.subr.mxu0 0.0
        %2254 = vmatpush1.msra.mxu0 0.0
        %2255 = vmatprep.subr.mxu0 0.0
        %2256 = vmatpush1.msra.mxu0 0.0
        %2257 = vmatprep.subr.mxu0 0.0
        %2258 = vmatpush1.msra.mxu0 0.0
        %2259 = vmatprep.subr.mxu0 0.0
        %2260 = vmatpush1.msra.mxu0 0.0
        %2261 = vmatprep.subr.mxu0 0.0
        %2262 = vmatpush1.msra.mxu0 0.0
        %2263 = vmatprep.subr.mxu0 0.0
        %2264 = vmatpush1.msra.mxu0 0.0
        %2265 = vmatprep.subr.mxu0 0.0
        %2266 = vmatpush1.msra.mxu0 0.0
        %2267 = vmatprep.subr.mxu0 0.0
        %2268 = vmatpush1.msra.mxu0 0.0
        %2269 = vmatprep.subr.mxu0 0.0
        %2270 = vmatpush1.msra.mxu0 0.0
        %2271 = vmatprep.subr.mxu0 0.0
        %2272 = vmatpush1.msra.mxu0 0.0
        %2273 = vmatprep.subr.mxu0 0.0
        %2274 = vmatpush1.msra.mxu0 0.0
        %2275 = vmatprep.subr.mxu0 0.0
        %2276 = vmatpush1.msra.mxu0 0.0
        %2277 = vmatprep.subr.mxu0 0.0
        %2278 = vmatpush1.msra.mxu0 0.0
        %2279 = vmatprep.subr.mxu0 0.0
        %2280 = vmatpush1.msra.mxu0 0.0
        %2281 = vmatprep.subr.mxu0 0.0
        %2282 = vmatpush1.msra.mxu0 0.0
        %2283 = vmatprep.subr.mxu0 0.0
        %2284 = vmatpush1.msra.mxu0 0.0
        %2285 = vmatprep.subr.mxu0 0.0
        %2286 = vmatpush1.msra.mxu0 0.0
        %2287 = vmatprep.subr.mxu0 0.0
        %2288 = vmatpush1.msra.mxu0 0.0
        %2289 = vmatprep.subr.mxu0 0.0
        %2290 = vmatpush1.msra.mxu0 0.0
        %2291 = vmatprep.subr.mxu0 0.0
        %2292 = vmatpush1.msra.mxu0 0.0
        %2293 = vmatprep.subr.mxu0 0.0
        %2294 = vmatpush1.msra.mxu0 0.0
        %2295 = vmatprep.subr.mxu0 0.0
        %2296 = vmatpush1.msra.mxu0 0.0
        %2297 = vmatprep.subr.mxu0 0.0
        %2298 = vmatpush1.msra.mxu0 0.0
        %2299 = vmatprep.subr.mxu0 0.0
        %2300 = vmatpush1.msra.mxu0 0.0
        %2301 = vmatprep.mubr.f32.mxu0 0.0
        %2302 = vmatmul.mubr.f32.gmra.mrb[0].mxu0 %v2235
        %v2303 = vpop.f32.mrb[0].mxu0
        %v2304 = vadd.f32 0.0, %v2303
        %v2305 = vpop.f32.mrb[0].mxu0
        %2306 = vdwg.mxu0
        %vm2307 = vcmask 334848
        %v2309 = vsel %vm2307, %v2222, 0
        %vm2311 = vcmask 1040384
        %v2313 = vsel %vm2311, %v2228, 0
        %2315 = vmatprep.subr.mxu0 0.0
        %2316 = vmatpush1.msra.mxu0 %v2223
        %2317 = vmatprep.subr.mxu0 0.0
        %2318 = vmatpush1.msra.mxu0 %v2224
        %2319 = vmatprep.subr.mxu0 0.0
        %2320 = vmatpush1.msra.mxu0 %v2225
        %2321 = vmatprep.subr.mxu0 0.0
        %2322 = vmatpush1.msra.mxu0 %v2226
        %2323 = vmatprep.subr.mxu0 0.0
        %2324 = vmatpush1.msra.mxu0 %v2227
        %2325 = vmatprep.subr.mxu0 0.0
        %2326 = vmatpush1.msra.mxu0 %v2313
        %2327 = vmatprep.subr.mxu0 0.0
        %2328 = vmatpush1.msra.mxu0 0.0
        %2329 = vmatprep.subr.mxu0 0.0
        %2330 = vmatpush1.msra.mxu0 0.0
        %2331 = vmatprep.subr.mxu0 0.0
        %2332 = vmatpush1.msra.mxu0 0.0
        %2333 = vmatprep.subr.mxu0 0.0
        %2334 = vmatpush1.msra.mxu0 0.0
        %2335 = vmatprep.subr.mxu0 0.0
        %2336 = vmatpush1.msra.mxu0 0.0
        %2337 = vmatprep.subr.mxu0 0.0
        %2338 = vmatpush1.msra.mxu0 0.0
        %2339 = vmatprep.subr.mxu0 0.0
        %2340 = vmatpush1.msra.mxu0 0.0
        %2341 = vmatprep.subr.mxu0 0.0
        %2342 = vmatpush1.msra.mxu0 0.0
        %2343 = vmatprep.subr.mxu0 0.0
        %2344 = vmatpush1.msra.mxu0 0.0
        %2345 = vmatprep.subr.mxu0 0.0
        %2346 = vmatpush1.msra.mxu0 0.0
        %2347 = vmatprep.subr.mxu0 0.0
        %2348 = vmatpush1.msra.mxu0 0.0
        %2349 = vmatprep.subr.mxu0 0.0
        %2350 = vmatpush1.msra.mxu0 0.0
        %2351 = vmatprep.subr.mxu0 0.0
        %2352 = vmatpush1.msra.mxu0 0.0
        %2353 = vmatprep.subr.mxu0 0.0
        %2354 = vmatpush1.msra.mxu0 0.0
        %2355 = vmatprep.subr.mxu0 0.0
        %2356 = vmatpush1.msra.mxu0 0.0
        %2357 = vmatprep.subr.mxu0 0.0
        %2358 = vmatpush1.msra.mxu0 0.0
        %2359 = vmatprep.subr.mxu0 0.0
        %2360 = vmatpush1.msra.mxu0 0.0
        %2361 = vmatprep.subr.mxu0 0.0
        %2362 = vmatpush1.msra.mxu0 0.0
        %2363 = vmatprep.subr.mxu0 0.0
        %2364 = vmatpush1.msra.mxu0 0.0
        %2365 = vmatprep.subr.mxu0 0.0
        %2366 = vmatpush1.msra.mxu0 0.0
        %2367 = vmatprep.subr.mxu0 0.0
        %2368 = vmatpush1.msra.mxu0 0.0
        %2369 = vmatprep.subr.mxu0 0.0
        %2370 = vmatpush1.msra.mxu0 0.0
        %2371 = vmatprep.subr.mxu0 0.0
        %2372 = vmatpush1.msra.mxu0 0.0
        %2373 = vmatprep.subr.mxu0 0.0
        %2374 = vmatpush1.msra.mxu0 0.0
        %2375 = vmatprep.subr.mxu0 0.0
        %2376 = vmatpush1.msra.mxu0 0.0
        %2377 = vmatprep.subr.mxu0 0.0
        %2378 = vmatpush1.msra.mxu0 0.0
        %2379 = vmatprep.mubr.f32.mxu0 0.0
        %2380 = vmatmul.mubr.f32.gmra.mrb[0].mxu0 %v2309
        %v2381 = vpop.f32.mrb[0].mxu0
        %v2382 = vadd.f32 %v2304, %v2381
        %v2383 = vpop.f32.mrb[0].mxu0
        %2384 = vdwg.mxu0
        %v2385 = vld [vmem:[%s14] sm:$0x1]
        %v2387 = vlaneseq
        %v2388 = vshrl.u32 %v2387, 7
        %v2389 = vsub.s32 0, %v2388
        %v2390 = vrot.slane %v2385, %v2389
        %v2392 = vadd.f32 %v2382, %v2390
        %v2393 = vmul.f32 %v2392, 0.5
        %v2394 = vtanh.pop %v2393
        %v2395 = vmul.f32 %v2394, 0.5
        %v2396 = vadd.f32 %v2395, 0.5
        %v2397 = vmul.f32 %v2392, %v2396
        %v2398 = vld [vmem:[%s15] sm:$0xff]
        %v2399 = vld [vmem:[%s15 + $0x8] sm:$0xff]
        %v2400 = vld [vmem:[%s15 + $0x10] sm:$0xff]
        %v2401 = vld [vmem:[%s15 + $0x18] sm:$0xff]
        %v2402 = vld [vmem:[%s15 + $0x20] sm:$0xff]
        %v2403 = vld [vmem:[%s15 + $0x28] sm:$0xff]
        %v2404 = vld [vmem:[%s15 + $0x30] sm:$0xff]
        %v2405 = vld [vmem:[%s15 + $0x38] sm:$0xff]
        %v2406 = vld [vmem:[%s15 + $0x40] sm:$0xff]
        %v2407 = vld [vmem:[%s15 + $0x48] sm:$0xff]
        %v2408 = vld [vmem:[%s15 + $0x50] sm:$0x3]
        %v2409 = vld [vmem:[%s16] sm:$0x1]
        %v2411 = vlaneseq
        %v2412 = vshrl.u32 %v2411, 7
        %v2413 = vsub.s32 0, %v2412
        %v2414 = vrot.slane %v2409, %v2413
        %vm2416 = vcmask 670720
        %v2418 = vsel %vm2416, %v2397, 0
        %vm2420 = vcmask 1041408
        %v2422 = vsel %vm2420, %v2408, 0
        %2424 = vmatprep.subr.mxu0 0.0
        %2425 = vmatpush1.msra.mxu0 %v2398
        %2426 = vmatprep.subr.mxu0 0.0
        %2427 = vmatpush1.msra.mxu0 %v2399
        %2428 = vmatprep.subr.mxu0 0.0
        %2429 = vmatpush1.msra.mxu0 %v2400
        %2430 = vmatprep.subr.mxu0 0.0
        %2431 = vmatpush1.msra.mxu0 %v2401
        %2432 = vmatprep.subr.mxu0 0.0
        %2433 = vmatpush1.msra.mxu0 %v2402
        %2434 = vmatprep.subr.mxu0 0.0
        %2435 = vmatpush1.msra.mxu0 %v2403
        %2436 = vmatprep.subr.mxu0 0.0
        %2437 = vmatpush1.msra.mxu0 %v2404
        %2438 = vmatprep.subr.mxu0 0.0
        %2439 = vmatpush1.msra.mxu0 %v2405
        %2440 = vmatprep.subr.mxu0 0.0
        %2441 = vmatpush1.msra.mxu0 %v2406
        %2442 = vmatprep.subr.mxu0 0.0
        %2443 = vmatpush1.msra.mxu0 %v2407
        %2444 = vmatprep.subr.mxu0 0.0
        %2445 = vmatpush1.msra.mxu0 %v2422
        %2446 = vmatprep.subr.mxu0 0.0
        %2447 = vmatpush1.msra.mxu0 0.0
        %2448 = vmatprep.subr.mxu0 0.0
        %2449 = vmatpush1.msra.mxu0 0.0
        %2450 = vmatprep.subr.mxu0 0.0
        %2451 = vmatpush1.msra.mxu0 0.0
        %2452 = vmatprep.subr.mxu0 0.0
        %2453 = vmatpush1.msra.mxu0 0.0
        %2454 = vmatprep.subr.mxu0 0.0
        %2455 = vmatpush1.msra.mxu0 0.0
        %2456 = vmatprep.subr.mxu0 0.0
        %2457 = vmatpush1.msra.mxu0 0.0
        %2458 = vmatprep.subr.mxu0 0.0
        %2459 = vmatpush1.msra.mxu0 0.0
        %2460 = vmatprep.subr.mxu0 0.0
        %2461 = vmatpush1.msra.mxu0 0.0
        %2462 = vmatprep.subr.mxu0 0.0
        %2463 = vmatpush1.msra.mxu0 0.0
        %2464 = vmatprep.subr.mxu0 0.0
        %2465 = vmatpush1.msra.mxu0 0.0
        %2466 = vmatprep.subr.mxu0 0.0
        %2467 = vmatpush1.msra.mxu0 0.0
        %2468 = vmatprep.subr.mxu0 0.0
        %2469 = vmatpush1.msra.mxu0 0.0
        %2470 = vmatprep.subr.mxu0 0.0
        %2471 = vmatpush1.msra.mxu0 0.0
        %2472 = vmatprep.subr.mxu0 0.0
        %2473 = vmatpush1.msra.mxu0 0.0
        %2474 = vmatprep.subr.mxu0 0.0
        %2475 = vmatpush1.msra.mxu0 0.0
        %2476 = vmatprep.subr.mxu0 0.0
        %2477 = vmatpush1.msra.mxu0 0.0
        %2478 = vmatprep.subr.mxu0 0.0
        %2479 = vmatpush1.msra.mxu0 0.0
        %2480 = vmatprep.subr.mxu0 0.0
        %2481 = vmatpush1.msra.mxu0 0.0
        %2482 = vmatprep.subr.mxu0 0.0
        %2483 = vmatpush1.msra.mxu0 0.0
        %2484 = vmatprep.subr.mxu0 0.0
        %2485 = vmatpush1.msra.mxu0 0.0
        %2486 = vmatprep.subr.mxu0 0.0
        %2487 = vmatpush1.msra.mxu0 0.0
        %2488 = vmatprep.mubr.f32.mxu0 0.0
        %2489 = vmatmul.mubr.f32.gmra.mrb[0].mxu0 %v2418
        %v2490 = vpop.f32.mrb[0].mxu0
        %v2491 = vadd.f32 %v2414, %v2490
        %v2492 = vpop.f32.mrb[0].mxu0
        %2493 = vdwg.mxu0
        %v2494 = vadd.f32 %v2491, %v2222
        %2495 = vst.msk [vmem:[%s758] sm:$0xff] %vm2307, %v2494
        %v2496 = vld [vmem:[#allocation3] sm:$0xff]
        %v2497 = vadd.f32 %v775, %v2496
        %2498 = vst.msk [vmem:[%s766] sm:$0xff] %vm2216, %v2497
      $region96: #{res_egnn_pallas.4} parent=87 // pred_fallthru
        _
      %p2499 = scmp.lt.s32.totalorder %s37, 1
      %s2500 = scalar_select %p2499, %s37, 1
      %p2501 = scmp.lt.s32.totalorder %s38, 1
      %s2502 = scalar_select %p2501, %s38, 1
      %s2503 = smul.addr %s2500, 2
      %s2504 = sadd.s32 %s2502, %s2503
      %s2505 = smul.addr %s2504, 8
      %s2506 = scalar_lea.vmem %s17, %s2505
      %p2507 = scmp.lt.s32.totalorder %s37, 1
      %s2508 = scalar_select %p2507, %s37, 1
      %p2509 = scmp.lt.s32.totalorder %s38, 1
      %s2510 = scalar_select %p2509, %s38, 1
      %s2511 = smul.addr %s2508, 2
      %s2512 = sadd.s32 %s2510, %s2511
      %s2513 = smul.addr %s2512, 8
      %s2514 = scalar_lea.vmem %s18, %s2513
      // Predicated region
      $region97: #{res_egnn_pallas.4} parent=87 // pred_check
        %p2515 = pneg %p463
      $region98: #{res_egnn_pallas.4} parent=87 // pred_check_branch
        %2517 = sbr.rel (%p2515) target = $region100
      $region99: #{res_egnn_pallas.4} parent=87 // pred_region
        _
      $region100: #{res_egnn_pallas.4} parent=87 // pred_fallthru
        _
      // Predicated region
      $region101: #{res_egnn_pallas.4} parent=87 // pred_check
        %p2518 = pneg %p491
      $region102: #{res_egnn_pallas.4} parent=87 // pred_check_branch
        %2520 = sbr.rel (%p2518) target = $region104
      $region103: #{res_egnn_pallas.4} parent=87 // pred_region
        _
      $region104: #{res_egnn_pallas.4} parent=87 // pred_fallthru
        _
    $region88: #{res_egnn_pallas.4} parent=5 // pred_fallthru
      _
    %p2521 = scmp.le.s32.totalorder 2, %s27
    // Predicated region
    $region105: #{res_egnn_pallas.4} parent=5 // pred_check
      %p2522 = pneg %p2521
    $region106: #{res_egnn_pallas.4} parent=5 // pred_check_branch
      %2524 = sbr.rel (%p2522) target = $region108
    $region107: #{res_egnn_pallas.4} parent=5 // pred_region
      %s2525 = ssub.s32 %s27, 2
      // Predicated region
      $region109: #{res_egnn_pallas.4} parent=107 // pred_check
        %p2526 = pneg %p469
      $region110: #{res_egnn_pallas.4} parent=107 // pred_check_branch
        %2528 = sbr.rel (%p2526) target = $region112
      $region111: #{res_egnn_pallas.4} parent=107 // pred_region
        %p2529 = scmp.lt.s32.totalorder %s40, 1
        %s2530 = scalar_select %p2529, %s40, 1
        %p2531 = scmp.lt.s32.totalorder %s41, 1
        %s2532 = scalar_select %p2531, %s41, 1
        %s2533 = smul.addr %s2530, 2
        %s2534 = sadd.s32 %s2532, %s2533
        %s2535 = smul.addr %s2534, 8
        %s2536 = scalar_lea.vmem %s17, %s2535
      $region112: #{res_egnn_pallas.4} parent=107 // pred_fallthru
        _
      // Predicated region
      $region113: #{res_egnn_pallas.4} parent=107 // pred_check
        %p2537 = pneg %p497
      $region114: #{res_egnn_pallas.4} parent=107 // pred_check_branch
        %2539 = sbr.rel (%p2537) target = $region116
      $region115: #{res_egnn_pallas.4} parent=107 // pred_region
        %p2540 = scmp.lt.s32.totalorder %s40, 1
        %s2541 = scalar_select %p2540, %s40, 1
        %p2542 = scmp.lt.s32.totalorder %s41, 1
        %s2543 = scalar_select %p2542, %s41, 1
        %s2544 = smul.addr %s2541, 2
        %s2545 = sadd.s32 %s2543, %s2544
        %s2546 = smul.addr %s2545, 8
        %s2547 = scalar_lea.vmem %s18, %s2546
      $region116: #{res_egnn_pallas.4} parent=107 // pred_fallthru
        _
    $region108: #{res_egnn_pallas.4} parent=5 // pred_fallthru
      _
  $region6: #{res_egnn_pallas.4} parent=0 // loop_footer
    %s31 = sadd.s32 1, %s27
  $region7: #{res_egnn_pallas.4} parent=0 // loop_footer_branch
    %26 = sbr.rel target = $region3
  $region8: #{res_egnn_pallas.4} parent=0 // loop_exit
    _

// kernel: res_egnn_pallas.7
$region0: #{res_egnn_pallas.7}
  #allocation0 [shape = 'u32[]', space=smem, size = 0x4, offset = 0x4, fixed_abs, tag = 'smem constant byte address 0x4 - core index']
  #allocation1 [shape = 'u32[144,128]{1,0:T(1,128)}', space=vmem, size = 0x12000, scoped, tag = 'internal scratch']
  #allocation2 [shape = 'f32[8,32]{1,0:T(8,128)}', space=vmem, size = 0x1000, scoped, tag = 'scratch operand']
  #allocation3 [shape = 'f32[8,3]{1,0:T(8,128)}', space=vmem, size = 0x1000, scoped, tag = 'scratch operand']
  #allocation4 [shape = 'f32[1,1]{1,0:T(1,128)S(1)}', space=vmem, size = 0x200, scoped, tag = 'scoped memory for res_egnn_pallas.7']
  %s0 = inlined_call_operand.vmem [shape: f32[2,16,41], index: 0, kind: input, shape index: {}]
  %s1 = inlined_call_operand.vmem [shape: f32[2,16,166], index: 1, kind: input, shape index: {}]
  %s2 = inlined_call_operand.vmem [shape: f32[2,16,166], index: 2, kind: input, shape index: {}]
  %s3 = inlined_call_operand.vmem [shape: f32[2,16,3], index: 3, kind: input, shape index: {}]
  %s4 = inlined_call_operand.vmem [shape: f32[2,16,8], index: 4, kind: input, shape index: {}]
  %s5 = inlined_call_operand.vmem [shape: f32[1,166], index: 5, kind: input, shape index: {}]
  %s6 = inlined_call_operand.vmem [shape: f32[166,32], index: 6, kind: input, shape index: {}]
  %s7 = inlined_call_operand.vmem [shape: f32[1,32], index: 7, kind: input, shape index: {}]
  %s8 = inlined_call_operand.vmem [shape: f32[32,128], index: 8, kind: input, shape index: {}]
  %s9 = inlined_call_operand.vmem [shape: f32[1,128], index: 9, kind: input, shape index: {}]
  %s10 = inlined_call_operand.vmem [shape: f32[1,128], index: 10, kind: input, shape index: {}]
  %s11 = inlined_call_operand.<no memory space> [shape: f32[1,1], index: 11, kind: input, shape index: {}]
  %s12 = inlined_call_operand.vmem [shape: f32[41,82], index: 12, kind: input, shape index: {}]
  %s13 = inlined_call_operand.vmem [shape: f32[32,82], index: 13, kind: input, shape index: {}]
  %s14 = inlined_call_operand.vmem [shape: f32[1,82], index: 14, kind: input, shape index: {}]
  %s15 = inlined_call_operand.vmem [shape: f32[82,41], index: 15, kind: input, shape index: {}]
  %s16 = inlined_call_operand.vmem [shape: f32[1,41], index: 16, kind: input, shape index: {}]
  %s17 = inlined_call_operand.hbm [shape: f32[2,16,41], index: 17, kind: output, shape index: {0}]
  %s18 = inlined_call_operand.vmem [shape: f32[2,16,3], index: 18, kind: output, shape index: {1}]
  %19 = xla_tuple %s17, %s18
  %s20 = sld [smem:[#allocation0]]
  $region117: #{res_egnn_pallas.7} parent=0
    _
  %s22 = ssub.s32 1, %s20
  %s23 = scalar_select 0, %s22, %s20
  %v24 = vstv %s11
  %25 = vst [vmem:[#allocation4] sm:$0x1] %v24
  $region1: #{res_egnn_pallas.7} parent=0
    #allocation5 [shape = 'u8[8192]{0}', space=vmem, size = 0x2000, scoped, tag = 'output window, operand 0']
    #allocation6 [shape = 's32[2]{0}', space=sflag, size = 0x8, scoped, tag = 'scoped memory for res_egnn_pallas.7']
    %26 = vsyncpa [#allocation6], 0
    %s27 = scalar_lea.sflag [#allocation6], 1
    %28 = vsyncpa %s27, 0
    loop: start=0, step=1, limit=10
    $region2: #{res_egnn_pallas.7} parent=1 // loop_pre_header
      _
    $region3: #{res_egnn_pallas.7} parent=1 // loop_header
      %s30 = sphi 0, %s34
      %p31 = scmp.ge.s32.totalorder %s30, 10
      %s37 = sphi 0, %s56
      %s38 = sphi 0, %s52
      %s39 = sphi 0, %s48
      %s40 = sphi 0, %s37
      %s41 = sphi 0, %s38
      %s42 = sphi 0, %s39
      %s43 = sphi 0, %s40
      %s44 = sphi 0, %s41
      %s45 = sphi 0, %s42
      %s61 = sphi 0, %s63
      %s64 = sphi 0, %s61
      %s65 = sphi 0, %s64
      %s81 = sphi 0, %s65
      %s89 = sphi 0, %s91
      %s92 = sphi 0, %s89
      %s93 = sphi 0, %s92
      %s109 = sphi 0, %s93
      %s117 = sphi 0, %s119
      %s120 = sphi 0, %s117
      %s121 = sphi 0, %s120
      %s137 = sphi 0, %s121
      %s145 = sphi 0, %s147
      %s148 = sphi 0, %s145
      %s149 = sphi 0, %s148
      %s165 = sphi 0, %s149
      %s173 = sphi 0, %s175
      %s176 = sphi 0, %s173
      %s177 = sphi 0, %s176
      %s193 = sphi 0, %s177
      %s197 = sphi 0, %s197
      %s199 = sphi 0, %s197
      %s200 = sphi 0, %s199
      %s214 = sphi 0, %s200
      %s218 = sphi 0, %s218
      %s220 = sphi 0, %s218
      %s221 = sphi 0, %s220
      %s235 = sphi 0, %s221
      %s239 = sphi 0, %s239
      %s241 = sphi 0, %s239
      %s242 = sphi 0, %s241
      %s256 = sphi 0, %s242
      %s260 = sphi 0, %s260
      %s262 = sphi 0, %s260
      %s263 = sphi 0, %s262
      %s277 = sphi 0, %s263
      %s281 = sphi 0, %s281
      %s283 = sphi 0, %s281
      %s284 = sphi 0, %s283
      %s298 = sphi 0, %s284
      %s302 = sphi 0, %s302
      %s304 = sphi 0, %s302
      %s305 = sphi 0, %s304
      %s319 = sphi 0, %s305
      %s323 = sphi 0, %s323
      %s325 = sphi 0, %s323
      %s326 = sphi 0, %s325
      %s340 = sphi 0, %s326
      %s344 = sphi 0, %s344
      %s346 = sphi 0, %s344
      %s347 = sphi 0, %s346
      %s361 = sphi 0, %s347
      %s365 = sphi 0, %s365
      %s367 = sphi 0, %s365
      %s368 = sphi 0, %s367
      %s382 = sphi 0, %s368
      %s386 = sphi 0, %s386
      %s388 = sphi 0, %s386
      %s389 = sphi 0, %s388
      %s403 = sphi 0, %s389
      %s407 = sphi 0, %s407
      %s409 = sphi 0, %s407
      %s410 = sphi 0, %s409
      %s424 = sphi 0, %s410
      %s428 = sphi 0, %s428
      %s430 = sphi 0, %s428
      %s431 = sphi 0, %s430
      %s445 = sphi 0, %s431
      %s453 = sphi 0, %s455
      %s456 = sphi 0, %s453
      %s457 = sphi 0, %s456
      %s473 = sphi 0, %s457
      %s481 = sphi 0, %s483
      %s484 = sphi 0, %s481
      %s485 = sphi 0, %s484
      %s501 = sphi 0, %s485
    $region4: #{res_egnn_pallas.7} parent=1 // loop_header_branch
      %33 = sbr.rel (%p31) target = $region8
    $region5: #{res_egnn_pallas.7} parent=1 // loop_body
      %s35 = ssub.s32 %s30, 1
      %s36 = ssub.s32 %s30, 2
      %s46 = sadd.s32 1, %s39
      %p47 = scmp.ge.s32.totalorder %s46, 2
      %s48 = scalar_select %p47, 0, %s46
      %s49 = sadd.s32 1, %s38
      %s50 = scalar_select %p47, %s49, %s38
      %p51 = scmp.ge.s32.totalorder %s50, 2
      %s52 = scalar_select %p51, 0, %s50
      %s53 = sadd.s32 1, %s37
      %s54 = scalar_select %p51, %s53, %s37
      %p55 = scmp.ge.s32.totalorder %s54, 2
      %s56 = scalar_select %p55, 0, %s54
      %s57 = ssub.s32 %s37, %s56
      %s58 = ssub.s32 %s38, %s52
      %s59 = sor.u32 %s57, %s58
      %p60 = scmp.eq.s32.totalorder %s59, 0
      %s62 = sadd.s32 %s61, 1
      %s63 = scalar_select %p60, %s61, %s62
      %p66 = pneg %p60
      %p67 = scmp.eq.s32.totalorder %s30, 7
      %p68 = por %p66, %p67
      %p69 = scmp.ne.s32.totalorder %s61, %s64
      %p70 = scmp.eq.s32.totalorder %s30, 0
      %p71 = por %p69, %p70
      %p72 = scmp.ne.s32.totalorder %s61, %s64
      %p73 = scmp.eq.s32.totalorder %s35, 7
      %p74 = por %p72, %p73
      %p75 = scmp.ne.s32.totalorder %s64, %s65
      %p76 = scmp.eq.s32.totalorder %s35, 0
      %p77 = por %p75, %p76
      %p78 = scmp.ne.s32.totalorder %s64, %s65
      %p79 = scmp.eq.s32.totalorder %s36, 7
      %p80 = por %p78, %p79
      %p82 = scmp.ne.s32.totalorder %s65, %s81
      %p83 = scmp.eq.s32.totalorder %s36, 0
      %p84 = por %p82, %p83
      %s85 = ssub.s32 %s37, %s56
      %s86 = ssub.s32 %s38, %s52
      %s87 = sor.u32 %s85, %s86
      %p88 = scmp.eq.s32.totalorder %s87, 0
      %s90 = sadd.s32 %s89, 1
      %s91 = scalar_select %p88, %s89, %s90
      %p94 = pneg %p88
      %p95 = scmp.eq.s32.totalorder %s30, 7
      %p96 = por %p94, %p95
      %p97 = scmp.ne.s32.totalorder %s89, %s92
      %p98 = scmp.eq.s32.totalorder %s30, 0
      %p99 = por %p97, %p98
      %p100 = scmp.ne.s32.totalorder %s89, %s92
      %p101 = scmp.eq.s32.totalorder %s35, 7
      %p102 = por %p100, %p101
      %p103 = scmp.ne.s32.totalorder %s92, %s93
      %p104 = scmp.eq.s32.totalorder %s35, 0
      %p105 = por %p103, %p104
      %p106 = scmp.ne.s32.totalorder %s92, %s93
      %p107 = scmp.eq.s32.totalorder %s36, 7
      %p108 = por %p106, %p107
      %p110 = scmp.ne.s32.totalorder %s93, %s109
      %p111 = scmp.eq.s32.totalorder %s36, 0
      %p112 = por %p110, %p111
      %s113 = ssub.s32 %s37, %s56
      %s114 = ssub.s32 %s39, %s48
      %s115 = sor.u32 %s113, %s114
      %p116 = scmp.eq.s32.totalorder %s115, 0
      %s118 = sadd.s32 %s117, 1
      %s119 = scalar_select %p116, %s117, %s118
      %p122 = pneg %p116
      %p123 = scmp.eq.s32.totalorder %s30, 7
      %p124 = por %p122, %p123
      %p125 = scmp.ne.s32.totalorder %s117, %s120
      %p126 = scmp.eq.s32.totalorder %s30, 0
      %p127 = por %p125, %p126
      %p128 = scmp.ne.s32.totalorder %s117, %s120
      %p129 = scmp.eq.s32.totalorder %s35, 7
      %p130 = por %p128, %p129
      %p131 = scmp.ne.s32.totalorder %s120, %s121
      %p132 = scmp.eq.s32.totalorder %s35, 0
      %p133 = por %p131, %p132
      %p134 = scmp.ne.s32.totalorder %s120, %s121
      %p135 = scmp.eq.s32.totalorder %s36, 7
      %p136 = por %p134, %p135
      %p138 = scmp.ne.s32.totalorder %s121, %s137
      %p139 = scmp.eq.s32.totalorder %s36, 0
      %p140 = por %p138, %p139
      %s141 = ssub.s32 %s37, %s56
      %s142 = ssub.s32 %s38, %s52
      %s143 = sor.u32 %s141, %s142
      %p144 = scmp.eq.s32.totalorder %s143, 0
      %s146 = sadd.s32 %s145, 1
      %s147 = scalar_select %p144, %s145, %s146
      %p150 = pneg %p144
      %p151 = scmp.eq.s32.totalorder %s30, 7
      %p152 = por %p150, %p151
      %p153 = scmp.ne.s32.totalorder %s145, %s148
      %p154 = scmp.eq.s32.totalorder %s30, 0
      %p155 = por %p153, %p154
      %p156 = scmp.ne.s32.totalorder %s145, %s148
      %p157 = scmp.eq.s32.totalorder %s35, 7
      %p158 = por %p156, %p157
      %p159 = scmp.ne.s32.totalorder %s148, %s149
      %p160 = scmp.eq.s32.totalorder %s35, 0
      %p161 = por %p159, %p160
      %p162 = scmp.ne.s32.totalorder %s148, %s149
      %p163 = scmp.eq.s32.totalorder %s36, 7
      %p164 = por %p162, %p163
      %p166 = scmp.ne.s32.totalorder %s149, %s165
      %p167 = scmp.eq.s32.totalorder %s36, 0
      %p168 = por %p166, %p167
      %s169 = ssub.s32 %s37, %s56
      %s170 = ssub.s32 %s39, %s48
      %s171 = sor.u32 %s169, %s170
      %p172 = scmp.eq.s32.totalorder %s171, 0
      %s174 = sadd.s32 %s173, 1
      %s175 = scalar_select %p172, %s173, %s174
      %p178 = pneg %p172
      %p179 = scmp.eq.s32.totalorder %s30, 7
      %p180 = por %p178, %p179
      %p181 = scmp.ne.s32.totalorder %s173, %s176
      %p182 = scmp.eq.s32.totalorder %s30, 0
      %p183 = por %p181, %p182
      %p184 = scmp.ne.s32.totalorder %s173, %s176
      %p185 = scmp.eq.s32.totalorder %s35, 7
      %p186 = por %p184, %p185
      %p187 = scmp.ne.s32.totalorder %s176, %s177
      %p188 = scmp.eq.s32.totalorder %s35, 0
      %p189 = por %p187, %p188
      %p190 = scmp.ne.s32.totalorder %s176, %s177
      %p191 = scmp.eq.s32.totalorder %s36, 7
      %p192 = por %p190, %p191
      %p194 = scmp.ne.s32.totalorder %s177, %s193
      %p195 = scmp.eq.s32.totalorder %s36, 0
      %p196 = por %p194, %p195
      %s198 = sadd.s32 %s197, 1
      %p201 = scmp.eq.s32.totalorder %s30, 7
      %p202 = scmp.ne.s32.totalorder %s197, %s199
      %p203 = scmp.eq.s32.totalorder %s30, 0
      %p204 = por %p202, %p203
      %p205 = scmp.ne.s32.totalorder %s197, %s199
      %p206 = scmp.eq.s32.totalorder %s35, 7
      %p207 = por %p205, %p206
      %p208 = scmp.ne.s32.totalorder %s199, %s200
      %p209 = scmp.eq.s32.totalorder %s35, 0
      %p210 = por %p208, %p209
      %p211 = scmp.ne.s32.totalorder %s199, %s200
      %p212 = scmp.eq.s32.totalorder %s36, 7
      %p213 = por %p211, %p212
      %p215 = scmp.ne.s32.totalorder %s200, %s214
      %p216 = scmp.eq.s32.totalorder %s36, 0
      %p217 = por %p215, %p216
      %s219 = sadd.s32 %s218, 1
      %p222 = scmp.eq.s32.totalorder %s30, 7
      %p223 = scmp.ne.s32.totalorder %s218, %s220
      %p224 = scmp.eq.s32.totalorder %s30, 0
      %p225 = por %p223, %p224
      %p226 = scmp.ne.s32.totalorder %s218, %s220
      %p227 = scmp.eq.s32.totalorder %s35, 7
      %p228 = por %p226, %p227
      %p229 = scmp.ne.s32.totalorder %s220, %s221
      %p230 = scmp.eq.s32.totalorder %s35, 0
      %p231 = por %p229, %p230
      %p232 = scmp.ne.s32.totalorder %s220, %s221
      %p233 = scmp.eq.s32.totalorder %s36, 7
      %p234 = por %p232, %p233
      %p236 = scmp.ne.s32.totalorder %s221, %s235
      %p237 = scmp.eq.s32.totalorder %s36, 0
      %p238 = por %p236, %p237
      %s240 = sadd.s32 %s239, 1
      %p243 = scmp.eq.s32.totalorder %s30, 7
      %p244 = scmp.ne.s32.totalorder %s239, %s241
      %p245 = scmp.eq.s32.totalorder %s30, 0
      %p246 = por %p244, %p245
      %p247 = scmp.ne.s32.totalorder %s239, %s241
      %p248 = scmp.eq.s32.totalorder %s35, 7
      %p249 = por %p247, %p248
      %p250 = scmp.ne.s32.totalorder %s241, %s242
      %p251 = scmp.eq.s32.totalorder %s35, 0
      %p252 = por %p250, %p251
      %p253 = scmp.ne.s32.totalorder %s241, %s242
      %p254 = scmp.eq.s32.totalorder %s36, 7
      %p255 = por %p253, %p254
      %p257 = scmp.ne.s32.totalorder %s242, %s256
      %p258 = scmp.eq.s32.totalorder %s36, 0
      %p259 = por %p257, %p258
      %s261 = sadd.s32 %s260, 1
      %p264 = scmp.eq.s32.totalorder %s30, 7
      %p265 = scmp.ne.s32.totalorder %s260, %s262
      %p266 = scmp.eq.s32.totalorder %s30, 0
      %p267 = por %p265, %p266
      %p268 = scmp.ne.s32.totalorder %s260, %s262
      %p269 = scmp.eq.s32.totalorder %s35, 7
      %p270 = por %p268, %p269
      %p271 = scmp.ne.s32.totalorder %s262, %s263
      %p272 = scmp.eq.s32.totalorder %s35, 0
      %p273 = por %p271, %p272
      %p274 = scmp.ne.s32.totalorder %s262, %s263
      %p275 = scmp.eq.s32.totalorder %s36, 7
      %p276 = por %p274, %p275
      %p278 = scmp.ne.s32.totalorder %s263, %s277
      %p279 = scmp.eq.s32.totalorder %s36, 0
      %p280 = por %p278, %p279
      %s282 = sadd.s32 %s281, 1
      %p285 = scmp.eq.s32.totalorder %s30, 7
      %p286 = scmp.ne.s32.totalorder %s281, %s283
      %p287 = scmp.eq.s32.totalorder %s30, 0
      %p288 = por %p286, %p287
      %p289 = scmp.ne.s32.totalorder %s281, %s283
      %p290 = scmp.eq.s32.totalorder %s35, 7
      %p291 = por %p289, %p290
      %p292 = scmp.ne.s32.totalorder %s283, %s284
      %p293 = scmp.eq.s32.totalorder %s35, 0
      %p294 = por %p292, %p293
      %p295 = scmp.ne.s32.totalorder %s283, %s284
      %p296 = scmp.eq.s32.totalorder %s36, 7
      %p297 = por %p295, %p296
      %p299 = scmp.ne.s32.totalorder %s284, %s298
      %p300 = scmp.eq.s32.totalorder %s36, 0
      %p301 = por %p299, %p300
      %s303 = sadd.s32 %s302, 1
      %p306 = scmp.eq.s32.totalorder %s30, 7
      %p307 = scmp.ne.s32.totalorder %s302, %s304
      %p308 = scmp.eq.s32.totalorder %s30, 0
      %p309 = por %p307, %p308
      %p310 = scmp.ne.s32.totalorder %s302, %s304
      %p311 = scmp.eq.s32.totalorder %s35, 7
      %p312 = por %p310, %p311
      %p313 = scmp.ne.s32.totalorder %s304, %s305
      %p314 = scmp.eq.s32.totalorder %s35, 0
      %p315 = por %p313, %p314
      %p316 = scmp.ne.s32.totalorder %s304, %s305
      %p317 = scmp.eq.s32.totalorder %s36, 7
      %p318 = por %p316, %p317
      %p320 = scmp.ne.s32.totalorder %s305, %s319
      %p321 = scmp.eq.s32.totalorder %s36, 0
      %p322 = por %p320, %p321
      %s324 = sadd.s32 %s323, 1
      %p327 = scmp.eq.s32.totalorder %s30, 7
      %p328 = scmp.ne.s32.totalorder %s323, %s325
      %p329 = scmp.eq.s32.totalorder %s30, 0
      %p330 = por %p328, %p329
      %p331 = scmp.ne.s32.totalorder %s323, %s325
      %p332 = scmp.eq.s32.totalorder %s35, 7
      %p333 = por %p331, %p332
      %p334 = scmp.ne.s32.totalorder %s325, %s326
      %p335 = scmp.eq.s32.totalorder %s35, 0
      %p336 = por %p334, %p335
      %p337 = scmp.ne.s32.totalorder %s325, %s326
      %p338 = scmp.eq.s32.totalorder %s36, 7
      %p339 = por %p337, %p338
      %p341 = scmp.ne.s32.totalorder %s326, %s340
      %p342 = scmp.eq.s32.totalorder %s36, 0
      %p343 = por %p341, %p342
      %s345 = sadd.s32 %s344, 1
      %p348 = scmp.eq.s32.totalorder %s30, 7
      %p349 = scmp.ne.s32.totalorder %s344, %s346
      %p350 = scmp.eq.s32.totalorder %s30, 0
      %p351 = por %p349, %p350
      %p352 = scmp.ne.s32.totalorder %s344, %s346
      %p353 = scmp.eq.s32.totalorder %s35, 7
      %p354 = por %p352, %p353
      %p355 = scmp.ne.s32.totalorder %s346, %s347
      %p356 = scmp.eq.s32.totalorder %s35, 0
      %p357 = por %p355, %p356
      %p358 = scmp.ne.s32.totalorder %s346, %s347
      %p359 = scmp.eq.s32.totalorder %s36, 7
      %p360 = por %p358, %p359
      %p362 = scmp.ne.s32.totalorder %s347, %s361
      %p363 = scmp.eq.s32.totalorder %s36, 0
      %p364 = por %p362, %p363
      %s366 = sadd.s32 %s365, 1
      %p369 = scmp.eq.s32.totalorder %s30, 7
      %p370 = scmp.ne.s32.totalorder %s365, %s367
      %p371 = scmp.eq.s32.totalorder %s30, 0
      %p372 = por %p370, %p371
      %p373 = scmp.ne.s32.totalorder %s365, %s367
      %p374 = scmp.eq.s32.totalorder %s35, 7
      %p375 = por %p373, %p374
      %p376 = scmp.ne.s32.totalorder %s367, %s368
      %p377 = scmp.eq.s32.totalorder %s35, 0
      %p378 = por %p376, %p377
      %p379 = scmp.ne.s32.totalorder %s367, %s368
      %p380 = scmp.eq.s32.totalorder %s36, 7
      %p381 = por %p379, %p380
      %p383 = scmp.ne.s32.totalorder %s368, %s382
      %p384 = scmp.eq.s32.totalorder %s36, 0
      %p385 = por %p383, %p384
      %s387 = sadd.s32 %s386, 1
      %p390 = scmp.eq.s32.totalorder %s30, 7
      %p391 = scmp.ne.s32.totalorder %s386, %s388
      %p392 = scmp.eq.s32.totalorder %s30, 0
      %p393 = por %p391, %p392
      %p394 = scmp.ne.s32.totalorder %s386, %s388
      %p395 = scmp.eq.s32.totalorder %s35, 7
      %p396 = por %p394, %p395
      %p397 = scmp.ne.s32.totalorder %s388, %s389
      %p398 = scmp.eq.s32.totalorder %s35, 0
      %p399 = por %p397, %p398
      %p400 = scmp.ne.s32.totalorder %s388, %s389
      %p401 = scmp.eq.s32.totalorder %s36, 7
      %p402 = por %p400, %p401
      %p404 = scmp.ne.s32.totalorder %s389, %s403
      %p405 = scmp.eq.s32.totalorder %s36, 0
      %p406 = por %p404, %p405
      %s408 = sadd.s32 %s407, 1
      %p411 = scmp.eq.s32.totalorder %s30, 7
      %p412 = scmp.ne.s32.totalorder %s407, %s409
      %p413 = scmp.eq.s32.totalorder %s30, 0
      %p414 = por %p412, %p413
      %p415 = scmp.ne.s32.totalorder %s407, %s409
      %p416 = scmp.eq.s32.totalorder %s35, 7
      %p417 = por %p415, %p416
      %p418 = scmp.ne.s32.totalorder %s409, %s410
      %p419 = scmp.eq.s32.totalorder %s35, 0
      %p420 = por %p418, %p419
      %p421 = scmp.ne.s32.totalorder %s409, %s410
      %p422 = scmp.eq.s32.totalorder %s36, 7
      %p423 = por %p421, %p422
      %p425 = scmp.ne.s32.totalorder %s410, %s424
      %p426 = scmp.eq.s32.totalorder %s36, 0
      %p427 = por %p425, %p426
      %s429 = sadd.s32 %s428, 1
      %p432 = scmp.eq.s32.totalorder %s30, 7
      %p433 = scmp.ne.s32.totalorder %s428, %s430
      %p434 = scmp.eq.s32.totalorder %s30, 0
      %p435 = por %p433, %p434
      %p436 = scmp.ne.s32.totalorder %s428, %s430
      %p437 = scmp.eq.s32.totalorder %s35, 7
      %p438 = por %p436, %p437
      %p439 = scmp.ne.s32.totalorder %s430, %s431
      %p440 = scmp.eq.s32.totalorder %s35, 0
      %p441 = por %p439, %p440
      %p442 = scmp.ne.s32.totalorder %s430, %s431
      %p443 = scmp.eq.s32.totalorder %s36, 7
      %p444 = por %p442, %p443
      %p446 = scmp.ne.s32.totalorder %s431, %s445
      %p447 = scmp.eq.s32.totalorder %s36, 0
      %p448 = por %p446, %p447
      %s449 = ssub.s32 %s37, %s56
      %s450 = ssub.s32 %s38, %s52
      %s451 = sor.u32 %s449, %s450
      %p452 = scmp.eq.s32.totalorder %s451, 0
      %s454 = sadd.s32 %s453, 1
      %s455 = scalar_select %p452, %s453, %s454
      %p458 = pneg %p452
      %p459 = scmp.eq.s32.totalorder %s30, 7
      %p460 = por %p458, %p459
      %p461 = scmp.ne.s32.totalorder %s453, %s456
      %p462 = scmp.eq.s32.totalorder %s30, 0
      %p463 = por %p461, %p462
      %p464 = scmp.ne.s32.totalorder %s453, %s456
      %p465 = scmp.eq.s32.totalorder %s35, 7
      %p466 = por %p464, %p465
      %p467 = scmp.ne.s32.totalorder %s456, %s457
      %p468 = scmp.eq.s32.totalorder %s35, 0
      %p469 = por %p467, %p468
      %p470 = scmp.ne.s32.totalorder %s456, %s457
      %p471 = scmp.eq.s32.totalorder %s36, 7
      %p472 = por %p470, %p471
      %p474 = scmp.ne.s32.totalorder %s457, %s473
      %p475 = scmp.eq.s32.totalorder %s36, 0
      %p476 = por %p474, %p475
      %s477 = ssub.s32 %s37, %s56
      %s478 = ssub.s32 %s38, %s52
      %s479 = sor.u32 %s477, %s478
      %p480 = scmp.eq.s32.totalorder %s479, 0
      %s482 = sadd.s32 %s481, 1
      %s483 = scalar_select %p480, %s481, %s482
      %p486 = pneg %p480
      %p487 = scmp.eq.s32.totalorder %s30, 7
      %p488 = por %p486, %p487
      %p489 = scmp.ne.s32.totalorder %s481, %s484
      %p490 = scmp.eq.s32.totalorder %s30, 0
      %p491 = por %p489, %p490
      %p492 = scmp.ne.s32.totalorder %s481, %s484
      %p493 = scmp.eq.s32.totalorder %s35, 7
      %p494 = por %p492, %p493
      %p495 = scmp.ne.s32.totalorder %s484, %s485
      %p496 = scmp.eq.s32.totalorder %s35, 0
      %p497 = por %p495, %p496
      %p498 = scmp.ne.s32.totalorder %s484, %s485
      %p499 = scmp.eq.s32.totalorder %s36, 7
      %p500 = por %p498, %p499
      %p502 = scmp.ne.s32.totalorder %s485, %s501
      %p503 = scmp.eq.s32.totalorder %s36, 0
      %p504 = por %p502, %p503
      %p505 = scmp.le.s32.totalorder 1, %s30
      %p506 = scmp.lt.s32.totalorder %s30, 9
      %p507 = pnand %p505, %p506
      %p508 = pneg %p507
      // Predicated region
      $region9: #{res_egnn_pallas.7} parent=5 // pred_check
        _
      $region10: #{res_egnn_pallas.7} parent=5 // pred_check_branch
        %510 = sbr.rel (%p507) target = $region12
      $region11: #{res_egnn_pallas.7} parent=5 // pred_region
        %s511 = ssub.s32 %s30, 1
        // Predicated region
        $region13: #{res_egnn_pallas.7} parent=11 // pred_check
          %p512 = pneg %p210
        $region14: #{res_egnn_pallas.7} parent=11 // pred_check_branch
          %514 = sbr.rel (%p512) target = $region16
        $region15: #{res_egnn_pallas.7} parent=11 // pred_region
          _
        $region16: #{res_egnn_pallas.7} parent=11 // pred_fallthru
          _
        // Predicated region
        $region17: #{res_egnn_pallas.7} parent=11 // pred_check
          %p515 = pneg %p231
        $region18: #{res_egnn_pallas.7} parent=11 // pred_check_branch
          %517 = sbr.rel (%p515) target = $region20
        $region19: #{res_egnn_pallas.7} parent=11 // pred_region
          _
        $region20: #{res_egnn_pallas.7} parent=11 // pred_fallthru
          _
        // Predicated region
        $region21: #{res_egnn_pallas.7} parent=11 // pred_check
          %p518 = pneg %p252
        $region22: #{res_egnn_pallas.7} parent=11 // pred_check_branch
          %520 = sbr.rel (%p518) target = $region24
        $region23: #{res_egnn_pallas.7} parent=11 // pred_region
          _
        $region24: #{res_egnn_pallas.7} parent=11 // pred_fallthru
          _
        // Predicated region
        $region25: #{res_egnn_pallas.7} parent=11 // pred_check
          %p521 = pneg %p273
        $region26: #{res_egnn_pallas.7} parent=11 // pred_check_branch
          %523 = sbr.rel (%p521) target = $region28
        $region27: #{res_egnn_pallas.7} parent=11 // pred_region
          _
        $region28: #{res_egnn_pallas.7} parent=11 // pred_fallthru
          _
        // Predicated region
        $region29: #{res_egnn_pallas.7} parent=11 // pred_check
          %p524 = pneg %p294
        $region30: #{res_egnn_pallas.7} parent=11 // pred_check_branch
          %526 = sbr.rel (%p524) target = $region32
        $region31: #{res_egnn_pallas.7} parent=11 // pred_region
          _
        $region32: #{res_egnn_pallas.7} parent=11 // pred_fallthru
          _
        // Predicated region
        $region33: #{res_egnn_pallas.7} parent=11 // pred_check
          %p527 = pneg %p315
        $region34: #{res_egnn_pallas.7} parent=11 // pred_check_branch
          %529 = sbr.rel (%p527) target = $region36
        $region35: #{res_egnn_pallas.7} parent=11 // pred_region
          _
        $region36: #{res_egnn_pallas.7} parent=11 // pred_fallthru
          _
        // Predicated region
        $region37: #{res_egnn_pallas.7} parent=11 // pred_check
          %p530 = pneg %p336
        $region38: #{res_egnn_pallas.7} parent=11 // pred_check_branch
          %532 = sbr.rel (%p530) target = $region40
        $region39: #{res_egnn_pallas.7} parent=11 // pred_region
          _
        $region40: #{res_egnn_pallas.7} parent=11 // pred_fallthru
          _
        // Predicated region
        $region41: #{res_egnn_pallas.7} parent=11 // pred_check
          %p533 = pneg %p357
        $region42: #{res_egnn_pallas.7} parent=11 // pred_check_branch
          %535 = sbr.rel (%p533) target = $region44
        $region43: #{res_egnn_pallas.7} parent=11 // pred_region
          _
        $region44: #{res_egnn_pallas.7} parent=11 // pred_fallthru
          _
        // Predicated region
        $region45: #{res_egnn_pallas.7} parent=11 // pred_check
          %p536 = pneg %p378
        $region46: #{res_egnn_pallas.7} parent=11 // pred_check_branch
          %538 = sbr.rel (%p536) target = $region48
        $region47: #{res_egnn_pallas.7} parent=11 // pred_region
          _
        $region48: #{res_egnn_pallas.7} parent=11 // pred_fallthru
          _
        // Predicated region
        $region49: #{res_egnn_pallas.7} parent=11 // pred_check
          %p539 = pneg %p399
        $region50: #{res_egnn_pallas.7} parent=11 // pred_check_branch
          %541 = sbr.rel (%p539) target = $region52
        $region51: #{res_egnn_pallas.7} parent=11 // pred_region
          _
        $region52: #{res_egnn_pallas.7} parent=11 // pred_fallthru
          _
        // Predicated region
        $region53: #{res_egnn_pallas.7} parent=11 // pred_check
          %p542 = pneg %p420
        $region54: #{res_egnn_pallas.7} parent=11 // pred_check_branch
          %544 = sbr.rel (%p542) target = $region56
        $region55: #{res_egnn_pallas.7} parent=11 // pred_region
          _
        $region56: #{res_egnn_pallas.7} parent=11 // pred_fallthru
          _
        // Predicated region
        $region57: #{res_egnn_pallas.7} parent=11 // pred_check
          %p545 = pneg %p441
        $region58: #{res_egnn_pallas.7} parent=11 // pred_check_branch
          %547 = sbr.rel (%p545) target = $region60
        $region59: #{res_egnn_pallas.7} parent=11 // pred_region
          _
        $region60: #{res_egnn_pallas.7} parent=11 // pred_fallthru
          _
      $region12: #{res_egnn_pallas.7} parent=5 // pred_fallthru
        _
      %p548 = scmp.lt.s32.totalorder %s30, 8
      // Predicated region
      $region61: #{res_egnn_pallas.7} parent=5 // pred_check
        %p549 = pneg %p548
      $region62: #{res_egnn_pallas.7} parent=5 // pred_check_branch
        %551 = sbr.rel (%p549) target = $region64
      $region63: #{res_egnn_pallas.7} parent=5 // pred_region
        // Predicated region
        $region65: #{res_egnn_pallas.7} parent=63 // pred_check
          %p552 = pneg %p71
        $region66: #{res_egnn_pallas.7} parent=63 // pred_check_branch
          %554 = sbr.rel (%p552) target = $region68
        $region67: #{res_egnn_pallas.7} parent=63 // pred_region
          %p555 = scmp.lt.s32.totalorder %s37, 1
          %s556 = scalar_select %p555, %s37, 1
          %p557 = scmp.lt.s32.totalorder %s38, 1
          %s558 = scalar_select %p557, %s38, 1
          %s559 = smul.addr %s556, 2
          %s560 = sadd.s32 %s558, %s559
          %s561 = smul.addr %s560, 8
          %s562 = scalar_lea.vmem %s0, %s561
        $region68: #{res_egnn_pallas.7} parent=63 // pred_fallthru
          _
        // Predicated region
        $region69: #{res_egnn_pallas.7} parent=63 // pred_check
          %p563 = pneg %p99
        $region70: #{res_egnn_pallas.7} parent=63 // pred_check_branch
          %565 = sbr.rel (%p563) target = $region72
        $region71: #{res_egnn_pallas.7} parent=63 // pred_region
          %p566 = scmp.lt.s32.totalorder %s37, 1
          %s567 = scalar_select %p566, %s37, 1
          %p568 = scmp.lt.s32.totalorder %s38, 1
          %s569 = scalar_select %p568, %s38, 1
          %s570 = smul.addr %s569, 2
          %s571 = smul.addr %s567, 4
          %s572 = sadd.s32 %s570, %s571
          %s573 = smul.addr %s572, 8
          %s574 = scalar_lea.vmem %s1, %s573
        $region72: #{res_egnn_pallas.7} parent=63 // pred_fallthru
          _
        // Predicated region
        $region73: #{res_egnn_pallas.7} parent=63 // pred_check
          %p575 = pneg %p127
        $region74: #{res_egnn_pallas.7} parent=63 // pred_check_branch
          %577 = sbr.rel (%p575) target = $region76
        $region75: #{res_egnn_pallas.7} parent=63 // pred_region
          %p578 = scmp.lt.s32.totalorder %s37, 1
          %s579 = scalar_select %p578, %s37, 1
          %p580 = scmp.lt.s32.totalorder %s39, 1
          %s581 = scalar_select %p580, %s39, 1
          %s582 = smul.addr %s581, 2
          %s583 = smul.addr %s579, 4
          %s584 = sadd.s32 %s582, %s583
          %s585 = smul.addr %s584, 8
          %s586 = scalar_lea.vmem %s2, %s585
        $region76: #{res_egnn_pallas.7} parent=63 // pred_fallthru
          _
        // Predicated region
        $region77: #{res_egnn_pallas.7} parent=63 // pred_check
          %p587 = pneg %p155
        $region78: #{res_egnn_pallas.7} parent=63 // pred_check_branch
          %589 = sbr.rel (%p587) target = $region80
        $region79: #{res_egnn_pallas.7} parent=63 // pred_region
          %p590 = scmp.lt.s32.totalorder %s37, 1
          %s591 = scalar_select %p590, %s37, 1
          %p592 = scmp.lt.s32.totalorder %s38, 1
          %s593 = scalar_select %p592, %s38, 1
          %s594 = smul.addr %s591, 2
          %s595 = sadd.s32 %s593, %s594
          %s596 = smul.addr %s595, 8
          %s597 = scalar_lea.vmem %s3, %s596
        $region80: #{res_egnn_pallas.7} parent=63 // pred_fallthru
          _
        // Predicated region
        $region81: #{res_egnn_pallas.7} parent=63 // pred_check
          %p598 = pneg %p183
        $region82: #{res_egnn_pallas.7} parent=63 // pred_check_branch
          %600 = sbr.rel (%p598) target = $region84
        $region83: #{res_egnn_pallas.7} parent=63 // pred_region
          %p601 = scmp.lt.s32.totalorder %s37, 1
          %s602 = scalar_select %p601, %s37, 1
          %p603 = scmp.lt.s32.totalorder %s39, 1
          %s604 = scalar_select %p603, %s39, 1
          %s605 = smul.addr %s602, 2
          %s606 = sadd.s32 %s604, %s605
          %s607 = smul.addr %s606, 8
          %s608 = scalar_lea.vmem %s4, %s607
        $region84: #{res_egnn_pallas.7} parent=63 // pred_fallthru
          _
      $region64: #{res_egnn_pallas.7} parent=5 // pred_fallthru
        _
      %p609 = scmp.le.s32.totalorder 1, %s30
      %p610 = scmp.lt.s32.totalorder %s30, 9
      %p611 = pnand %p609, %p610
      %p612 = pneg %p611
      // Predicated region
      $region85: #{res_egnn_pallas.7} parent=5 // pred_check
        _
      $region86: #{res_egnn_pallas.7} parent=5 // pred_check_branch
        %614 = sbr.rel (%p611) target = $region88
      $region87: #{res_egnn_pallas.7} parent=5 // pred_region
        %s615 = ssub.s32 %s30, 1
        %p616 = scmp.lt.s32.totalorder %s40, 1
        %s617 = scalar_select %p616, %s40, 1
        %p618 = scmp.lt.s32.totalorder %s41, 1
        %s619 = scalar_select %p618, %s41, 1
        %s620 = smul.addr %s617, 2
        %s621 = sadd.s32 %s619, %s620
        %s622 = smul.addr %s621, 8
        %s623 = scalar_lea.vmem %s0, %s622
        %p624 = pneg %p77
        %p625 = pneg %p74
        %p626 = scmp.lt.s32.totalorder %s40, 1
        %s627 = scalar_select %p626, %s40, 1
        %p628 = scmp.lt.s32.totalorder %s41, 1
        %s629 = scalar_select %p628, %s41, 1
        %s630 = smul.addr %s629, 2
        %s631 = smul.addr %s627, 4
        %s632 = sadd.s32 %s630, %s631
        %s633 = smul.addr %s632, 8
        %s634 = scalar_lea.vmem %s1, %s633
        %p635 = pneg %p105
        %p636 = pneg %p102
        %p637 = scmp.lt.s32.totalorder %s40, 1
        %s638 = scalar_select %p637, %s40, 1
        %p639 = scmp.lt.s32.totalorder %s42, 1
        %s640 = scalar_select %p639, %s42, 1
        %s641 = smul.addr %s640, 2
        %s642 = smul.addr %s638, 4
        %s643 = sadd.s32 %s641, %s642
        %s644 = smul.addr %s643, 8
        %s645 = scalar_lea.vmem %s2, %s644
        %p646 = pneg %p133
        %p647 = pneg %p130
        %p648 = scmp.lt.s32.totalorder %s40, 1
        %s649 = scalar_select %p648, %s40, 1
        %p650 = scmp.lt.s32.totalorder %s41, 1
        %s651 = scalar_select %p650, %s41, 1
        %s652 = smul.addr %s649, 2
        %s653 = sadd.s32 %s651, %s652
        %s654 = smul.addr %s653, 8
        %s655 = scalar_lea.vmem %s3, %s654
        %p656 = pneg %p161
        %p657 = pneg %p158
        %p658 = scmp.lt.s32.totalorder %s40, 1
        %s659 = scalar_select %p658, %s40, 1
        %p660 = scmp.lt.s32.totalorder %s42, 1
        %s661 = scalar_select %p660, %s42, 1
        %s662 = smul.addr %s659, 2
        %s663 = sadd.s32 %s661, %s662
        %s664 = smul.addr %s663, 8
        %s665 = scalar_lea.vmem %s4, %s664
        %p666 = pneg %p189
        %p667 = pneg %p186
        %p668 = pneg %p210
        %p669 = pneg %p207
        %p670 = pneg %p231
        %p671 = pneg %p228
        %p672 = pneg %p252
        %p673 = pneg %p249
        %p674 = pneg %p273
        %p675 = pneg %p270
        %p676 = pneg %p294
        %p677 = pneg %p291
        %p678 = pneg %p315
        %p679 = pneg %p312
        %p680 = pneg %p336
        %p681 = pneg %p333
        %p682 = pneg %p357
        %p683 = pneg %p354
        %p684 = pneg %p378
        %p685 = pneg %p375
        %p686 = pneg %p399
        %p687 = pneg %p396
        %p688 = pneg %p420
        %p689 = pneg %p417
        %p690 = pneg %p441
        %p691 = pneg %p438
        %p692 = pneg %p469
        %p693 = pneg %p466
        %s694 = sand.u32 %s456, 1
        %s695 = scalar_lea.sflag [#allocation6], %s694
        %s696 = sand.u32 %s456, 1
        %s697 = smul.addr %s696, 8
        %s698 = scalar_lea.vmem [#allocation5], %s697
        %p699 = pneg %p497
        %p700 = pneg %p494
        %p701 = scmp.lt.s32.totalorder %s40, 1
        %s702 = scalar_select %p701, %s40, 1
        %p703 = scmp.lt.s32.totalorder %s41, 1
        %s704 = scalar_select %p703, %s41, 1
        %s705 = smul.addr %s702, 2
        %s706 = sadd.s32 %s704, %s705
        %s707 = smul.addr %s706, 8
        %s708 = scalar_lea.vmem %s18, %s707
        %p709 = scmp.lt.s32.totalorder %s40, 1
        %s710 = scalar_select %p709, %s40, 1
        %p711 = scmp.lt.s32.totalorder %s41, 1
        %s712 = scalar_select %p711, %s41, 1
        %s713 = smul.addr %s710, 2
        %s714 = sadd.s32 %s712, %s713
        %s715 = smul.addr %s714, 8
        %s716 = scalar_lea.vmem %s0, %s715
        %p717 = scmp.lt.s32.totalorder %s40, 1
        %s718 = scalar_select %p717, %s40, 1
        %p719 = scmp.lt.s32.totalorder %s41, 1
        %s720 = scalar_select %p719, %s41, 1
        %s721 = smul.addr %s720, 2
        %s722 = smul.addr %s718, 4
        %s723 = sadd.s32 %s721, %s722
        %s724 = smul.addr %s723, 8
        %s725 = scalar_lea.vmem %s1, %s724
        %p726 = scmp.lt.s32.totalorder %s40, 1
        %s727 = scalar_select %p726, %s40, 1
        %p728 = scmp.lt.s32.totalorder %s42, 1
        %s729 = scalar_select %p728, %s42, 1
        %s730 = smul.addr %s729, 2
        %s731 = smul.addr %s727, 4
        %s732 = sadd.s32 %s730, %s731
        %s733 = smul.addr %s732, 8
        %s734 = scalar_lea.vmem %s2, %s733
        %p735 = scmp.lt.s32.totalorder %s40, 1
        %s736 = scalar_select %p735, %s40, 1
        %p737 = scmp.lt.s32.totalorder %s41, 1
        %s738 = scalar_select %p737, %s41, 1
        %s739 = smul.addr %s736, 2
        %s740 = sadd.s32 %s738, %s739
        %s741 = smul.addr %s740, 8
        %s742 = scalar_lea.vmem %s3, %s741
        %p743 = scmp.lt.s32.totalorder %s40, 1
        %s744 = scalar_select %p743, %s40, 1
        %p745 = scmp.lt.s32.totalorder %s42, 1
        %s746 = scalar_select %p745, %s42, 1
        %s747 = smul.addr %s744, 2
        %s748 = sadd.s32 %s746, %s747
        %s749 = smul.addr %s748, 8
        %s750 = scalar_lea.vmem %s4, %s749
        %p751 = scmp.lt.s32.totalorder %s40, 1
        %s752 = scalar_select %p751, %s40, 1
        %p753 = scmp.lt.s32.totalorder %s41, 1
        %s754 = scalar_select %p753, %s41, 1
        %s755 = smul.addr %s752, 2
        %s756 = sadd.s32 %s754, %s755
        %s757 = smul.addr %s756, 8
        %s758 = scalar_lea.vmem %s18, %s757
        %p759 = scmp.eq.s32.totalorder %s42, 0
        // Predicated region
        $region89: #{res_egnn_pallas.7} parent=87 // pred_check
          %p760 = pneg %p759
        $region90: #{res_egnn_pallas.7} parent=87 // pred_check_branch
          %762 = sbr.rel (%p760) target = $region92
        $region91: #{res_egnn_pallas.7} parent=87 // pred_region
          %vm763 = vcmask 261120
          %764 = vst.msk [vmem:[#allocation2] sm:$0xff] %vm763, 0.0
          %vm765 = vcmask 23552
          %766 = vst.msk [vmem:[#allocation3] sm:$0xff] %vm765, 0.0
        $region92: #{res_egnn_pallas.7} parent=87 // pred_fallthru
          _
        %v767 = vld [vmem:[%s742] sm:$0xff]
        %v768 = vld [vmem:[%s750] sm:$0xff]
        %769 = vxpose.xlu0.b32.start [1/16] %v768, 128
        %770 = vxpose.xlu0.b32.cont [2/16] 0.0, 128
        %771 = vxpose.xlu0.b32.cont [3/16] 0.0, 128
        %772 = vxpose.xlu0.b32.cont [4/16] 0.0, 128
        %773 = vxpose.xlu0.b32.cont [5/16] 0.0, 128
        %774 = vxpose.xlu0.b32.cont [6/16] 0.0, 128
        %775 = vxpose.xlu0.b32.cont [7/16] 0.0, 128
        %776 = vxpose.xlu0.b32.cont [8/16] 0.0, 128
        %777 = vxpose.xlu0.b32.cont [9/16] 0.0, 128
        %778 = vxpose.xlu0.b32.cont [10/16] 0.0, 128
        %779 = vxpose.xlu0.b32.cont [11/16] 0.0, 128
        %780 = vxpose.xlu0.b32.cont [12/16] 0.0, 128
        %781 = vxpose.xlu0.b32.cont [13/16] 0.0, 128
        %782 = vxpose.xlu0.b32.cont [14/16] 0.0, 128
        %783 = vxpose.xlu0.b32.cont [15/16] 0.0, 128
        %784 = vxpose.xlu0.b32.end [16/16] 0.0, 128
        %v785 = vpop.trf.xlu0
        %v786 = vpop.trf.xlu0
        %v787 = vpop.trf.xlu0
        %v788 = vpop.trf.xlu0
        %v789 = vpop.trf.xlu0
        %v790 = vpop.trf.xlu0
        %v791 = vpop.trf.xlu0
        %v792 = vpop.trf.xlu0
        %v793 = vpop.trf.xlu0
        %v794 = vpop.trf.xlu0
        %v795 = vpop.trf.xlu0
        %v796 = vpop.trf.xlu0
        %v797 = vpop.trf.xlu0
        %v798 = vpop.trf.xlu0
        %v799 = vpop.trf.xlu0
        %v800 = vpop.trf.xlu0
        %802 = vset.pattern.permute.xlu0 0
        %803 = vperm.xlu0 %802, %v767
        %v804 = vpop.permute.xlu0 %803
        %v806 = vlaneseq
        %v807 = vshrl.u32 %v806, 7
        %v808 = vsub.s32 0, %v807
        %v809 = vrot.slane %v785, %v808
        %v810 = vsub.f32 %v804, %v809
        %811 = vset.pattern.permute.xlu0 1
        %812 = vperm.xlu0 %811, %v767
        %v813 = vpop.permute.xlu0 %812
        %v815 = vlaneseq
        %v816 = vshrl.u32 %v815, 7
        %v817 = vsub.s32 1, %v816
        %v818 = vrot.slane %v785, %v817
        %v819 = vsub.f32 %v813, %v818
        %820 = vset.pattern.permute.xlu0 2
        %821 = vperm.xlu0 %820, %v767
        %v822 = vpop.permute.xlu0 %821
        %v824 = vlaneseq
        %v825 = vshrl.u32 %v824, 7
        %v826 = vsub.s32 2, %v825
        %v827 = vrot.slane %v785, %v826
        %v828 = vsub.f32 %v822, %v827
        %v829 = vmul.f32 %v810, %v810
        %v830 = vmul.f32 %v819, %v819
        %v831 = vadd.f32 %v829, %v830
        %v832 = vmul.f32 %v828, %v828
        %v833 = vadd.f32 %v831, %v832
        %v834 = vlaneseq
        %v835 = vshrl.u32 %v834, 7
        %v836 = vsub.s32 0, %v835
        %v837 = vrot.slane %v833, %v836
        %839 = vbcast.lane.b32.xlu0 %v837, 256
        %v840 = vpop.permute.xlu0 %839
        %v841 = vlaneseq
        %v842 = vshrl.u32 %v841, 7
        %v843 = vsub.s32 1, %v842
        %v844 = vrot.slane %v833, %v843
        %846 = vbcast.lane.b32.xlu0 %v844, 256
        %v847 = vpop.permute.xlu0 %846
        %v848 = vlaneseq
        %v849 = vshrl.u32 %v848, 7
        %v850 = vsub.s32 2, %v849
        %v851 = vrot.slane %v833, %v850
        %853 = vbcast.lane.b32.xlu0 %v851, 256
        %v854 = vpop.permute.xlu0 %853
        %v855 = vlaneseq
        %v856 = vshrl.u32 %v855, 7
        %v857 = vsub.s32 3, %v856
        %v858 = vrot.slane %v833, %v857
        %860 = vbcast.lane.b32.xlu0 %v858, 256
        %v861 = vpop.permute.xlu0 %860
        %v862 = vlaneseq
        %v863 = vshrl.u32 %v862, 7
        %v864 = vsub.s32 4, %v863
        %v865 = vrot.slane %v833, %v864
        %867 = vbcast.lane.b32.xlu0 %v865, 256
        %v868 = vpop.permute.xlu0 %867
        %v869 = vlaneseq
        %v870 = vshrl.u32 %v869, 7
        %v871 = vsub.s32 5, %v870
        %v872 = vrot.slane %v833, %v871
        %874 = vbcast.lane.b32.xlu0 %v872, 256
        %v875 = vpop.permute.xlu0 %874
        %v876 = vlaneseq
        %v877 = vshrl.u32 %v876, 7
        %v878 = vsub.s32 6, %v877
        %v879 = vrot.slane %v833, %v878
        %881 = vbcast.lane.b32.xlu0 %v879, 256
        %v882 = vpop.permute.xlu0 %881
        %v883 = vlaneseq
        %v884 = vshrl.u32 %v883, 7
        %v885 = vsub.s32 7, %v884
        %v886 = vrot.slane %v833, %v885
        %888 = vbcast.lane.b32.xlu0 %v886, 256
        %v889 = vpop.permute.xlu0 %888
        %v890 = vld [vmem:[%s725] sm:$0xff]
        %v891 = vld [vmem:[%s725 + $0x8] sm:$0xff]
        %v894 = vcombine.low %v890, %v891
        %v895 = vcombine.high %v890, %v891
        %v897 = vunpack.c.l.s4 1966171168
        %v898 = vunpack.c.0.s8 %v897
        %v899 = vlaneseq
        %v900 = vshrl.u32 %v899, 7
        %v901 = vsub.s32 %v898, %v900
        %v902 = vrot.slane %v894, %v901
        %v904 = vunpack.c.l.s4 1966171168
        %v905 = vunpack.c.0.s8 %v904
        %v906 = vlaneseq
        %v907 = vshrl.u32 %v906, 7
        %v908 = vsub.s32 %v905, %v907
        %v909 = vrot.slane %v895, %v908
        %v910 = vcombine.high %v902, %v902
        %v911 = vcombine.high %v909, %v909
        %v913 = vunpack.c.l.s4 1966171168
        %v914 = vunpack.c.0.s8 %v913
        %v915 = vlaneseq
        %v916 = vshrl.u32 %v915, 7
        %v917 = vsub.s32 %v914, %v916
        %v918 = vrot.slane %v902, %v917
        %v920 = vunpack.c.l.s4 1966171168
        %v921 = vunpack.c.0.s8 %v920
        %v922 = vlaneseq
        %v923 = vshrl.u32 %v922, 7
        %v924 = vsub.s32 %v921, %v923
        %v925 = vrot.slane %v909, %v924
        %v927 = vunpack.c.l.s4 1966171168
        %v928 = vunpack.c.0.s8 %v927
        %v929 = vlaneseq
        %v930 = vshrl.u32 %v929, 7
        %v931 = vsub.s32 %v928, %v930
        %v932 = vrot.slane %v910, %v931
        %v934 = vunpack.c.l.s4 1966171168
        %v935 = vunpack.c.0.s8 %v934
        %v936 = vlaneseq
        %v937 = vshrl.u32 %v936, 7
        %v938 = vsub.s32 %v935, %v937
        %v939 = vrot.slane %v911, %v938
        %v940 = vcombine.high %v918, %v918
        %v941 = vcombine.high %v925, %v925
        %v942 = vcombine.high %v932, %v932
        %v943 = vcombine.high %v939, %v939
        %v944 = vld [vmem:[%s734] sm:$0xff]
        %v945 = vld [vmem:[%s734 + $0x8] sm:$0xff]
        %v946 = vlaneseq
        %v947 = vshrl.u32 %v946, 7
        %v948 = vsub.s32 0, %v947
        %v949 = vrot.slane %v918, %v948
        %v950 = vlaneseq
        %v951 = vshrl.u32 %v950, 7
        %v952 = vsub.s32 1, %v951
        %v953 = vrot.slane %v918, %v952
        %v954 = vlaneseq
        %v955 = vshrl.u32 %v954, 7
        %v956 = vsub.s32 0, %v955
        %v957 = vrot.slane %v932, %v956
        %v958 = vlaneseq
        %v959 = vshrl.u32 %v958, 7
        %v960 = vsub.s32 1, %v959
        %v961 = vrot.slane %v932, %v960
        %v962 = vlaneseq
        %v963 = vshrl.u32 %v962, 7
        %v964 = vsub.s32 0, %v963
        %v965 = vrot.slane %v940, %v964
        %v966 = vlaneseq
        %v967 = vshrl.u32 %v966, 7
        %v968 = vsub.s32 1, %v967
        %v969 = vrot.slane %v940, %v968
        %v970 = vlaneseq
        %v971 = vshrl.u32 %v970, 7
        %v972 = vsub.s32 0, %v971
        %v973 = vrot.slane %v942, %v972
        %v974 = vlaneseq
        %v975 = vshrl.u32 %v974, 7
        %v976 = vsub.s32 1, %v975
        %v977 = vrot.slane %v942, %v976
        %v978 = vlaneseq
        %v979 = vshrl.u32 %v978, 7
        %v980 = vsub.s32 0, %v979
        %v981 = vrot.slane %v925, %v980
        %v982 = vlaneseq
        %v983 = vshrl.u32 %v982, 7
        %v984 = vsub.s32 1, %v983
        %v985 = vrot.slane %v925, %v984
        %v986 = vlaneseq
        %v987 = vshrl.u32 %v986, 7
        %v988 = vsub.s32 0, %v987
        %v989 = vrot.slane %v939, %v988
        %v990 = vlaneseq
        %v991 = vshrl.u32 %v990, 7
        %v992 = vsub.s32 1, %v991
        %v993 = vrot.slane %v939, %v992
        %v994 = vlaneseq
        %v995 = vshrl.u32 %v994, 7
        %v996 = vsub.s32 0, %v995
        %v997 = vrot.slane %v941, %v996
        %v998 = vlaneseq
        %v999 = vshrl.u32 %v998, 7
        %v1000 = vsub.s32 1, %v999
        %v1001 = vrot.slane %v941, %v1000
        %v1002 = vlaneseq
        %v1003 = vshrl.u32 %v1002, 7
        %v1004 = vsub.s32 0, %v1003
        %v1005 = vrot.slane %v943, %v1004
        %v1006 = vlaneseq
        %v1007 = vshrl.u32 %v1006, 7
        %v1008 = vsub.s32 1, %v1007
        %v1009 = vrot.slane %v943, %v1008
        %v1026 = vadd.f32 %v949, %v944
        %v1027 = vadd.f32 %v953, %v945
        %v1028 = vadd.f32 %v957, %v944
        %v1029 = vadd.f32 %v961, %v945
        %v1030 = vadd.f32 %v965, %v944
        %v1031 = vadd.f32 %v969, %v945
        %v1032 = vadd.f32 %v973, %v944
        %v1033 = vadd.f32 %v977, %v945
        %v1034 = vadd.f32 %v981, %v944
        %v1035 = vadd.f32 %v985, %v945
        %v1036 = vadd.f32 %v989, %v944
        %v1037 = vadd.f32 %v993, %v945
        %v1038 = vadd.f32 %v997, %v944
        %v1039 = vadd.f32 %v1001, %v945
        %v1040 = vadd.f32 %v1005, %v944
        %v1041 = vadd.f32 %v1009, %v945
        %v1042 = vld [vmem:[%s5] sm:$0x3]
        %v1044 = vlaneseq
        %v1045 = vshrl.u32 %v1044, 7
        %v1046 = vsub.s32 0, %v1045
        %v1047 = vrot.slane %v1042, %v1046
        %v1048 = vlaneseq
        %v1049 = vshrl.u32 %v1048, 7
        %v1050 = vsub.s32 1, %v1049
        %v1051 = vrot.slane %v1042, %v1050
        %v1054 = vmul.f32 %v840, %v1047
        %v1055 = vmul.f32 %v840, %v1051
        %v1056 = vmul.f32 %v847, %v1047
        %v1057 = vmul.f32 %v847, %v1051
        %v1058 = vmul.f32 %v854, %v1047
        %v1059 = vmul.f32 %v854, %v1051
        %v1060 = vmul.f32 %v861, %v1047
        %v1061 = vmul.f32 %v861, %v1051
        %v1062 = vmul.f32 %v868, %v1047
        %v1063 = vmul.f32 %v868, %v1051
        %v1064 = vmul.f32 %v875, %v1047
        %v1065 = vmul.f32 %v875, %v1051
        %v1066 = vmul.f32 %v882, %v1047
        %v1067 = vmul.f32 %v882, %v1051
        %v1068 = vmul.f32 %v889, %v1047
        %v1069 = vmul.f32 %v889, %v1051
        %v1070 = vadd.f32 %v1026, %v1054
        %v1071 = vadd.f32 %v1027, %v1055
        %v1072 = vadd.f32 %v1028, %v1056
        %v1073 = vadd.f32 %v1029, %v1057
        %v1074 = vadd.f32 %v1030, %v1058
        %v1075 = vadd.f32 %v1031, %v1059
        %v1076 = vadd.f32 %v1032, %v1060
        %v1077 = vadd.f32 %v1033, %v1061
        %v1078 = vadd.f32 %v1034, %v1062
        %v1079 = vadd.f32 %v1035, %v1063
        %v1080 = vadd.f32 %v1036, %v1064
        %v1081 = vadd.f32 %v1037, %v1065
        %v1082 = vadd.f32 %v1038, %v1066
        %v1083 = vadd.f32 %v1039, %v1067
        %v1084 = vadd.f32 %v1040, %v1068
        %v1085 = vadd.f32 %v1041, %v1069
        %v1086 = vmul.f32 %v1070, 0.5
        %v1087 = vmul.f32 %v1071, 0.5
        %v1088 = vmul.f32 %v1072, 0.5
        %v1089 = vmul.f32 %v1073, 0.5
        %v1090 = vmul.f32 %v1074, 0.5
        %v1091 = vmul.f32 %v1075, 0.5
        %v1092 = vmul.f32 %v1076, 0.5
        %v1093 = vmul.f32 %v1077, 0.5
        %v1094 = vmul.f32 %v1078, 0.5
        %v1095 = vmul.f32 %v1079, 0.5
        %v1096 = vmul.f32 %v1080, 0.5
        %v1097 = vmul.f32 %v1081, 0.5
        %v1098 = vmul.f32 %v1082, 0.5
        %v1099 = vmul.f32 %v1083, 0.5
        %v1100 = vmul.f32 %v1084, 0.5
        %v1101 = vmul.f32 %v1085, 0.5
        %v1102 = vtanh.pop %v1086
        %v1103 = vtanh.pop %v1087
        %v1104 = vtanh.pop %v1088
        %v1105 = vtanh.pop %v1089
        %v1106 = vtanh.pop %v1090
        %v1107 = vtanh.pop %v1091
        %v1108 = vtanh.pop %v1092
        %v1109 = vtanh.pop %v1093
        %v1110 = vtanh.pop %v1094
        %v1111 = vtanh.pop %v1095
        %v1112 = vtanh.pop %v1096
        %v1113 = vtanh.pop %v1097
        %v1114 = vtanh.pop %v1098
        %v1115 = vtanh.pop %v1099
        %v1116 = vtanh.pop %v1100
        %v1117 = vtanh.pop %v1101
        %v1118 = vmul.f32 %v1102, 0.5
        %v1119 = vmul.f32 %v1103, 0.5
        %v1120 = vmul.f32 %v1104, 0.5
        %v1121 = vmul.f32 %v1105, 0.5
        %v1122 = vmul.f32 %v1106, 0.5
        %v1123 = vmul.f32 %v1107, 0.5
        %v1124 = vmul.f32 %v1108, 0.5
        %v1125 = vmul.f32 %v1109, 0.5
        %v1126 = vmul.f32 %v1110, 0.5
        %v1127 = vmul.f32 %v1111, 0.5
        %v1128 = vmul.f32 %v1112, 0.5
        %v1129 = vmul.f32 %v1113, 0.5
        %v1130 = vmul.f32 %v1114, 0.5
        %v1131 = vmul.f32 %v1115, 0.5
        %v1132 = vmul.f32 %v1116, 0.5
        %v1133 = vmul.f32 %v1117, 0.5
        %v1134 = vadd.f32 %v1118, 0.5
        %v1135 = vadd.f32 %v1119, 0.5
        %v1136 = vadd.f32 %v1120, 0.5
        %v1137 = vadd.f32 %v1121, 0.5
        %v1138 = vadd.f32 %v1122, 0.5
        %v1139 = vadd.f32 %v1123, 0.5
        %v1140 = vadd.f32 %v1124, 0.5
        %v1141 = vadd.f32 %v1125, 0.5
        %v1142 = vadd.f32 %v1126, 0.5
        %v1143 = vadd.f32 %v1127, 0.5
        %v1144 = vadd.f32 %v1128, 0.5
        %v1145 = vadd.f32 %v1129, 0.5
        %v1146 = vadd.f32 %v1130, 0.5
        %v1147 = vadd.f32 %v1131, 0.5
        %v1148 = vadd.f32 %v1132, 0.5
        %v1149 = vadd.f32 %v1133, 0.5
        %v1150 = vmul.f32 %v1070, %v1134
        %v1151 = vmul.f32 %v1071, %v1135
        %v1152 = vmul.f32 %v1072, %v1136
        %v1153 = vmul.f32 %v1073, %v1137
        %v1154 = vmul.f32 %v1074, %v1138
        %v1155 = vmul.f32 %v1075, %v1139
        %v1156 = vmul.f32 %v1076, %v1140
        %v1157 = vmul.f32 %v1077, %v1141
        %v1158 = vmul.f32 %v1078, %v1142
        %v1159 = vmul.f32 %v1079, %v1143
        %v1160 = vmul.f32 %v1080, %v1144
        %v1161 = vmul.f32 %v1081, %v1145
        %v1162 = vmul.f32 %v1082, %v1146
        %v1163 = vmul.f32 %v1083, %v1147
        %v1164 = vmul.f32 %v1084, %v1148
        %v1165 = vmul.f32 %v1085, %v1149
        %v1166 = vld [vmem:[%s6] sm:$0xff]
        %v1167 = vld [vmem:[%s6 + $0x8] sm:$0xff]
        %v1168 = vld [vmem:[%s6 + $0x10] sm:$0xff]
        %v1169 = vld [vmem:[%s6 + $0x18] sm:$0xff]
        %v1170 = vld [vmem:[%s6 + $0x20] sm:$0xff]
        %v1171 = vld [vmem:[%s6 + $0x28] sm:$0xff]
        %v1172 = vld [vmem:[%s6 + $0x30] sm:$0xff]
        %v1173 = vld [vmem:[%s6 + $0x38] sm:$0xff]
        %v1174 = vld [vmem:[%s6 + $0x40] sm:$0xff]
        %v1175 = vld [vmem:[%s6 + $0x48] sm:$0xff]
        %v1176 = vld [vmem:[%s6 + $0x50] sm:$0xff]
        %v1177 = vld [vmem:[%s6 + $0x58] sm:$0xff]
        %v1178 = vld [vmem:[%s6 + $0x60] sm:$0xff]
        %v1179 = vld [vmem:[%s6 + $0x68] sm:$0xff]
        %v1180 = vld [vmem:[%s6 + $0x70] sm:$0xff]
        %v1181 = vld [vmem:[%s6 + $0x78] sm:$0xff]
        %v1182 = vld [vmem:[%s6 + $0x80] sm:$0xff]
        %v1183 = vld [vmem:[%s6 + $0x88] sm:$0xff]
        %v1184 = vld [vmem:[%s6 + $0x90] sm:$0xff]
        %v1185 = vld [vmem:[%s6 + $0x98] sm:$0xff]
        %v1186 = vld [vmem:[%s6 + $0xa0] sm:$0x3f]
        %v1187 = vld [vmem:[%s7] sm:$0x1]
        %v1189 = vlaneseq
        %v1190 = vshrl.u32 %v1189, 7
        %v1191 = vsub.s32 0, %v1190
        %v1192 = vrot.slane %v1187, %v1191
        %vm1194 = vcmask 310272
        %v1196 = vsel %vm1194, %v1151, 0
        %v1199 = vsel %vm1194, %v1153, 0
        %v1202 = vsel %vm1194, %v1155, 0
        %v1205 = vsel %vm1194, %v1157, 0
        %v1208 = vsel %vm1194, %v1159, 0
        %v1211 = vsel %vm1194, %v1161, 0
        %v1214 = vsel %vm1194, %v1163, 0
        %v1217 = vsel %vm1194, %v1165, 0
        %vm1219 = vcmask 1045504
        %v1221 = vsel %vm1219, %v1186, 0
        %1223 = vmatprep.subr.mxu0 0.0
        %1224 = vmatpush1.msra.mxu0 %v1166
        %1225 = vmatprep.subr.mxu0 0.0
        %1226 = vmatpush1.msra.mxu0 %v1167
        %1227 = vmatprep.subr.mxu0 0.0
        %1228 = vmatpush1.msra.mxu0 %v1168
        %1229 = vmatprep.subr.mxu0 0.0
        %1230 = vmatpush1.msra.mxu0 %v1169
        %1231 = vmatprep.subr.mxu0 0.0
        %1232 = vmatpush1.msra.mxu0 %v1170
        %1233 = vmatprep.subr.mxu0 0.0
        %1234 = vmatpush1.msra.mxu0 %v1171
        %1235 = vmatprep.subr.mxu0 0.0
        %1236 = vmatpush1.msra.mxu0 %v1172
        %1237 = vmatprep.subr.mxu0 0.0
        %1238 = vmatpush1.msra.mxu0 %v1173
        %1239 = vmatprep.subr.mxu0 0.0
        %1240 = vmatpush1.msra.mxu0 %v1174
        %1241 = vmatprep.subr.mxu0 0.0
        %1242 = vmatpush1.msra.mxu0 %v1175
        %1243 = vmatprep.subr.mxu0 0.0
        %1244 = vmatpush1.msra.mxu0 %v1176
        %1245 = vmatprep.subr.mxu0 0.0
        %1246 = vmatpush1.msra.mxu0 %v1177
        %1247 = vmatprep.subr.mxu0 0.0
        %1248 = vmatpush1.msra.mxu0 %v1178
        %1249 = vmatprep.subr.mxu0 0.0
        %1250 = vmatpush1.msra.mxu0 %v1179
        %1251 = vmatprep.subr.mxu0 0.0
        %1252 = vmatpush1.msra.mxu0 %v1180
        %1253 = vmatprep.subr.mxu0 0.0
        %1254 = vmatpush1.msra.mxu0 %v1181
        %1255 = vmatprep.subr.mxu0 0.0
        %1256 = vmatpush1.msra.mxu0 %v1182
        %1257 = vmatprep.subr.mxu0 0.0
        %1258 = vmatpush1.msra.mxu0 %v1183
        %1259 = vmatprep.subr.mxu0 0.0
        %1260 = vmatpush1.msra.mxu0 %v1184
        %1261 = vmatprep.subr.mxu0 0.0
        %1262 = vmatpush1.msra.mxu0 %v1185
        %1263 = vmatprep.subr.mxu0 0.0
        %1264 = vmatpush1.msra.mxu0 %v1221
        %1265 = vmatprep.subr.mxu0 0.0
        %1266 = vmatpush1.msra.mxu0 0.0
        %1267 = vmatprep.subr.mxu0 0.0
        %1268 = vmatpush1.msra.mxu0 0.0
        %1269 = vmatprep.subr.mxu0 0.0
        %1270 = vmatpush1.msra.mxu0 0.0
        %1271 = vmatprep.subr.mxu0 0.0
        %1272 = vmatpush1.msra.mxu0 0.0
        %1273 = vmatprep.subr.mxu0 0.0
        %1274 = vmatpush1.msra.mxu0 0.0
        %1275 = vmatprep.subr.mxu0 0.0
        %1276 = vmatpush1.msra.mxu0 0.0
        %1277 = vmatprep.subr.mxu0 0.0
        %1278 = vmatpush1.msra.mxu0 0.0
        %1279 = vmatprep.subr.mxu0 0.0
        %1280 = vmatpush1.msra.mxu0 0.0
        %1281 = vmatprep.subr.mxu0 0.0
        %1282 = vmatpush1.msra.mxu0 0.0
        %1283 = vmatprep.subr.mxu0 0.0
        %1284 = vmatpush1.msra.mxu0 0.0
        %1285 = vmatprep.subr.mxu0 0.0
        %1286 = vmatpush1.msra.mxu0 0.0
        %1287 = vmatprep.mubr.f32.mxu0 %v1196
        %1288 = vmatmul.mubr.f32.gmra.mrb[0].mxu0 %v1150
        %v1289 = vpop.f32.mrb[0].mxu0
        %v1290 = vadd.f32 %v1192, %v1289
        %v1291 = vpop.f32.mrb[0].mxu0
        %1292 = vmatprep.mubr.f32.mxu0 %v1199
        %1293 = vmatmul.mubr.f32.gmra.mrb[0].mxu0 %v1152
        %v1294 = vpop.f32.mrb[0].mxu0
        %v1295 = vadd.f32 %v1192, %v1294
        %v1296 = vpop.f32.mrb[0].mxu0
        %1297 = vmatprep.mubr.f32.mxu0 %v1202
        %1298 = vmatmul.mubr.f32.gmra.mrb[0].mxu0 %v1154
        %v1299 = vpop.f32.mrb[0].mxu0
        %v1300 = vadd.f32 %v1192, %v1299
        %v1301 = vpop.f32.mrb[0].mxu0
        %1302 = vmatprep.mubr.f32.mxu0 %v1205
        %1303 = vmatmul.mubr.f32.gmra.mrb[0].mxu0 %v1156
        %v1304 = vpop.f32.mrb[0].mxu0
        %v1305 = vadd.f32 %v1192, %v1304
        %v1306 = vpop.f32.mrb[0].mxu0
        %1307 = vmatprep.mubr.f32.mxu0 %v1208
        %1308 = vmatmul.mubr.f32.gmra.mrb[0].mxu0 %v1158
        %v1309 = vpop.f32.mrb[0].mxu0
        %v1310 = vadd.f32 %v1192, %v1309
        %v1311 = vpop.f32.mrb[0].mxu0
        %1312 = vmatprep.mubr.f32.mxu0 %v1211
        %1313 = vmatmul.mubr.f32.gmra.mrb[0].mxu0 %v1160
        %v1314 = vpop.f32.mrb[0].mxu0
        %v1315 = vadd.f32 %v1192, %v1314
        %v1316 = vpop.f32.mrb[0].mxu0
        %1317 = vmatprep.mubr.f32.mxu0 %v1214
        %1318 = vmatmul.mubr.f32.gmra.mrb[0].mxu0 %v1162
        %v1319 = vpop.f32.mrb[0].mxu0
        %v1320 = vadd.f32 %v1192, %v1319
        %v1321 = vpop.f32.mrb[0].mxu0
        %1322 = vmatprep.mubr.f32.mxu0 %v1217
        %1323 = vmatmul.mubr.f32.gmra.mrb[0].mxu0 %v1164
        %v1324 = vpop.f32.mrb[0].mxu0
        %v1325 = vadd.f32 %v1192, %v1324
        %v1326 = vpop.f32.mrb[0].mxu0
        %1327 = vdwg.mxu0
        %v1328 = vmul.f32 %v1290, 0.5
        %v1329 = vmul.f32 %v1295, 0.5
        %v1330 = vmul.f32 %v1300, 0.5
        %v1331 = vmul.f32 %v1305, 0.5
        %v1332 = vmul.f32 %v1310, 0.5
        %v1333 = vmul.f32 %v1315, 0.5
        %v1334 = vmul.f32 %v1320, 0.5
        %v1335 = vmul.f32 %v1325, 0.5
        %v1336 = vtanh.pop %v1328
        %v1337 = vtanh.pop %v1329
        %v1338 = vtanh.pop %v1330
        %v1339 = vtanh.pop %v1331
        %v1340 = vtanh.pop %v1332
        %v1341 = vtanh.pop %v1333
        %v1342 = vtanh.pop %v1334
        %v1343 = vtanh.pop %v1335
        %v1344 = vmul.f32 %v1336, 0.5
        %v1345 = vmul.f32 %v1337, 0.5
        %v1346 = vmul.f32 %v1338, 0.5
        %v1347 = vmul.f32 %v1339, 0.5
        %v1348 = vmul.f32 %v1340, 0.5
        %v1349 = vmul.f32 %v1341, 0.5
        %v1350 = vmul.f32 %v1342, 0.5
        %v1351 = vmul.f32 %v1343, 0.5
        %v1352 = vadd.f32 %v1344, 0.5
        %v1353 = vadd.f32 %v1345, 0.5
        %v1354 = vadd.f32 %v1346, 0.5
        %v1355 = vadd.f32 %v1347, 0.5
        %v1356 = vadd.f32 %v1348, 0.5
        %v1357 = vadd.f32 %v1349, 0.5
        %v1358 = vadd.f32 %v1350, 0.5
        %v1359 = vadd.f32 %v1351, 0.5
        %v1360 = vmul.f32 %v1290, %v1352
        %v1361 = vmul.f32 %v1295, %v1353
        %v1362 = vmul.f32 %v1300, %v1354
        %v1363 = vmul.f32 %v1305, %v1355
        %v1364 = vmul.f32 %v1310, %v1356
        %v1365 = vmul.f32 %v1315, %v1357
        %v1366 = vmul.f32 %v1320, %v1358
        %v1367 = vmul.f32 %v1325, %v1359
        %v1368 = vld [vmem:[#allocation2] sm:$0xff]
        %vm1369 = vcmask 261120
        %v1370 = vsel %vm1369, %v1360, 0.0
        %v1371 = vrot.slane %v1370, 4
        %v1372 = vadd.f32 %v1370, %v1371
        %v1373 = vrot.slane %v1372, 2
        %v1374 = vadd.f32 %v1372, %v1373
        %v1375 = vrot.slane %v1374, 1
        %v1376 = vadd.f32 %v1374, %v1375
        %v1377 = vsel %vm1369, %v1361, 0.0
        %v1378 = vrot.slane %v1377, 4
        %v1379 = vadd.f32 %v1377, %v1378
        %v1380 = vrot.slane %v1379, 2
        %v1381 = vadd.f32 %v1379, %v1380
        %v1382 = vrot.slane %v1381, 1
        %v1383 = vadd.f32 %v1381, %v1382
        %v1384 = vsel %vm1369, %v1362, 0.0
        %v1385 = vrot.slane %v1384, 4
        %v1386 = vadd.f32 %v1384, %v1385
        %v1387 = vrot.slane %v1386, 2
        %v1388 = vadd.f32 %v1386, %v1387
        %v1389 = vrot.slane %v1388, 1
        %v1390 = vadd.f32 %v1388, %v1389
        %v1391 = vsel %vm1369, %v1363, 0.0
        %v1392 = vrot.slane %v1391, 4
        %v1393 = vadd.f32 %v1391, %v1392
        %v1394 = vrot.slane %v1393, 2
        %v1395 = vadd.f32 %v1393, %v1394
        %v1396 = vrot.slane %v1395, 1
        %v1397 = vadd.f32 %v1395, %v1396
        %v1398 = vsel %vm1369, %v1364, 0.0
        %v1399 = vrot.slane %v1398, 4
        %v1400 = vadd.f32 %v1398, %v1399
        %v1401 = vrot.slane %v1400, 2
        %v1402 = vadd.f32 %v1400, %v1401
        %v1403 = vrot.slane %v1402, 1
        %v1404 = vadd.f32 %v1402, %v1403
        %v1405 = vsel %vm1369, %v1365, 0.0
        %v1406 = vrot.slane %v1405, 4
        %v1407 = vadd.f32 %v1405, %v1406
        %v1408 = vrot.slane %v1407, 2
        %v1409 = vadd.f32 %v1407, %v1408
        %v1410 = vrot.slane %v1409, 1
        %v1411 = vadd.f32 %v1409, %v1410
        %v1412 = vsel %vm1369, %v1366, 0.0
        %v1413 = vrot.slane %v1412, 4
        %v1414 = vadd.f32 %v1412, %v1413
        %v1415 = vrot.slane %v1414, 2
        %v1416 = vadd.f32 %v1414, %v1415
        %v1417 = vrot.slane %v1416, 1
        %v1418 = vadd.f32 %v1416, %v1417
        %v1419 = vsel %vm1369, %v1367, 0.0
        %v1420 = vrot.slane %v1419, 4
        %v1421 = vadd.f32 %v1419, %v1420
        %v1422 = vrot.slane %v1421, 2
        %v1423 = vadd.f32 %v1421, %v1422
        %v1424 = vrot.slane %v1423, 1
        %v1425 = vadd.f32 %v1423, %v1424
        %vm1434 = vcmask 1041409
        %v1435 = vsel %vm1434, %v1383, %v1376
        %vm1436 = vcmask 1042434
        %v1437 = vsel %vm1436, %v1390, %v1435
        %vm1438 = vcmask 1043459
        %v1439 = vsel %vm1438, %v1397, %v1437
        %vm1440 = vcmask 1044484
        %v1441 = vsel %vm1440, %v1404, %v1439
        %vm1442 = vcmask 1045509
        %v1443 = vsel %vm1442, %v1411, %v1441
        %vm1444 = vcmask 1046534
        %v1445 = vsel %vm1444, %v1418, %v1443
        %vm1446 = vcmask 1047559
        %v1447 = vsel %vm1446, %v1425, %v1445
        %v1449 = vadd.f32 %v1368, %v1447
        %1450 = vst.msk [vmem:[#allocation2] sm:$0xff] %vm1369, %v1449
        %v1451 = vld [vmem:[%s8] sm:$0xff]
        %v1452 = vld [vmem:[%s8 + $0x8] sm:$0xff]
        %v1453 = vld [vmem:[%s8 + $0x10] sm:$0xff]
        %v1454 = vld [vmem:[%s8 + $0x18] sm:$0xff]
        %v1455 = vld [vmem:[%s9] sm:$0x1]
        %v1457 = vlaneseq
        %v1458 = vshrl.u32 %v1457, 7
        %v1459 = vsub.s32 0, %v1458
        %v1460 = vrot.slane %v1455, %v1459
        %v1463 = vsel %vm1369, %v1360, 0
        %v1466 = vsel %vm1369, %v1361, 0
        %v1469 = vsel %vm1369, %v1362, 0
        %v1472 = vsel %vm1369, %v1363, 0
        %v1475 = vsel %vm1369, %v1364, 0
        %v1478 = vsel %vm1369, %v1365, 0
        %v1481 = vsel %vm1369, %v1366, 0
        %v1484 = vsel %vm1369, %v1367, 0
        %1486 = vmatprep.subr.mxu0 0.0
        %1487 = vmatpush1.msra.mxu0 %v1451
        %1488 = vmatprep.subr.mxu0 0.0
        %1489 = vmatpush1.msra.mxu0 %v1452
        %1490 = vmatprep.subr.mxu0 0.0
        %1491 = vmatpush1.msra.mxu0 %v1453
        %1492 = vmatprep.subr.mxu0 0.0
        %1493 = vmatpush1.msra.mxu0 %v1454
        %1494 = vmatprep.subr.mxu0 0.0
        %1495 = vmatpush1.msra.mxu0 0.0
        %1496 = vmatprep.subr.mxu0 0.0
        %1497 = vmatpush1.msra.mxu0 0.0
        %1498 = vmatprep.subr.mxu0 0.0
        %1499 = vmatpush1.msra.mxu0 0.0
        %1500 = vmatprep.subr.mxu0 0.0
        %1501 = vmatpush1.msra.mxu0 0.0
        %1502 = vmatprep.subr.mxu0 0.0
        %1503 = vmatpush1.msra.mxu0 0.0
        %1504 = vmatprep.subr.mxu0 0.0
        %1505 = vmatpush1.msra.mxu0 0.0
        %1506 = vmatprep.subr.mxu0 0.0
        %1507 = vmatpush1.msra.mxu0 0.0
        %1508 = vmatprep.subr.mxu0 0.0
        %1509 = vmatpush1.msra.mxu0 0.0
        %1510 = vmatprep.subr.mxu0 0.0
        %1511 = vmatpush1.msra.mxu0 0.0
        %1512 = vmatprep.subr.mxu0 0.0
        %1513 = vmatpush1.msra.mxu0 0.0
        %1514 = vmatprep.subr.mxu0 0.0
        %1515 = vmatpush1.msra.mxu0 0.0
        %1516 = vmatprep.subr.mxu0 0.0
        %1517 = vmatpush1.msra.mxu0 0.0
        %1518 = vmatprep.subr.mxu0 0.0
        %1519 = vmatpush1.msra.mxu0 0.0
        %1520 = vmatprep.subr.mxu0 0.0
        %1521 = vmatpush1.msra.mxu0 0.0
        %1522 = vmatprep.subr.mxu0 0.0
        %1523 = vmatpush1.msra.mxu0 0.0
        %1524 = vmatprep.subr.mxu0 0.0
        %1525 = vmatpush1.msra.mxu0 0.0
        %1526 = vmatprep.subr.mxu0 0.0
        %1527 = vmatpush1.msra.mxu0 0.0
        %1528 = vmatprep.subr.mxu0 0.0
        %1529 = vmatpush1.msra.mxu0 0.0
        %1530 = vmatprep.subr.mxu0 0.0
        %1531 = vmatpush1.msra.mxu0 0.0
        %1532 = vmatprep.subr.mxu0 0.0
        %1533 = vmatpush1.msra.mxu0 0.0
        %1534 = vmatprep.subr.mxu0 0.0
        %1535 = vmatpush1.msra.mxu0 0.0
        %1536 = vmatprep.subr.mxu0 0.0
        %1537 = vmatpush1.msra.mxu0 0.0
        %1538 = vmatprep.subr.mxu0 0.0
        %1539 = vmatpush1.msra.mxu0 0.0
        %1540 = vmatprep.subr.mxu0 0.0
        %1541 = vmatpush1.msra.mxu0 0.0
        %1542 = vmatprep.subr.mxu0 0.0
        %1543 = vmatpush1.msra.mxu0 0.0
        %1544 = vmatprep.subr.mxu0 0.0
        %1545 = vmatpush1.msra.mxu0 0.0
        %1546 = vmatprep.subr.mxu0 0.0
        %1547 = vmatpush1.msra.mxu0 0.0
        %1548 = vmatprep.subr.mxu0 0.0
        %1549 = vmatpush1.msra.mxu0 0.0
        %1550 = vmatprep.mubr.f32.mxu0 0.0
        %1551 = vmatmul.mubr.f32.gmra.mrb[0].mxu0 %v1463
        %v1552 = vpop.f32.mrb[0].mxu0
        %v1553 = vadd.f32 %v1460, %v1552
        %v1554 = vpop.f32.mrb[0].mxu0
        %1555 = vmatprep.mubr.f32.mxu0 0.0
        %1556 = vmatmul.mubr.f32.gmra.mrb[0].mxu0 %v1466
        %v1557 = vpop.f32.mrb[0].mxu0
        %v1558 = vadd.f32 %v1460, %v1557
        %v1559 = vpop.f32.mrb[0].mxu0
        %1560 = vmatprep.mubr.f32.mxu0 0.0
        %1561 = vmatmul.mubr.f32.gmra.mrb[0].mxu0 %v1469
        %v1562 = vpop.f32.mrb[0].mxu0
        %v1563 = vadd.f32 %v1460, %v1562
        %v1564 = vpop.f32.mrb[0].mxu0
        %1565 = vmatprep.mubr.f32.mxu0 0.0
        %1566 = vmatmul.mubr.f32.gmra.mrb[0].mxu0 %v1472
        %v1567 = vpop.f32.mrb[0].mxu0
        %v1568 = vadd.f32 %v1460, %v1567
        %v1569 = vpop.f32.mrb[0].mxu0
        %1570 = vmatprep.mubr.f32.mxu0 0.0
        %1571 = vmatmul.mubr.f32.gmra.mrb[0].mxu0 %v1475
        %v1572 = vpop.f32.mrb[0].mxu0
        %v1573 = vadd.f32 %v1460, %v1572
        %v1574 = vpop.f32.mrb[0].mxu0
        %1575 = vmatprep.mubr.f32.mxu0 0.0
        %1576 = vmatmul.mubr.f32.gmra.mrb[0].mxu0 %v1478
        %v1577 = vpop.f32.mrb[0].mxu0
        %v1578 = vadd.f32 %v1460, %v1577
        %v1579 = vpop.f32.mrb[0].mxu0
        %1580 = vmatprep.mubr.f32.mxu0 0.0
        %1581 = vmatmul.mubr.f32.gmra.mrb[0].mxu0 %v1481
        %v1582 = vpop.f32.mrb[0].mxu0
        %v1583 = vadd.f32 %v1460, %v1582
        %v1584 = vpop.f32.mrb[0].mxu0
        %1585 = vmatprep.mubr.f32.mxu0 0.0
        %1586 = vmatmul.mubr.f32.gmra.mrb[0].mxu0 %v1484
        %v1587 = vpop.f32.mrb[0].mxu0
        %v1588 = vadd.f32 %v1460, %v1587
        %v1589 = vpop.f32.mrb[0].mxu0
        %1590 = vdwg.mxu0
        %v1591 = vmul.f32 %v1553, 0.5
        %v1592 = vmul.f32 %v1558, 0.5
        %v1593 = vmul.f32 %v1563, 0.5
        %v1594 = vmul.f32 %v1568, 0.5
        %v1595 = vmul.f32 %v1573, 0.5
        %v1596 = vmul.f32 %v1578, 0.5
        %v1597 = vmul.f32 %v1583, 0.5
        %v1598 = vmul.f32 %v1588, 0.5
        %v1599 = vtanh.pop %v1591
        %v1600 = vtanh.pop %v1592
        %v1601 = vtanh.pop %v1593
        %v1602 = vtanh.pop %v1594
        %v1603 = vtanh.pop %v1595
        %v1604 = vtanh.pop %v1596
        %v1605 = vtanh.pop %v1597
        %v1606 = vtanh.pop %v1598
        %v1607 = vmul.f32 %v1599, 0.5
        %v1608 = vmul.f32 %v1600, 0.5
        %v1609 = vmul.f32 %v1601, 0.5
        %v1610 = vmul.f32 %v1602, 0.5
        %v1611 = vmul.f32 %v1603, 0.5
        %v1612 = vmul.f32 %v1604, 0.5
        %v1613 = vmul.f32 %v1605, 0.5
        %v1614 = vmul.f32 %v1606, 0.5
        %v1615 = vadd.f32 %v1607, 0.5
        %v1616 = vadd.f32 %v1608, 0.5
        %v1617 = vadd.f32 %v1609, 0.5
        %v1618 = vadd.f32 %v1610, 0.5
        %v1619 = vadd.f32 %v1611, 0.5
        %v1620 = vadd.f32 %v1612, 0.5
        %v1621 = vadd.f32 %v1613, 0.5
        %v1622 = vadd.f32 %v1614, 0.5
        %v1623 = vmul.f32 %v1553, %v1615
        %v1624 = vmul.f32 %v1558, %v1616
        %v1625 = vmul.f32 %v1563, %v1617
        %v1626 = vmul.f32 %v1568, %v1618
        %v1627 = vmul.f32 %v1573, %v1619
        %v1628 = vmul.f32 %v1578, %v1620
        %v1629 = vmul.f32 %v1583, %v1621
        %v1630 = vmul.f32 %v1588, %v1622
        %v1631 = vld [vmem:[%s10] sm:$0x1]
        %v1633 = vlaneseq
        %v1634 = vshrl.u32 %v1633, 7
        %v1635 = vsub.s32 0, %v1634
        %v1636 = vrot.slane %v1631, %v1635
        %v1638 = vmul.f32 %v1623, %v1636
        %v1639 = vmul.f32 %v1624, %v1636
        %v1640 = vmul.f32 %v1625, %v1636
        %v1641 = vmul.f32 %v1626, %v1636
        %v1642 = vmul.f32 %v1627, %v1636
        %v1643 = vmul.f32 %v1628, %v1636
        %v1644 = vmul.f32 %v1629, %v1636
        %v1645 = vmul.f32 %v1630, %v1636
        %1646 = vadd.xlane.f32.xlu0 %v1638
        %v1647 = vpop.xlane.xlu0 %1646
        %1648 = vadd.xlane.f32.xlu0 %v1639
        %v1649 = vpop.xlane.xlu0 %1648
        %1650 = vadd.xlane.f32.xlu0 %v1640
        %v1651 = vpop.xlane.xlu0 %1650
        %1652 = vadd.xlane.f32.xlu0 %v1641
        %v1653 = vpop.xlane.xlu0 %1652
        %1654 = vadd.xlane.f32.xlu0 %v1642
        %v1655 = vpop.xlane.xlu0 %1654
        %1656 = vadd.xlane.f32.xlu0 %v1643
        %v1657 = vpop.xlane.xlu0 %1656
        %1658 = vadd.xlane.f32.xlu0 %v1644
        %v1659 = vpop.xlane.xlu0 %1658
        %1660 = vadd.xlane.f32.xlu0 %v1645
        %v1661 = vpop.xlane.xlu0 %1660
        %v1662 = vld [vmem:[#allocation4] sm:$0x1]
        %v1664 = vlaneseq
        %v1665 = vshrl.u32 %v1664, 7
        %v1666 = vsub.s32 0, %v1665
        %v1667 = vrot.slane %v1662, %v1666
        %1668 = vset.pattern.permute.xlu0 0
        %1669 = vperm.xlu0 %1668, %v1667
        %v1670 = vpop.permute.xlu0 %1669
        %v1672 = vadd.f32 %v1647, %v1670
        %v1673 = vadd.f32 %v1649, %v1670
        %v1674 = vadd.f32 %v1651, %v1670
        %v1675 = vadd.f32 %v1653, %v1670
        %v1676 = vadd.f32 %v1655, %v1670
        %v1677 = vadd.f32 %v1657, %v1670
        %v1678 = vadd.f32 %v1659, %v1670
        %v1679 = vadd.f32 %v1661, %v1670
        %v1680 = vmax.f32 %v833, 1e-16
        %v1681 = vrsqrt.pop %v1680
        %v1683 = vlaneseq
        %v1684 = vshrl.u32 %v1683, 7
        %v1685 = vsub.s32 0, %v1684
        %v1686 = vrot.slane %v1681, %v1685
        %1688 = vbcast.lane.b32.xlu0 %v1686, 256
        %v1689 = vpop.permute.xlu0 %1688
        %v1690 = vlaneseq
        %v1691 = vshrl.u32 %v1690, 7
        %v1692 = vsub.s32 1, %v1691
        %v1693 = vrot.slane %v1681, %v1692
        %1695 = vbcast.lane.b32.xlu0 %v1693, 256
        %v1696 = vpop.permute.xlu0 %1695
        %v1697 = vlaneseq
        %v1698 = vshrl.u32 %v1697, 7
        %v1699 = vsub.s32 2, %v1698
        %v1700 = vrot.slane %v1681, %v1699
        %1702 = vbcast.lane.b32.xlu0 %v1700, 256
        %v1703 = vpop.permute.xlu0 %1702
        %v1704 = vlaneseq
        %v1705 = vshrl.u32 %v1704, 7
        %v1706 = vsub.s32 3, %v1705
        %v1707 = vrot.slane %v1681, %v1706
        %1709 = vbcast.lane.b32.xlu0 %v1707, 256
        %v1710 = vpop.permute.xlu0 %1709
        %v1711 = vlaneseq
        %v1712 = vshrl.u32 %v1711, 7
        %v1713 = vsub.s32 4, %v1712
        %v1714 = vrot.slane %v1681, %v1713
        %1716 = vbcast.lane.b32.xlu0 %v1714, 256
        %v1717 = vpop.permute.xlu0 %1716
        %v1718 = vlaneseq
        %v1719 = vshrl.u32 %v1718, 7
        %v1720 = vsub.s32 5, %v1719
        %v1721 = vrot.slane %v1681, %v1720
        %1723 = vbcast.lane.b32.xlu0 %v1721, 256
        %v1724 = vpop.permute.xlu0 %1723
        %v1725 = vlaneseq
        %v1726 = vshrl.u32 %v1725, 7
        %v1727 = vsub.s32 6, %v1726
        %v1728 = vrot.slane %v1681, %v1727
        %1730 = vbcast.lane.b32.xlu0 %v1728, 256
        %v1731 = vpop.permute.xlu0 %1730
        %v1732 = vlaneseq
        %v1733 = vshrl.u32 %v1732, 7
        %v1734 = vsub.s32 7, %v1733
        %v1735 = vrot.slane %v1681, %v1734
        %1737 = vbcast.lane.b32.xlu0 %v1735, 256
        %v1738 = vpop.permute.xlu0 %1737
        %v1747 = vmul.f32 %v1672, %v1689
        %v1748 = vmul.f32 %v1673, %v1696
        %v1749 = vmul.f32 %v1674, %v1703
        %v1750 = vmul.f32 %v1675, %v1710
        %v1751 = vmul.f32 %v1676, %v1717
        %v1752 = vmul.f32 %v1677, %v1724
        %v1753 = vmul.f32 %v1678, %v1731
        %v1754 = vmul.f32 %v1679, %v1738
        %v1755 = vld [vmem:[#allocation3] sm:$0xff]
        %v1757 = vlaneseq
        %v1758 = vshrl.u32 %v1757, 7
        %v1759 = vsub.s32 0, %v1758
        %v1760 = vrot.slane %v810, %v1759
        %1762 = vbcast.lane.b32.xlu0 %v1760, 256
        %v1763 = vpop.permute.xlu0 %1762
        %v1764 = vlaneseq
        %v1765 = vshrl.u32 %v1764, 7
        %v1766 = vsub.s32 1, %v1765
        %v1767 = vrot.slane %v810, %v1766
        %1769 = vbcast.lane.b32.xlu0 %v1767, 256
        %v1770 = vpop.permute.xlu0 %1769
        %v1771 = vlaneseq
        %v1772 = vshrl.u32 %v1771, 7
        %v1773 = vsub.s32 2, %v1772
        %v1774 = vrot.slane %v810, %v1773
        %1776 = vbcast.lane.b32.xlu0 %v1774, 256
        %v1777 = vpop.permute.xlu0 %1776
        %v1778 = vlaneseq
        %v1779 = vshrl.u32 %v1778, 7
        %v1780 = vsub.s32 3, %v1779
        %v1781 = vrot.slane %v810, %v1780
        %1783 = vbcast.lane.b32.xlu0 %v1781, 256
        %v1784 = vpop.permute.xlu0 %1783
        %v1785 = vlaneseq
        %v1786 = vshrl.u32 %v1785, 7
        %v1787 = vsub.s32 4, %v1786
        %v1788 = vrot.slane %v810, %v1787
        %1790 = vbcast.lane.b32.xlu0 %v1788, 256
        %v1791 = vpop.permute.xlu0 %1790
        %v1792 = vlaneseq
        %v1793 = vshrl.u32 %v1792, 7
        %v1794 = vsub.s32 5, %v1793
        %v1795 = vrot.slane %v810, %v1794
        %1797 = vbcast.lane.b32.xlu0 %v1795, 256
        %v1798 = vpop.permute.xlu0 %1797
        %v1799 = vlaneseq
        %v1800 = vshrl.u32 %v1799, 7
        %v1801 = vsub.s32 6, %v1800
        %v1802 = vrot.slane %v810, %v1801
        %1804 = vbcast.lane.b32.xlu0 %v1802, 256
        %v1805 = vpop.permute.xlu0 %1804
        %v1806 = vlaneseq
        %v1807 = vshrl.u32 %v1806, 7
        %v1808 = vsub.s32 7, %v1807
        %v1809 = vrot.slane %v810, %v1808
        %1811 = vbcast.lane.b32.xlu0 %v1809, 256
        %v1812 = vpop.permute.xlu0 %1811
        %v1821 = vmul.f32 %v1747, %v1763
        %v1822 = vmul.f32 %v1748, %v1770
        %v1823 = vmul.f32 %v1749, %v1777
        %v1824 = vmul.f32 %v1750, %v1784
        %v1825 = vmul.f32 %v1751, %v1791
        %v1826 = vmul.f32 %v1752, %v1798
        %v1827 = vmul.f32 %v1753, %v1805
        %v1828 = vmul.f32 %v1754, %v1812
        %1837 = vset.pattern.permute.xlu0 0
        %1838 = vperm.xlu0 %1837, %v1821
        %v1839 = vpop.permute.xlu0 %1838
        %1840 = vset.pattern.permute.xlu0 0
        %1841 = vperm.xlu0 %1840, %v1822
        %v1842 = vpop.permute.xlu0 %1841
        %1843 = vset.pattern.permute.xlu0 0
        %1844 = vperm.xlu0 %1843, %v1823
        %v1845 = vpop.permute.xlu0 %1844
        %1846 = vset.pattern.permute.xlu0 0
        %1847 = vperm.xlu0 %1846, %v1824
        %v1848 = vpop.permute.xlu0 %1847
        %1849 = vset.pattern.permute.xlu0 0
        %1850 = vperm.xlu0 %1849, %v1825
        %v1851 = vpop.permute.xlu0 %1850
        %1852 = vset.pattern.permute.xlu0 0
        %1853 = vperm.xlu0 %1852, %v1826
        %v1854 = vpop.permute.xlu0 %1853
        %1855 = vset.pattern.permute.xlu0 0
        %1856 = vperm.xlu0 %1855, %v1827
        %v1857 = vpop.permute.xlu0 %1856
        %1858 = vset.pattern.permute.xlu0 0
        %1859 = vperm.xlu0 %1858, %v1828
        %v1860 = vpop.permute.xlu0 %1859
        %v1861 = vlaneseq
        %v1862 = vand.u32 %v1861, 127
        %v1863 = vlaneseq
        %v1864 = vshrl.u32 %v1863, 7
        %v1865 = vsub.s32 %v1862, %v1864
        %v1866 = vrot.slane %v1839, %v1865
        %v1867 = vlaneseq
        %v1868 = vshrl.u32 %v1867, 7
        %v1869 = vsub.s32 %v1862, %v1868
        %v1870 = vrot.slane %v1842, %v1869
        %v1871 = vlaneseq
        %v1872 = vshrl.u32 %v1871, 7
        %v1873 = vsub.s32 %v1862, %v1872
        %v1874 = vrot.slane %v1845, %v1873
        %v1875 = vlaneseq
        %v1876 = vshrl.u32 %v1875, 7
        %v1877 = vsub.s32 %v1862, %v1876
        %v1878 = vrot.slane %v1848, %v1877
        %v1879 = vlaneseq
        %v1880 = vshrl.u32 %v1879, 7
        %v1881 = vsub.s32 %v1862, %v1880
        %v1882 = vrot.slane %v1851, %v1881
        %v1883 = vlaneseq
        %v1884 = vshrl.u32 %v1883, 7
        %v1885 = vsub.s32 %v1862, %v1884
        %v1886 = vrot.slane %v1854, %v1885
        %v1887 = vlaneseq
        %v1888 = vshrl.u32 %v1887, 7
        %v1889 = vsub.s32 %v1862, %v1888
        %v1890 = vrot.slane %v1857, %v1889
        %v1891 = vlaneseq
        %v1892 = vshrl.u32 %v1891, 7
        %v1893 = vsub.s32 %v1862, %v1892
        %v1894 = vrot.slane %v1860, %v1893
        %v1895 = vsel %vm1434, %v1870, %v1866
        %v1896 = vsel %vm1436, %v1874, %v1895
        %v1897 = vsel %vm1438, %v1878, %v1896
        %v1898 = vsel %vm1440, %v1882, %v1897
        %v1899 = vsel %vm1442, %v1886, %v1898
        %v1900 = vsel %vm1444, %v1890, %v1899
        %v1901 = vsel %vm1446, %v1894, %v1900
        %vm1903 = vcmask 64512
        %v1904 = vsel %vm1903, %v1901, 0.0
        %1905 = vadd.xlane.f32.xlu0 %v1904
        %v1906 = vpop.xlane.xlu0 %1905
        %v1908 = vlaneseq
        %v1909 = vshrl.u32 %v1908, 7
        %v1910 = vsub.s32 0, %v1909
        %v1911 = vrot.slane %v819, %v1910
        %1913 = vbcast.lane.b32.xlu0 %v1911, 256
        %v1914 = vpop.permute.xlu0 %1913
        %v1915 = vlaneseq
        %v1916 = vshrl.u32 %v1915, 7
        %v1917 = vsub.s32 1, %v1916
        %v1918 = vrot.slane %v819, %v1917
        %1920 = vbcast.lane.b32.xlu0 %v1918, 256
        %v1921 = vpop.permute.xlu0 %1920
        %v1922 = vlaneseq
        %v1923 = vshrl.u32 %v1922, 7
        %v1924 = vsub.s32 2, %v1923
        %v1925 = vrot.slane %v819, %v1924
        %1927 = vbcast.lane.b32.xlu0 %v1925, 256
        %v1928 = vpop.permute.xlu0 %1927
        %v1929 = vlaneseq
        %v1930 = vshrl.u32 %v1929, 7
        %v1931 = vsub.s32 3, %v1930
        %v1932 = vrot.slane %v819, %v1931
        %1934 = vbcast.lane.b32.xlu0 %v1932, 256
        %v1935 = vpop.permute.xlu0 %1934
        %v1936 = vlaneseq
        %v1937 = vshrl.u32 %v1936, 7
        %v1938 = vsub.s32 4, %v1937
        %v1939 = vrot.slane %v819, %v1938
        %1941 = vbcast.lane.b32.xlu0 %v1939, 256
        %v1942 = vpop.permute.xlu0 %1941
        %v1943 = vlaneseq
        %v1944 = vshrl.u32 %v1943, 7
        %v1945 = vsub.s32 5, %v1944
        %v1946 = vrot.slane %v819, %v1945
        %1948 = vbcast.lane.b32.xlu0 %v1946, 256
        %v1949 = vpop.permute.xlu0 %1948
        %v1950 = vlaneseq
        %v1951 = vshrl.u32 %v1950, 7
        %v1952 = vsub.s32 6, %v1951
        %v1953 = vrot.slane %v819, %v1952
        %1955 = vbcast.lane.b32.xlu0 %v1953, 256
        %v1956 = vpop.permute.xlu0 %1955
        %v1957 = vlaneseq
        %v1958 = vshrl.u32 %v1957, 7
        %v1959 = vsub.s32 7, %v1958
        %v1960 = vrot.slane %v819, %v1959
        %1962 = vbcast.lane.b32.xlu0 %v1960, 256
        %v1963 = vpop.permute.xlu0 %1962
        %v1972 = vmul.f32 %v1747, %v1914
        %v1973 = vmul.f32 %v1748, %v1921
        %v1974 = vmul.f32 %v1749, %v1928
        %v1975 = vmul.f32 %v1750, %v1935
        %v1976 = vmul.f32 %v1751, %v1942
        %v1977 = vmul.f32 %v1752, %v1949
        %v1978 = vmul.f32 %v1753, %v1956
        %v1979 = vmul.f32 %v1754, %v1963
        %1988 = vset.pattern.permute.xlu0 0
        %1989 = vperm.xlu0 %1988, %v1972
        %v1990 = vpop.permute.xlu0 %1989
        %1991 = vset.pattern.permute.xlu0 0
        %1992 = vperm.xlu0 %1991, %v1973
        %v1993 = vpop.permute.xlu0 %1992
        %1994 = vset.pattern.permute.xlu0 0
        %1995 = vperm.xlu0 %1994, %v1974
        %v1996 = vpop.permute.xlu0 %1995
        %1997 = vset.pattern.permute.xlu0 0
        %1998 = vperm.xlu0 %1997, %v1975
        %v1999 = vpop.permute.xlu0 %1998
        %2000 = vset.pattern.permute.xlu0 0
        %2001 = vperm.xlu0 %2000, %v1976
        %v2002 = vpop.permute.xlu0 %2001
        %2003 = vset.pattern.permute.xlu0 0
        %2004 = vperm.xlu0 %2003, %v1977
        %v2005 = vpop.permute.xlu0 %2004
        %2006 = vset.pattern.permute.xlu0 0
        %2007 = vperm.xlu0 %2006, %v1978
        %v2008 = vpop.permute.xlu0 %2007
        %2009 = vset.pattern.permute.xlu0 0
        %2010 = vperm.xlu0 %2009, %v1979
        %v2011 = vpop.permute.xlu0 %2010
        %v2012 = vlaneseq
        %v2013 = vshrl.u32 %v2012, 7
        %v2014 = vsub.s32 %v1862, %v2013
        %v2015 = vrot.slane %v1990, %v2014
        %v2016 = vlaneseq
        %v2017 = vshrl.u32 %v2016, 7
        %v2018 = vsub.s32 %v1862, %v2017
        %v2019 = vrot.slane %v1993, %v2018
        %v2020 = vlaneseq
        %v2021 = vshrl.u32 %v2020, 7
        %v2022 = vsub.s32 %v1862, %v2021
        %v2023 = vrot.slane %v1996, %v2022
        %v2024 = vlaneseq
        %v2025 = vshrl.u32 %v2024, 7
        %v2026 = vsub.s32 %v1862, %v2025
        %v2027 = vrot.slane %v1999, %v2026
        %v2028 = vlaneseq
        %v2029 = vshrl.u32 %v2028, 7
        %v2030 = vsub.s32 %v1862, %v2029
        %v2031 = vrot.slane %v2002, %v2030
        %v2032 = vlaneseq
        %v2033 = vshrl.u32 %v2032, 7
        %v2034 = vsub.s32 %v1862, %v2033
        %v2035 = vrot.slane %v2005, %v2034
        %v2036 = vlaneseq
        %v2037 = vshrl.u32 %v2036, 7
        %v2038 = vsub.s32 %v1862, %v2037
        %v2039 = vrot.slane %v2008, %v2038
        %v2040 = vlaneseq
        %v2041 = vshrl.u32 %v2040, 7
        %v2042 = vsub.s32 %v1862, %v2041
        %v2043 = vrot.slane %v2011, %v2042
        %v2044 = vsel %vm1434, %v2019, %v2015
        %v2045 = vsel %vm1436, %v2023, %v2044
        %v2046 = vsel %vm1438, %v2027, %v2045
        %v2047 = vsel %vm1440, %v2031, %v2046
        %v2048 = vsel %vm1442, %v2035, %v2047
        %v2049 = vsel %vm1444, %v2039, %v2048
        %v2050 = vsel %vm1446, %v2043, %v2049
        %v2052 = vsel %vm1903, %v2050, 0.0
        %2053 = vadd.xlane.f32.xlu0 %v2052
        %v2054 = vpop.xlane.xlu0 %2053
        %v2056 = vlaneseq
        %v2057 = vshrl.u32 %v2056, 7
        %v2058 = vsub.s32 0, %v2057
        %v2059 = vrot.slane %v828, %v2058
        %2061 = vbcast.lane.b32.xlu0 %v2059, 256
        %v2062 = vpop.permute.xlu0 %2061
        %v2063 = vlaneseq
        %v2064 = vshrl.u32 %v2063, 7
        %v2065 = vsub.s32 1, %v2064
        %v2066 = vrot.slane %v828, %v2065
        %2068 = vbcast.lane.b32.xlu0 %v2066, 256
        %v2069 = vpop.permute.xlu0 %2068
        %v2070 = vlaneseq
        %v2071 = vshrl.u32 %v2070, 7
        %v2072 = vsub.s32 2, %v2071
        %v2073 = vrot.slane %v828, %v2072
        %2075 = vbcast.lane.b32.xlu0 %v2073, 256
        %v2076 = vpop.permute.xlu0 %2075
        %v2077 = vlaneseq
        %v2078 = vshrl.u32 %v2077, 7
        %v2079 = vsub.s32 3, %v2078
        %v2080 = vrot.slane %v828, %v2079
        %2082 = vbcast.lane.b32.xlu0 %v2080, 256
        %v2083 = vpop.permute.xlu0 %2082
        %v2084 = vlaneseq
        %v2085 = vshrl.u32 %v2084, 7
        %v2086 = vsub.s32 4, %v2085
        %v2087 = vrot.slane %v828, %v2086
        %2089 = vbcast.lane.b32.xlu0 %v2087, 256
        %v2090 = vpop.permute.xlu0 %2089
        %v2091 = vlaneseq
        %v2092 = vshrl.u32 %v2091, 7
        %v2093 = vsub.s32 5, %v2092
        %v2094 = vrot.slane %v828, %v2093
        %2096 = vbcast.lane.b32.xlu0 %v2094, 256
        %v2097 = vpop.permute.xlu0 %2096
        %v2098 = vlaneseq
        %v2099 = vshrl.u32 %v2098, 7
        %v2100 = vsub.s32 6, %v2099
        %v2101 = vrot.slane %v828, %v2100
        %2103 = vbcast.lane.b32.xlu0 %v2101, 256
        %v2104 = vpop.permute.xlu0 %2103
        %v2105 = vlaneseq
        %v2106 = vshrl.u32 %v2105, 7
        %v2107 = vsub.s32 7, %v2106
        %v2108 = vrot.slane %v828, %v2107
        %2110 = vbcast.lane.b32.xlu0 %v2108, 256
        %v2111 = vpop.permute.xlu0 %2110
        %v2120 = vmul.f32 %v1747, %v2062
        %v2121 = vmul.f32 %v1748, %v2069
        %v2122 = vmul.f32 %v1749, %v2076
        %v2123 = vmul.f32 %v1750, %v2083
        %v2124 = vmul.f32 %v1751, %v2090
        %v2125 = vmul.f32 %v1752, %v2097
        %v2126 = vmul.f32 %v1753, %v2104
        %v2127 = vmul.f32 %v1754, %v2111
        %2136 = vset.pattern.permute.xlu0 0
        %2137 = vperm.xlu0 %2136, %v2120
        %v2138 = vpop.permute.xlu0 %2137
        %2139 = vset.pattern.permute.xlu0 0
        %2140 = vperm.xlu0 %2139, %v2121
        %v2141 = vpop.permute.xlu0 %2140
        %2142 = vset.pattern.permute.xlu0 0
        %2143 = vperm.xlu0 %2142, %v2122
        %v2144 = vpop.permute.xlu0 %2143
        %2145 = vset.pattern.permute.xlu0 0
        %2146 = vperm.xlu0 %2145, %v2123
        %v2147 = vpop.permute.xlu0 %2146
        %2148 = vset.pattern.permute.xlu0 0
        %2149 = vperm.xlu0 %2148, %v2124
        %v2150 = vpop.permute.xlu0 %2149
        %2151 = vset.pattern.permute.xlu0 0
        %2152 = vperm.xlu0 %2151, %v2125
        %v2153 = vpop.permute.xlu0 %2152
        %2154 = vset.pattern.permute.xlu0 0
        %2155 = vperm.xlu0 %2154, %v2126
        %v2156 = vpop.permute.xlu0 %2155
        %2157 = vset.pattern.permute.xlu0 0
        %2158 = vperm.xlu0 %2157, %v2127
        %v2159 = vpop.permute.xlu0 %2158
        %v2160 = vlaneseq
        %v2161 = vshrl.u32 %v2160, 7
        %v2162 = vsub.s32 %v1862, %v2161
        %v2163 = vrot.slane %v2138, %v2162
        %v2164 = vlaneseq
        %v2165 = vshrl.u32 %v2164, 7
        %v2166 = vsub.s32 %v1862, %v2165
        %v2167 = vrot.slane %v2141, %v2166
        %v2168 = vlaneseq
        %v2169 = vshrl.u32 %v2168, 7
        %v2170 = vsub.s32 %v1862, %v2169
        %v2171 = vrot.slane %v2144, %v2170
        %v2172 = vlaneseq
        %v2173 = vshrl.u32 %v2172, 7
        %v2174 = vsub.s32 %v1862, %v2173
        %v2175 = vrot.slane %v2147, %v2174
        %v2176 = vlaneseq
        %v2177 = vshrl.u32 %v2176, 7
        %v2178 = vsub.s32 %v1862, %v2177
        %v2179 = vrot.slane %v2150, %v2178
        %v2180 = vlaneseq
        %v2181 = vshrl.u32 %v2180, 7
        %v2182 = vsub.s32 %v1862, %v2181
        %v2183 = vrot.slane %v2153, %v2182
        %v2184 = vlaneseq
        %v2185 = vshrl.u32 %v2184, 7
        %v2186 = vsub.s32 %v1862, %v2185
        %v2187 = vrot.slane %v2156, %v2186
        %v2188 = vlaneseq
        %v2189 = vshrl.u32 %v2188, 7
        %v2190 = vsub.s32 %v1862, %v2189
        %v2191 = vrot.slane %v2159, %v2190
        %v2192 = vsel %vm1434, %v2167, %v2163
        %v2193 = vsel %vm1436, %v2171, %v2192
        %v2194 = vsel %vm1438, %v2175, %v2193
        %v2195 = vsel %vm1440, %v2179, %v2194
        %v2196 = vsel %vm1442, %v2183, %v2195
        %v2197 = vsel %vm1444, %v2187, %v2196
        %v2198 = vsel %vm1446, %v2191, %v2197
        %v2200 = vsel %vm1903, %v2198, 0.0
        %2201 = vadd.xlane.f32.xlu0 %v2200
        %v2202 = vpop.xlane.xlu0 %2201
        %vm2203 = vcmask 7168
        %v2204 = vsel %vm2203, %v1906, %v2054
        %vm2205 = vcmask 15360
        %v2206 = vsel %vm2205, %v2204, %v2202
        %v2207 = vadd.f32 %v1755, %v2206
        %vm2208 = vcmask 23552
        %2209 = vst.msk [vmem:[#allocation3] sm:$0xff] %vm2208, %v2207
        %p2210 = scmp.eq.s32.totalorder %s42, 1
        // Predicated region
        $region93: #{res_egnn_pallas.7} parent=87 // pred_check
          %p2211 = pneg %p2210
        $region94: #{res_egnn_pallas.7} parent=87 // pred_check_branch
          %2213 = sbr.rel (%p2211) target = $region96
        $region95: #{res_egnn_pallas.7} parent=87 // pred_region
          %v2214 = vld [vmem:[%s716] sm:$0xff]
          %v2215 = vld [vmem:[%s12] sm:$0xff]
          %v2216 = vld [vmem:[%s12 + $0x8] sm:$0xff]
          %v2217 = vld [vmem:[%s12 + $0x10] sm:$0xff]
          %v2218 = vld [vmem:[%s12 + $0x18] sm:$0xff]
          %v2219 = vld [vmem:[%s12 + $0x20] sm:$0xff]
          %v2220 = vld [vmem:[%s12 + $0x28] sm:$0x1]
          %v2221 = vld [vmem:[#allocation2] sm:$0xff]
          %v2222 = vld [vmem:[%s13] sm:$0xff]
          %v2223 = vld [vmem:[%s13 + $0x8] sm:$0xff]
          %v2224 = vld [vmem:[%s13 + $0x10] sm:$0xff]
          %v2225 = vld [vmem:[%s13 + $0x18] sm:$0xff]
          %v2227 = vsel %vm1369, %v2221, 0
          %2229 = vmatprep.subr.mxu0 0.0
          %2230 = vmatpush1.msra.mxu0 %v2222
          %2231 = vmatprep.subr.mxu0 0.0
          %2232 = vmatpush1.msra.mxu0 %v2223
          %2233 = vmatprep.subr.mxu0 0.0
          %2234 = vmatpush1.msra.mxu0 %v2224
          %2235 = vmatprep.subr.mxu0 0.0
          %2236 = vmatpush1.msra.mxu0 %v2225
          %2237 = vmatprep.subr.mxu0 0.0
          %2238 = vmatpush1.msra.mxu0 0.0
          %2239 = vmatprep.subr.mxu0 0.0
          %2240 = vmatpush1.msra.mxu0 0.0
          %2241 = vmatprep.subr.mxu0 0.0
          %2242 = vmatpush1.msra.mxu0 0.0
          %2243 = vmatprep.subr.mxu0 0.0
          %2244 = vmatpush1.msra.mxu0 0.0
          %2245 = vmatprep.subr.mxu0 0.0
          %2246 = vmatpush1.msra.mxu0 0.0
          %2247 = vmatprep.subr.mxu0 0.0
          %2248 = vmatpush1.msra.mxu0 0.0
          %2249 = vmatprep.subr.mxu0 0.0
          %2250 = vmatpush1.msra.mxu0 0.0
          %2251 = vmatprep.subr.mxu0 0.0
          %2252 = vmatpush1.msra.mxu0 0.0
          %2253 = vmatprep.subr.mxu0 0.0
          %2254 = vmatpush1.msra.mxu0 0.0
          %2255 = vmatprep.subr.mxu0 0.0
          %2256 = vmatpush1.msra.mxu0 0.0
          %2257 = vmatprep.subr.mxu0 0.0
          %2258 = vmatpush1.msra.mxu0 0.0
          %2259 = vmatprep.subr.mxu0 0.0
          %2260 = vmatpush1.msra.mxu0 0.0
          %2261 = vmatprep.subr.mxu0 0.0
          %2262 = vmatpush1.msra.mxu0 0.0
          %2263 = vmatprep.subr.mxu0 0.0
          %2264 = vmatpush1.msra.mxu0 0.0
          %2265 = vmatprep.subr.mxu0 0.0
          %2266 = vmatpush1.msra.mxu0 0.0
          %2267 = vmatprep.subr.mxu0 0.0
          %2268 = vmatpush1.msra.mxu0 0.0
          %2269 = vmatprep.subr.mxu0 0.0
          %2270 = vmatpush1.msra.mxu0 0.0
          %2271 = vmatprep.subr.mxu0 0.0
          %2272 = vmatpush1.msra.mxu0 0.0
          %2273 = vmatprep.subr.mxu0 0.0
          %2274 = vmatpush1.msra.mxu0 0.0
          %2275 = vmatprep.subr.mxu0 0.0
          %2276 = vmatpush1.msra.mxu0 0.0
          %2277 = vmatprep.subr.mxu0 0.0
          %2278 = vmatpush1.msra.mxu0 0.0
          %2279 = vmatprep.subr.mxu0 0.0
          %2280 = vmatpush1.msra.mxu0 0.0
          %2281 = vmatprep.subr.mxu0 0.0
          %2282 = vmatpush1.msra.mxu0 0.0
          %2283 = vmatprep.subr.mxu0 0.0
          %2284 = vmatpush1.msra.mxu0 0.0
          %2285 = vmatprep.subr.mxu0 0.0
          %2286 = vmatpush1.msra.mxu0 0.0
          %2287 = vmatprep.subr.mxu0 0.0
          %2288 = vmatpush1.msra.mxu0 0.0
          %2289 = vmatprep.subr.mxu0 0.0
          %2290 = vmatpush1.msra.mxu0 0.0
          %2291 = vmatprep.subr.mxu0 0.0
          %2292 = vmatpush1.msra.mxu0 0.0
          %2293 = vmatprep.mubr.f32.mxu0 0.0
          %2294 = vmatmul.mubr.f32.gmra.mrb[0].mxu0 %v2227
          %v2295 = vpop.f32.mrb[0].mxu0
          %v2296 = vadd.f32 0.0, %v2295
          %v2297 = vpop.f32.mrb[0].mxu0
          %2298 = vdwg.mxu0
          %vm2299 = vcmask 334848
          %v2301 = vsel %vm2299, %v2214, 0
          %vm2303 = vcmask 1040384
          %v2305 = vsel %vm2303, %v2220, 0
          %2307 = vmatprep.subr.mxu0 0.0
          %2308 = vmatpush1.msra.mxu0 %v2215
          %2309 = vmatprep.subr.mxu0 0.0
          %2310 = vmatpush1.msra.mxu0 %v2216
          %2311 = vmatprep.subr.mxu0 0.0
          %2312 = vmatpush1.msra.mxu0 %v2217
          %2313 = vmatprep.subr.mxu0 0.0
          %2314 = vmatpush1.msra.mxu0 %v2218
          %2315 = vmatprep.subr.mxu0 0.0
          %2316 = vmatpush1.msra.mxu0 %v2219
          %2317 = vmatprep.subr.mxu0 0.0
          %2318 = vmatpush1.msra.mxu0 %v2305
          %2319 = vmatprep.subr.mxu0 0.0
          %2320 = vmatpush1.msra.mxu0 0.0
          %2321 = vmatprep.subr.mxu0 0.0
          %2322 = vmatpush1.msra.mxu0 0.0
          %2323 = vmatprep.subr.mxu0 0.0
          %2324 = vmatpush1.msra.mxu0 0.0
          %2325 = vmatprep.subr.mxu0 0.0
          %2326 = vmatpush1.msra.mxu0 0.0
          %2327 = vmatprep.subr.mxu0 0.0
          %2328 = vmatpush1.msra.mxu0 0.0
          %2329 = vmatprep.subr.mxu0 0.0
          %2330 = vmatpush1.msra.mxu0 0.0
          %2331 = vmatprep.subr.mxu0 0.0
          %2332 = vmatpush1.msra.mxu0 0.0
          %2333 = vmatprep.subr.mxu0 0.0
          %2334 = vmatpush1.msra.mxu0 0.0
          %2335 = vmatprep.subr.mxu0 0.0
          %2336 = vmatpush1.msra.mxu0 0.0
          %2337 = vmatprep.subr.mxu0 0.0
          %2338 = vmatpush1.msra.mxu0 0.0
          %2339 = vmatprep.subr.mxu0 0.0
          %2340 = vmatpush1.msra.mxu0 0.0
          %2341 = vmatprep.subr.mxu0 0.0
          %2342 = vmatpush1.msra.mxu0 0.0
          %2343 = vmatprep.subr.mxu0 0.0
          %2344 = vmatpush1.msra.mxu0 0.0
          %2345 = vmatprep.subr.mxu0 0.0
          %2346 = vmatpush1.msra.mxu0 0.0
          %2347 = vmatprep.subr.mxu0 0.0
          %2348 = vmatpush1.msra.mxu0 0.0
          %2349 = vmatprep.subr.mxu0 0.0
          %2350 = vmatpush1.msra.mxu0 0.0
          %2351 = vmatprep.subr.mxu0 0.0
          %2352 = vmatpush1.msra.mxu0 0.0
          %2353 = vmatprep.subr.mxu0 0.0
          %2354 = vmatpush1.msra.mxu0 0.0
          %2355 = vmatprep.subr.mxu0 0.0
          %2356 = vmatpush1.msra.mxu0 0.0
          %2357 = vmatprep.subr.mxu0 0.0
          %2358 = vmatpush1.msra.mxu0 0.0
          %2359 = vmatprep.subr.mxu0 0.0
          %2360 = vmatpush1.msra.mxu0 0.0
          %2361 = vmatprep.subr.mxu0 0.0
          %2362 = vmatpush1.msra.mxu0 0.0
          %2363 = vmatprep.subr.mxu0 0.0
          %2364 = vmatpush1.msra.mxu0 0.0
          %2365 = vmatprep.subr.mxu0 0.0
          %2366 = vmatpush1.msra.mxu0 0.0
          %2367 = vmatprep.subr.mxu0 0.0
          %2368 = vmatpush1.msra.mxu0 0.0
          %2369 = vmatprep.subr.mxu0 0.0
          %2370 = vmatpush1.msra.mxu0 0.0
          %2371 = vmatprep.mubr.f32.mxu0 0.0
          %2372 = vmatmul.mubr.f32.gmra.mrb[0].mxu0 %v2301
          %v2373 = vpop.f32.mrb[0].mxu0
          %v2374 = vadd.f32 %v2296, %v2373
          %v2375 = vpop.f32.mrb[0].mxu0
          %2376 = vdwg.mxu0
          %v2377 = vld [vmem:[%s14] sm:$0x1]
          %v2379 = vlaneseq
          %v2380 = vshrl.u32 %v2379, 7
          %v2381 = vsub.s32 0, %v2380
          %v2382 = vrot.slane %v2377, %v2381
          %v2384 = vadd.f32 %v2374, %v2382
          %v2385 = vmul.f32 %v2384, 0.5
          %v2386 = vtanh.pop %v2385
          %v2387 = vmul.f32 %v2386, 0.5
          %v2388 = vadd.f32 %v2387, 0.5
          %v2389 = vmul.f32 %v2384, %v2388
          %v2390 = vld [vmem:[%s15] sm:$0xff]
          %v2391 = vld [vmem:[%s15 + $0x8] sm:$0xff]
          %v2392 = vld [vmem:[%s15 + $0x10] sm:$0xff]
          %v2393 = vld [vmem:[%s15 + $0x18] sm:$0xff]
          %v2394 = vld [vmem:[%s15 + $0x20] sm:$0xff]
          %v2395 = vld [vmem:[%s15 + $0x28] sm:$0xff]
          %v2396 = vld [vmem:[%s15 + $0x30] sm:$0xff]
          %v2397 = vld [vmem:[%s15 + $0x38] sm:$0xff]
          %v2398 = vld [vmem:[%s15 + $0x40] sm:$0xff]
          %v2399 = vld [vmem:[%s15 + $0x48] sm:$0xff]
          %v2400 = vld [vmem:[%s15 + $0x50] sm:$0x3]
          %v2401 = vld [vmem:[%s16] sm:$0x1]
          %v2403 = vlaneseq
          %v2404 = vshrl.u32 %v2403, 7
          %v2405 = vsub.s32 0, %v2404
          %v2406 = vrot.slane %v2401, %v2405
          %vm2408 = vcmask 670720
          %v2410 = vsel %vm2408, %v2389, 0
          %vm2412 = vcmask 1041408
          %v2414 = vsel %vm2412, %v2400, 0
          %2416 = vmatprep.subr.mxu0 0.0
          %2417 = vmatpush1.msra.mxu0 %v2390
          %2418 = vmatprep.subr.mxu0 0.0
          %2419 = vmatpush1.msra.mxu0 %v2391
          %2420 = vmatprep.subr.mxu0 0.0
          %2421 = vmatpush1.msra.mxu0 %v2392
          %2422 = vmatprep.subr.mxu0 0.0
          %2423 = vmatpush1.msra.mxu0 %v2393
          %2424 = vmatprep.subr.mxu0 0.0
          %2425 = vmatpush1.msra.mxu0 %v2394
          %2426 = vmatprep.subr.mxu0 0.0
          %2427 = vmatpush1.msra.mxu0 %v2395
          %2428 = vmatprep.subr.mxu0 0.0
          %2429 = vmatpush1.msra.mxu0 %v2396
          %2430 = vmatprep.subr.mxu0 0.0
          %2431 = vmatpush1.msra.mxu0 %v2397
          %2432 = vmatprep.subr.mxu0 0.0
          %2433 = vmatpush1.msra.mxu0 %v2398
          %2434 = vmatprep.subr.mxu0 0.0
          %2435 = vmatpush1.msra.mxu0 %v2399
          %2436 = vmatprep.subr.mxu0 0.0
          %2437 = vmatpush1.msra.mxu0 %v2414
          %2438 = vmatprep.subr.mxu0 0.0
          %2439 = vmatpush1.msra.mxu0 0.0
          %2440 = vmatprep.subr.mxu0 0.0
          %2441 = vmatpush1.msra.mxu0 0.0
          %2442 = vmatprep.subr.mxu0 0.0
          %2443 = vmatpush1.msra.mxu0 0.0
          %2444 = vmatprep.subr.mxu0 0.0
          %2445 = vmatpush1.msra.mxu0 0.0
          %2446 = vmatprep.subr.mxu0 0.0
          %2447 = vmatpush1.msra.mxu0 0.0
          %2448 = vmatprep.subr.mxu0 0.0
          %2449 = vmatpush1.msra.mxu0 0.0
          %2450 = vmatprep.subr.mxu0 0.0
          %2451 = vmatpush1.msra.mxu0 0.0
          %2452 = vmatprep.subr.mxu0 0.0
          %2453 = vmatpush1.msra.mxu0 0.0
          %2454 = vmatprep.subr.mxu0 0.0
          %2455 = vmatpush1.msra.mxu0 0.0
          %2456 = vmatprep.subr.mxu0 0.0
          %2457 = vmatpush1.msra.mxu0 0.0
          %2458 = vmatprep.subr.mxu0 0.0
          %2459 = vmatpush1.msra.mxu0 0.0
          %2460 = vmatprep.subr.mxu0 0.0
          %2461 = vmatpush1.msra.mxu0 0.0
          %2462 = vmatprep.subr.mxu0 0.0
          %2463 = vmatpush1.msra.mxu0 0.0
          %2464 = vmatprep.subr.mxu0 0.0
          %2465 = vmatpush1.msra.mxu0 0.0
          %2466 = vmatprep.subr.mxu0 0.0
          %2467 = vmatpush1.msra.mxu0 0.0
          %2468 = vmatprep.subr.mxu0 0.0
          %2469 = vmatpush1.msra.mxu0 0.0
          %2470 = vmatprep.subr.mxu0 0.0
          %2471 = vmatpush1.msra.mxu0 0.0
          %2472 = vmatprep.subr.mxu0 0.0
          %2473 = vmatpush1.msra.mxu0 0.0
          %2474 = vmatprep.subr.mxu0 0.0
          %2475 = vmatpush1.msra.mxu0 0.0
          %2476 = vmatprep.subr.mxu0 0.0
          %2477 = vmatpush1.msra.mxu0 0.0
          %2478 = vmatprep.subr.mxu0 0.0
          %2479 = vmatpush1.msra.mxu0 0.0
          %2480 = vmatprep.mubr.f32.mxu0 0.0
          %2481 = vmatmul.mubr.f32.gmra.mrb[0].mxu0 %v2410
          %v2482 = vpop.f32.mrb[0].mxu0
          %v2483 = vadd.f32 %v2406, %v2482
          %v2484 = vpop.f32.mrb[0].mxu0
          %2485 = vdwg.mxu0
          %v2486 = vadd.f32 %v2483, %v2214
          %2487 = vst.msk [vmem:[%s698] sm:$0xff] %vm2299, %v2486
          %v2488 = vld [vmem:[#allocation3] sm:$0xff]
          %v2489 = vadd.f32 %v767, %v2488
          %2490 = vst.msk [vmem:[%s758] sm:$0xff] %vm2208, %v2489
        $region96: #{res_egnn_pallas.7} parent=87 // pred_fallthru
          _
        %s2491 = sand.u32 %s456, 1
        %s2492 = scalar_lea.sflag [#allocation6], %s2491
        %s2493 = sand.u32 %s456, 1
        %s2494 = smul.addr %s2493, 8
        %s2495 = scalar_lea.vmem [#allocation5], %s2494
        %p2496 = scmp.lt.s32.totalorder %s40, 1
        %s2497 = scalar_select %p2496, %s40, 1
        %p2498 = scmp.lt.s32.totalorder %s41, 1
        %s2499 = scalar_select %p2498, %s41, 1
        %s2500 = smul.addr %s2497, 2
        %s2501 = sadd.s32 %s2499, %s2500
        %s2502 = smul.addr %s2501, 8
        %s2503 = scalar_lea.vmem %s18, %s2502
        // Predicated region
        $region97: #{res_egnn_pallas.7} parent=87 // pred_check
          %p2504 = pneg %p466
        $region98: #{res_egnn_pallas.7} parent=87 // pred_check_branch
          %2506 = sbr.rel (%p2504) target = $region100
        $region99: #{res_egnn_pallas.7} parent=87 // pred_region
          %s2508 = ssub.s32 128, 128
          %2509 = vsyncadd %s2492, %s2508
          %s2510 = smul.addr %s40, 2
          %s2511 = sadd.s32 %s41, %s2510
          %s2512 = smul.addr %s2511, 128
          %s2513 = scalar_lea.hbm %s17, %s2512
          %s2515 = sshll.u32 %s2495, 4
          %s2516 = int_to_ptr.vmem [resolvable:$true] %s2515
          %2518 = dma.vmem_to_hbm [thread:$0]  %s2516, 128, %s2513, %s2492
        $region100: #{res_egnn_pallas.7} parent=87 // pred_fallthru
          _
        // Predicated region
        $region101: #{res_egnn_pallas.7} parent=87 // pred_check
          %p2519 = pneg %p494
        $region102: #{res_egnn_pallas.7} parent=87 // pred_check_branch
          %2521 = sbr.rel (%p2519) target = $region104
        $region103: #{res_egnn_pallas.7} parent=87 // pred_region
          _
        $region104: #{res_egnn_pallas.7} parent=87 // pred_fallthru
          _
      $region88: #{res_egnn_pallas.7} parent=5 // pred_fallthru
        _
      %p2522 = scmp.le.s32.totalorder 2, %s30
      // Predicated region
      $region105: #{res_egnn_pallas.7} parent=5 // pred_check
        %p2523 = pneg %p2522
      $region106: #{res_egnn_pallas.7} parent=5 // pred_check_branch
        %2525 = sbr.rel (%p2523) target = $region108
      $region107: #{res_egnn_pallas.7} parent=5 // pred_region
        %s2526 = ssub.s32 %s30, 2
        // Predicated region
        $region109: #{res_egnn_pallas.7} parent=107 // pred_check
          %p2527 = pneg %p472
        $region110: #{res_egnn_pallas.7} parent=107 // pred_check_branch
          %2529 = sbr.rel (%p2527) target = $region112
        $region111: #{res_egnn_pallas.7} parent=107 // pred_region
          %s2530 = sand.u32 %s457, 1
          %s2531 = scalar_lea.sflag [#allocation6], %s2530
          %s2532 = sand.u32 %s457, 1
          %s2533 = smul.addr %s2532, 8
          %s2534 = scalar_lea.vmem [#allocation5], %s2533
          %2535 = dma.done %s2531, 128
        $region112: #{res_egnn_pallas.7} parent=107 // pred_fallthru
          _
        // Predicated region
        $region113: #{res_egnn_pallas.7} parent=107 // pred_check
          %p2536 = pneg %p500
        $region114: #{res_egnn_pallas.7} parent=107 // pred_check_branch
          %2538 = sbr.rel (%p2536) target = $region116
        $region115: #{res_egnn_pallas.7} parent=107 // pred_region
          %p2539 = scmp.lt.s32.totalorder %s43, 1
          %s2540 = scalar_select %p2539, %s43, 1
          %p2541 = scmp.lt.s32.totalorder %s44, 1
          %s2542 = scalar_select %p2541, %s44, 1
          %s2543 = smul.addr %s2540, 2
          %s2544 = sadd.s32 %s2542, %s2543
          %s2545 = smul.addr %s2544, 8
          %s2546 = scalar_lea.vmem %s18, %s2545
        $region116: #{res_egnn_pallas.7} parent=107 // pred_fallthru
          _
      $region108: #{res_egnn_pallas.7} parent=5 // pred_fallthru
        _
    $region6: #{res_egnn_pallas.7} parent=1 // loop_footer
      %s34 = sadd.s32 1, %s30
    $region7: #{res_egnn_pallas.7} parent=1 // loop_footer_branch
      %29 = sbr.rel target = $region3
    $region8: #{res_egnn_pallas.7} parent=1 // loop_exit
      _
    %2547 = vsyncpa [#allocation6], 1
    %s2548 = scalar_lea.sflag [#allocation6], 1
    %2549 = vsyncpa %s2548, 1

</llo_original>
